<compile_context>
chip_gen: v7x
topology: tpu7x:2x2x1
jax: 0.10.0
libtpu: 0.0.40
codegen_flags: <defaults>
</compile_context>

<pallas_src>
import functools

import numpy as np
import jax
import jax.numpy as jnp
from jax.experimental import pallas as pl
from jax.experimental.pallas import tpu as pltpu


# ----- sizes implied by the PyTorch module (32x32 RGB input) ----------------- #
_H0, _W0, _C0 = 32, 32, 3        # network input
_W1, _C1 = 30, 4                 # conv1 output (valid conv, k=3)
_P1W = 15                        # pool1 output width
_W2, _C2 = 13, 8                 # conv2 output
_P2H, _P2W = 6, 6                # pool2 output
_K = 3                           # conv kernel size
_FC1 = 32
_NCLS = 10

_LANES_IN = _W0 * _C0            # 96  : input lanes,  lane = w*3 + c
_LANES_C1 = _W1 * _C1            # 120 : conv1 lanes,  lane = w*4 + co
_LANES_P1 = 8 * (_P1W - 1) + _C1  # 116 : pool1 lanes, valid data at 8*x + c
_LANES_C2 = _W2 * _C2            # 104 : conv2 lanes,  lane = x*8 + co
_LANES_P2 = 16 * _P2W            # 96  : pool2 lanes,  valid data at 16*x + co


# --------------------- trace-time weight re-layout (XLA glue) ---------------- #

def _conv_toeplitz(w_oihw, in_w, out_w, lane_group):
    """Expand an OIHW conv weight into kh Toeplitz matrices acting on the lane
    dim (column, channel) of a row-major activation matrix.

    Input lane  = col * lane_group + cin-index (cin fills the low slots of each
    lane_group-wide group; extra slots get zero rows).
    Output lane = col * cout + cout-index.
    Returns shape (kh, in_w * lane_group, out_w * cout).
    """
    cout, cin, kh, kw = w_oihw.shape
    sel = np.zeros((kw, in_w, out_w), np.float32)
    for kj in range(kw):
        for wo in range(out_w):
            sel[kj, wo + kj, wo] = 1.0
    # t[k, wi, ci, wo, co] = w[co, ci, k, wi - wo]   (0 <= wi - wo < kw, else 0)
    t = jnp.einsum("jio,abkj->kiboa", sel, w_oihw)
    if lane_group == cin:
        return t.reshape(kh, in_w * cin, out_w * cout)
    full = jnp.zeros((kh, in_w, lane_group, out_w * cout), jnp.float32)
    full = full.at[:, :, :cin, :].set(t.reshape(kh, in_w, cin, out_w * cout))
    return full.reshape(kh, in_w * lane_group, out_w * cout)


def _fc1_lane_weights(fc1_w):
    """Fold torch's NCHW flatten (feature = co*36 + y*6 + x) into fc1 weights.

    The kernel's pooled activation row for a given y carries channel co of
    column x at lane 16*x + co (other lanes are junk -> zero weights).
    Returns (6, 96, 32): one weight slab per pooled row y.
    """
    w = fc1_w.reshape(_FC1, _C2, _P2H, _P2W)          # (d, co, y, x)
    w = jnp.transpose(w, (2, 3, 1, 0))                # (y, x, co, d)
    full = jnp.zeros((_P2H, _P2W, 2 * _C2, _FC1), jnp.float32)
    full = full.at[:, :, :_C2, :].set(w)
    return full.reshape(_P2H, _P2W * 2 * _C2, _FC1)   # (6, 96, 32)


# ------------------------------ fused kernel --------------------------------- #

def _onehot_rows(n_out, n_in, stride, offset):
    """f32 (n_out, n_in) matrix S with S[q, r] = 1 iff r == stride*q + offset.
    Left-multiplying by S gathers strided rows on the MXU; avoids strided
    slicing / reshapes inside the kernel (row counts here are tiny)."""
    q = jax.lax.broadcasted_iota(jnp.int32, (n_out, n_in), 0)
    r = jax.lax.broadcasted_iota(jnp.int32, (n_out, n_in), 1)
    return jnp.where(r == stride * q + offset, 1.0, 0.0)


def _convnet_fused_kernel(x_ref, t1_ref, b1_ref, t2_ref, b2_ref,
                          f1_ref, f1b_ref, f2_ref, f2b_ref, o_ref, *, tb):
    rows_in = tb * _H0           # rows = (sample b, image row h)
    l1 = rows_in - (_K - 1)      # conv1 rows computed; rows with h>=30 are junk
    rows_p1 = tb * (_H0 // 2)    # pool1 rows = (b, y1), y1 in [0,16); y1==15 junk
    l2 = rows_p1 - (_K - 1)      # conv2 rows computed; rows with y2>=13 are junk

    xv = x_ref[...]                                        # (rows_in, 96)

    # ---- conv1 + bias + ReLU: 3 MXU matmuls against Toeplitz weights --------
    acc1 = jnp.dot(xv[0:l1, :], t1_ref[0], preferred_element_type=jnp.float32)
    for ki in range(1, _K):
        acc1 += jnp.dot(xv[ki:ki + l1, :], t1_ref[ki],
                        preferred_element_type=jnp.float32)
    acc1 = jnp.maximum(acc1 + b1_ref[...], 0.0)            # (l1, 120)

    # ---- pool1 (2x2/2): row phases via one-hot gather dots, column phase via
    #      a 4-lane-shifted max (conv1 lane layout is w*4 + co) ----------------
    r0 = jnp.dot(_onehot_rows(rows_p1, l1, 2, 0), acc1,
                 preferred_element_type=jnp.float32)
    r1 = jnp.dot(_onehot_rows(rows_p1, l1, 2, 1), acc1,
                 preferred_element_type=jnp.float32)
    hmax = jnp.maximum(r0, r1)                             # (rows_p1, 120)
    p1 = jnp.maximum(hmax[:, 0:_LANES_P1],
                     hmax[:, _C1:_C1 + _LANES_P1])         # (rows_p1, 116)

    # ---- conv2 + bias + ReLU -------------------------------------------------
    acc2 = jnp.dot(p1[0:l2, :], t2_ref[0], preferred_element_type=jnp.float32)
    for ki in range(1, _K):
        acc2 += jnp.dot(p1[ki:ki + l2, :], t2_ref[ki],
                        preferred_element_type=jnp.float32)
    acc2 = jnp.maximum(acc2 + b2_ref[...], 0.0)            # (l2, 104)

    # ---- pool2 + flatten (folded into fc1 weights) + fc1 + ReLU --------------
    fc1 = jnp.zeros((tb, _FC1), jnp.float32)
    for y3 in range(_P2H):
        g0 = jnp.dot(_onehot_rows(tb, l2, _H0 // 2, 2 * y3), acc2,
                     preferred_element_type=jnp.float32)
        g1 = jnp.dot(_onehot_rows(tb, l2, _H0 // 2, 2 * y3 + 1), acc2,
                     preferred_element_type=jnp.float32)
        gmax = jnp.maximum(g0, g1)                         # (tb, 104)
        pw = jnp.maximum(gmax[:, 0:_LANES_P2],
                         gmax[:, _C2:_C2 + _LANES_P2])     # (tb, 96)
        fc1 += jnp.dot(pw, f1_ref[y3], preferred_element_type=jnp.float32)
    fc1 = jnp.maximum(fc1 + f1b_ref[...], 0.0)             # (tb, 32)

    # ---- fc2 ----------------------------------------------------------------
    o_ref[...] = (jnp.dot(fc1, f2_ref[...], preferred_element_type=jnp.float32)
                  + f2b_ref[...])


# ------------------------------ public wrapper -------------------------------- #

def convnet_forward(x_nchw, params):
    n = x_nchw.shape[0]
    if x_nchw.shape[1:] != (_C0, _H0, _W0):
        raise ValueError(f"expected (N, 3, 32, 32) input, got {x_nchw.shape}")

    tb = n if n <= 8 else 8                 # batch tile (multiple of 8 when gridded)
    n_pad = ((n + tb - 1) // tb) * tb
    if n_pad != n:
        x_nchw = jnp.pad(x_nchw, ((0, n_pad - n), (0, 0), (0, 0), (0, 0)))

    # rows = (sample, image row), lanes = (column, channel): lane-dense layout
    x2d = jnp.transpose(x_nchw, (0, 2, 3, 1)).reshape(n_pad * _H0, _LANES_IN)

    t1 = _conv_toeplitz(params["conv1_w"], _W0, _W1, _C0)          # (3, 96, 120)
    b1 = jnp.tile(params["conv1_b"], _W1).reshape(1, _LANES_C1)    # (1, 120)
    t2 = _conv_toeplitz(params["conv2_w"], _P1W, _W2, 2 * _C1)     # (3, 120, 104)
    t2 = t2[:, :_LANES_P1, :]                                      # (3, 116, 104)
    b2 = jnp.tile(params["conv2_b"], _W2).reshape(1, _LANES_C2)    # (1, 104)
    f1 = _fc1_lane_weights(params["fc1_w"])                        # (6, 96, 32)
    f1b = params["fc1_b"].reshape(1, _FC1)
    f2 = params["fc2_w"].T                                         # (32, 10)
    f2b = params["fc2_b"].reshape(1, _NCLS)

    kernel = functools.partial(_convnet_fused_kernel, tb=tb)
    out = pl.pallas_call(
        kernel,
        out_shape=jax.ShapeDtypeStruct((n_pad, _NCLS), jnp.float32),
        grid_spec=pltpu.PrefetchScalarGridSpec(
            num_scalar_prefetch=0,
            grid=(n_pad // tb,),
            in_specs=[
                pl.BlockSpec((tb * _H0, _LANES_IN), lambda i: (i, 0)),
                pl.BlockSpec((_K, _LANES_IN, _LANES_C1), lambda i: (0, 0, 0)),
                pl.BlockSpec((1, _LANES_C1), lambda i: (0, 0)),
                pl.BlockSpec((_K, _LANES_P1, _LANES_C2), lambda i: (0, 0, 0)),
                pl.BlockSpec((1, _LANES_C2), lambda i: (0, 0)),
                pl.BlockSpec((_P2H, _LANES_P2, _FC1), lambda i: (0, 0, 0)),
                pl.BlockSpec((1, _FC1), lambda i: (0, 0)),
                pl.BlockSpec((_FC1, _NCLS), lambda i: (0, 0)),
                pl.BlockSpec((1, _NCLS), lambda i: (0, 0)),
            ],
            out_specs=pl.BlockSpec((tb, _NCLS), lambda i: (i, 0)),
        ),
        compiler_params=pltpu.CompilerParams(
            dimension_semantics=("parallel",)),
    )(x2d, t1, b1, t2, b2, f1, f1b, f2, f2b)
    return out[:n]


# ------------------------- parameters & pure-JAX reference -------------------- #

def init_params(key):
    ks = jax.random.split(key, 8)
    return {
        "conv1_w": jax.random.normal(ks[0], (4, 3, 3, 3), jnp.float32) * 0.1,
        "conv1_b": jax.random.normal(ks[1], (4,), jnp.float32) * 0.1,
        "conv2_w": jax.random.normal(ks[2], (8, 4, 3, 3), jnp.float32) * 0.1,
        "conv2_b": jax.random.normal(ks[3], (8,), jnp.float32) * 0.1,
        "fc1_w": jax.random.normal(ks[4], (32, 8 * 6 * 6), jnp.float32) * 0.05,
        "fc1_b": jax.random.normal(ks[5], (32,), jnp.float32) * 0.05,
        "fc2_w": jax.random.normal(ks[6], (10, 32), jnp.float32) * 0.05,
        "fc2_b": jax.random.normal(ks[7], (10,), jnp.float32) * 0.05,
    }


def convnet_reference(x_nchw, p):
    dn = ("NCHW", "OIHW", "NCHW")
    y = jax.lax.conv_general_dilated(x_nchw, p["conv1_w"], (1, 1), "VALID",
                                     dimension_numbers=dn)
    y = jnp.maximum(y + p["conv1_b"][None, :, None, None], 0.0)
    y = jax.lax.reduce_window(y, -jnp.inf, jax.lax.max,
                              (1, 1, 2, 2), (1, 1, 2, 2), "VALID")
    y = jax.lax.conv_general_dilated(y, p["conv2_w"], (1, 1), "VALID",
                                     dimension_numbers=dn)
    y = jnp.maximum(y + p["conv2_b"][None, :, None, None], 0.0)
    y = jax.lax.reduce_window(y, -jnp.inf, jax.lax.max,
                              (1, 1, 2, 2), (1, 1, 2, 2), "VALID")
    y = y.reshape(y.shape[0], -1)
    y = jnp.maximum(y @ p["fc1_w"].T + p["fc1_b"], 0.0)
    y = y @ p["fc2_w"].T + p["fc2_b"]
    return y


if __name__ == "__main__":
    key = jax.random.PRNGKey(0)
    kx, kp = jax.random.split(key)
    # forward implies 32x32 RGB input (fc1 expects 8*6*6 features)
    x = jax.random.normal(kx, (2, 3, 32, 32), jnp.float32)
    params = init_params(kp)

    y = jax.block_until_ready(jax.jit(convnet_forward)(x, params))
    assert y.shape == (2, 10) and y.dtype == jnp.float32

    y_ref = jax.block_until_ready(convnet_reference(x, params))
    # tolerance allows for MXU matmul rounding differences vs. the XLA reference
    assert bool(jnp.allclose(y, y_ref, rtol=2e-2, atol=2e-2)), "mismatch vs reference"
    print("KERNEL_OK")
</pallas_src>

<mosaic_0001>
module attributes {stable_mosaic.version = 11 : i64} {
  func.func @_convnet_fused_kernel(%arg0: i32, %arg1: memref<64x96xf32, #tpu.memory_space<vmem>>, %arg2: memref<3x96x120xf32, #tpu.memory_space<vmem>>, %arg3: memref<1x120xf32, #tpu.memory_space<vmem>>, %arg4: memref<3x116x104xf32, #tpu.memory_space<vmem>>, %arg5: memref<1x104xf32, #tpu.memory_space<vmem>>, %arg6: memref<6x96x32xf32, #tpu.memory_space<vmem>>, %arg7: memref<1x32xf32, #tpu.memory_space<vmem>>, %arg8: memref<32x10xf32, #tpu.memory_space<vmem>>, %arg9: memref<1x10xf32, #tpu.memory_space<vmem>>, %arg10: memref<2x10xf32, #tpu.memory_space<vmem>>) attributes {dimension_semantics = [#tpu.dimension_semantics<parallel>], iteration_bounds = array<i64: 1>, scalar_prefetch = 0 : i64, scratch_operands = 0 : i64, tpu.core_type = #tpu.core_type<tc>, window_params = [{transform_indices = @transform_0, window_bounds = array<i64: 64, 96>}, {pipeline_mode = #tpu.pipeline_mode<synchronous>, transform_indices = @transform_1, window_bounds = array<i64: 3, 96, 120>}, {pipeline_mode = #tpu.pipeline_mode<synchronous>, transform_indices = @transform_2, window_bounds = array<i64: 1, 120>}, {pipeline_mode = #tpu.pipeline_mode<synchronous>, transform_indices = @transform_3, window_bounds = array<i64: 3, 116, 104>}, {pipeline_mode = #tpu.pipeline_mode<synchronous>, transform_indices = @transform_4, window_bounds = array<i64: 1, 104>}, {pipeline_mode = #tpu.pipeline_mode<synchronous>, transform_indices = @transform_5, window_bounds = array<i64: 6, 96, 32>}, {pipeline_mode = #tpu.pipeline_mode<synchronous>, transform_indices = @transform_6, window_bounds = array<i64: 1, 32>}, {pipeline_mode = #tpu.pipeline_mode<synchronous>, transform_indices = @transform_7, window_bounds = array<i64: 32, 10>}, {pipeline_mode = #tpu.pipeline_mode<synchronous>, transform_indices = @transform_8, window_bounds = array<i64: 1, 10>}, {transform_indices = @transform_9, window_bounds = array<i64: 2, 10>}]} {
    %c0 = arith.constant 0 : index
    %c0_0 = arith.constant 0 : index
    %0 = vector.load %arg1[%c0, %c0_0] : memref<64x96xf32, #tpu.memory_space<vmem>>, vector<64x96xf32>
    %1 = vector.extract_strided_slice %0 {offsets = [0, 0], sizes = [62, 96], strides = [1, 1]} : vector<64x96xf32> to vector<62x96xf32>
    %c0_1 = arith.constant 0 : index
    %c0_2 = arith.constant 0 : index
    %c0_3 = arith.constant 0 : index
    %2 = vector.load %arg2[%c0_1, %c0_2, %c0_3] : memref<3x96x120xf32, #tpu.memory_space<vmem>>, vector<1x96x120xf32>
    %3 = vector.shape_cast %2 : vector<1x96x120xf32> to vector<96x120xf32>
    %cst = arith.constant dense<0.000000e+00> : vector<62x120xf32>
    %4 = tpu.matmul %1, %3, %cst {dimension_numbers = #tpu.dot_dimension_numbers<[1], [0], [0], [1], [0, 0, 1, 1], [], []>} : vector<62x96xf32>, vector<96x120xf32>, vector<62x120xf32> -> vector<62x120xf32>
    %5 = vector.extract_strided_slice %0 {offsets = [1, 0], sizes = [62, 96], strides = [1, 1]} : vector<64x96xf32> to vector<62x96xf32>
    %c1 = arith.constant 1 : index
    %c0_4 = arith.constant 0 : index
    %c0_5 = arith.constant 0 : index
    %6 = vector.load %arg2[%c1, %c0_4, %c0_5] : memref<3x96x120xf32, #tpu.memory_space<vmem>>, vector<1x96x120xf32>
    %7 = vector.shape_cast %6 : vector<1x96x120xf32> to vector<96x120xf32>
    %cst_6 = arith.constant dense<0.000000e+00> : vector<62x120xf32>
    %8 = tpu.matmul %5, %7, %cst_6 {dimension_numbers = #tpu.dot_dimension_numbers<[1], [0], [0], [1], [0, 0, 1, 1], [], []>} : vector<62x96xf32>, vector<96x120xf32>, vector<62x120xf32> -> vector<62x120xf32>
    %9 = arith.addf %4, %8 : vector<62x120xf32>
    %10 = vector.extract_strided_slice %0 {offsets = [2, 0], sizes = [62, 96], strides = [1, 1]} : vector<64x96xf32> to vector<62x96xf32>
    %c2 = arith.constant 2 : index
    %c0_7 = arith.constant 0 : index
    %c0_8 = arith.constant 0 : index
    %11 = vector.load %arg2[%c2, %c0_7, %c0_8] : memref<3x96x120xf32, #tpu.memory_space<vmem>>, vector<1x96x120xf32>
    %12 = vector.shape_cast %11 : vector<1x96x120xf32> to vector<96x120xf32>
    %cst_9 = arith.constant dense<0.000000e+00> : vector<62x120xf32>
    %13 = tpu.matmul %10, %12, %cst_9 {dimension_numbers = #tpu.dot_dimension_numbers<[1], [0], [0], [1], [0, 0, 1, 1], [], []>} : vector<62x96xf32>, vector<96x120xf32>, vector<62x120xf32> -> vector<62x120xf32>
    %14 = arith.addf %9, %13 : vector<62x120xf32>
    %c0_10 = arith.constant 0 : index
    %c0_11 = arith.constant 0 : index
    %15 = vector.load %arg3[%c0_10, %c0_11] : memref<1x120xf32, #tpu.memory_space<vmem>>, vector<1x120xf32>
    %16 = vector.broadcast %15 : vector<1x120xf32> to vector<62x120xf32>
    %17 = arith.addf %14, %16 : vector<62x120xf32>
    %cst_12 = arith.constant 0.000000e+00 : f32
    %18 = vector.broadcast %cst_12 : f32 to vector<62x120xf32>
    %19 = arith.maximumf %17, %18 : vector<62x120xf32>
    %20 = tpu.iota {dimensions = array<i32: 0>} : vector<32x62xi32>
    %21 = tpu.iota {dimensions = array<i32: 1>} : vector<32x62xi32>
    %c2_i32 = arith.constant 2 : i32
    %22 = vector.broadcast %c2_i32 : i32 to vector<32x62xi32>
    %23 = arith.muli %22, %20 : vector<32x62xi32>
    %c0_i32 = arith.constant 0 : i32
    %24 = vector.broadcast %c0_i32 : i32 to vector<32x62xi32>
    %25 = arith.addi %23, %24 : vector<32x62xi32>
    %26 = arith.cmpi eq, %21, %25 : vector<32x62xi32>
    %cst_13 = arith.constant 1.000000e+00 : f32
    %cst_14 = arith.constant 0.000000e+00 : f32
    %27 = vector.broadcast %cst_13 : f32 to vector<32x62xf32>
    %28 = vector.broadcast %cst_14 : f32 to vector<32x62xf32>
    %29 = arith.select %26, %27, %28 : vector<32x62xi1>, vector<32x62xf32>
    %cst_15 = arith.constant dense<0.000000e+00> : vector<32x120xf32>
    %30 = tpu.matmul %29, %19, %cst_15 {dimension_numbers = #tpu.dot_dimension_numbers<[1], [0], [0], [1], [0, 0, 1, 1], [], []>} : vector<32x62xf32>, vector<62x120xf32>, vector<32x120xf32> -> vector<32x120xf32>
    %31 = tpu.iota {dimensions = array<i32: 0>} : vector<32x62xi32>
    %32 = tpu.iota {dimensions = array<i32: 1>} : vector<32x62xi32>
    %c2_i32_16 = arith.constant 2 : i32
    %33 = vector.broadcast %c2_i32_16 : i32 to vector<32x62xi32>
    %34 = arith.muli %33, %31 : vector<32x62xi32>
    %c1_i32 = arith.constant 1 : i32
    %35 = vector.broadcast %c1_i32 : i32 to vector<32x62xi32>
    %36 = arith.addi %34, %35 : vector<32x62xi32>
    %37 = arith.cmpi eq, %32, %36 : vector<32x62xi32>
    %cst_17 = arith.constant 1.000000e+00 : f32
    %cst_18 = arith.constant 0.000000e+00 : f32
    %38 = vector.broadcast %cst_17 : f32 to vector<32x62xf32>
    %39 = vector.broadcast %cst_18 : f32 to vector<32x62xf32>
    %40 = arith.select %37, %38, %39 : vector<32x62xi1>, vector<32x62xf32>
    %cst_19 = arith.constant dense<0.000000e+00> : vector<32x120xf32>
    %41 = tpu.matmul %40, %19, %cst_19 {dimension_numbers = #tpu.dot_dimension_numbers<[1], [0], [0], [1], [0, 0, 1, 1], [], []>} : vector<32x62xf32>, vector<62x120xf32>, vector<32x120xf32> -> vector<32x120xf32>
    %42 = arith.maximumf %30, %41 : vector<32x120xf32>
    %43 = vector.extract_strided_slice %42 {offsets = [0, 0], sizes = [32, 116], strides = [1, 1]} : vector<32x120xf32> to vector<32x116xf32>
    %44 = vector.extract_strided_slice %42 {offsets = [0, 4], sizes = [32, 116], strides = [1, 1]} : vector<32x120xf32> to vector<32x116xf32>
    %45 = arith.maximumf %43, %44 : vector<32x116xf32>
    %46 = vector.extract_strided_slice %45 {offsets = [0, 0], sizes = [30, 116], strides = [1, 1]} : vector<32x116xf32> to vector<30x116xf32>
    %c0_20 = arith.constant 0 : index
    %c0_21 = arith.constant 0 : index
    %c0_22 = arith.constant 0 : index
    %47 = vector.load %arg4[%c0_20, %c0_21, %c0_22] : memref<3x116x104xf32, #tpu.memory_space<vmem>>, vector<1x116x104xf32>
    %48 = vector.shape_cast %47 : vector<1x116x104xf32> to vector<116x104xf32>
    %cst_23 = arith.constant dense<0.000000e+00> : vector<30x104xf32>
    %49 = tpu.matmul %46, %48, %cst_23 {dimension_numbers = #tpu.dot_dimension_numbers<[1], [0], [0], [1], [0, 0, 1, 1], [], []>} : vector<30x116xf32>, vector<116x104xf32>, vector<30x104xf32> -> vector<30x104xf32>
    %50 = vector.extract_strided_slice %45 {offsets = [1, 0], sizes = [30, 116], strides = [1, 1]} : vector<32x116xf32> to vector<30x116xf32>
    %c1_24 = arith.constant 1 : index
    %c0_25 = arith.constant 0 : index
    %c0_26 = arith.constant 0 : index
    %51 = vector.load %arg4[%c1_24, %c0_25, %c0_26] : memref<3x116x104xf32, #tpu.memory_space<vmem>>, vector<1x116x104xf32>
    %52 = vector.shape_cast %51 : vector<1x116x104xf32> to vector<116x104xf32>
    %cst_27 = arith.constant dense<0.000000e+00> : vector<30x104xf32>
    %53 = tpu.matmul %50, %52, %cst_27 {dimension_numbers = #tpu.dot_dimension_numbers<[1], [0], [0], [1], [0, 0, 1, 1], [], []>} : vector<30x116xf32>, vector<116x104xf32>, vector<30x104xf32> -> vector<30x104xf32>
    %54 = arith.addf %49, %53 : vector<30x104xf32>
    %55 = vector.extract_strided_slice %45 {offsets = [2, 0], sizes = [30, 116], strides = [1, 1]} : vector<32x116xf32> to vector<30x116xf32>
    %c2_28 = arith.constant 2 : index
    %c0_29 = arith.constant 0 : index
    %c0_30 = arith.constant 0 : index
    %56 = vector.load %arg4[%c2_28, %c0_29, %c0_30] : memref<3x116x104xf32, #tpu.memory_space<vmem>>, vector<1x116x104xf32>
    %57 = vector.shape_cast %56 : vector<1x116x104xf32> to vector<116x104xf32>
    %cst_31 = arith.constant dense<0.000000e+00> : vector<30x104xf32>
    %58 = tpu.matmul %55, %57, %cst_31 {dimension_numbers = #tpu.dot_dimension_numbers<[1], [0], [0], [1], [0, 0, 1, 1], [], []>} : vector<30x116xf32>, vector<116x104xf32>, vector<30x104xf32> -> vector<30x104xf32>
    %59 = arith.addf %54, %58 : vector<30x104xf32>
    %c0_32 = arith.constant 0 : index
    %c0_33 = arith.constant 0 : index
    %60 = vector.load %arg5[%c0_32, %c0_33] : memref<1x104xf32, #tpu.memory_space<vmem>>, vector<1x104xf32>
    %61 = vector.broadcast %60 : vector<1x104xf32> to vector<30x104xf32>
    %62 = arith.addf %59, %61 : vector<30x104xf32>
    %cst_34 = arith.constant 0.000000e+00 : f32
    %63 = vector.broadcast %cst_34 : f32 to vector<30x104xf32>
    %64 = arith.maximumf %62, %63 : vector<30x104xf32>
    %cst_35 = arith.constant 0.000000e+00 : f32
    %65 = vector.broadcast %cst_35 : f32 to vector<2x32xf32>
    %66 = tpu.iota {dimensions = array<i32: 0>} : vector<2x30xi32>
    %67 = tpu.iota {dimensions = array<i32: 1>} : vector<2x30xi32>
    %c16_i32 = arith.constant 16 : i32
    %68 = vector.broadcast %c16_i32 : i32 to vector<2x30xi32>
    %69 = arith.muli %68, %66 : vector<2x30xi32>
    %c0_i32_36 = arith.constant 0 : i32
    %70 = vector.broadcast %c0_i32_36 : i32 to vector<2x30xi32>
    %71 = arith.addi %69, %70 : vector<2x30xi32>
    %72 = arith.cmpi eq, %67, %71 : vector<2x30xi32>
    %cst_37 = arith.constant 1.000000e+00 : f32
    %cst_38 = arith.constant 0.000000e+00 : f32
    %73 = vector.broadcast %cst_37 : f32 to vector<2x30xf32>
    %74 = vector.broadcast %cst_38 : f32 to vector<2x30xf32>
    %75 = arith.select %72, %73, %74 : vector<2x30xi1>, vector<2x30xf32>
    %cst_39 = arith.constant dense<0.000000e+00> : vector<2x104xf32>
    %76 = tpu.matmul %75, %64, %cst_39 {dimension_numbers = #tpu.dot_dimension_numbers<[1], [0], [0], [1], [0, 0, 1, 1], [], []>} : vector<2x30xf32>, vector<30x104xf32>, vector<2x104xf32> -> vector<2x104xf32>
    %77 = tpu.iota {dimensions = array<i32: 0>} : vector<2x30xi32>
    %78 = tpu.iota {dimensions = array<i32: 1>} : vector<2x30xi32>
    %c16_i32_40 = arith.constant 16 : i32
    %79 = vector.broadcast %c16_i32_40 : i32 to vector<2x30xi32>
    %80 = arith.muli %79, %77 : vector<2x30xi32>
    %c1_i32_41 = arith.constant 1 : i32
    %81 = vector.broadcast %c1_i32_41 : i32 to vector<2x30xi32>
    %82 = arith.addi %80, %81 : vector<2x30xi32>
    %83 = arith.cmpi eq, %78, %82 : vector<2x30xi32>
    %cst_42 = arith.constant 1.000000e+00 : f32
    %cst_43 = arith.constant 0.000000e+00 : f32
    %84 = vector.broadcast %cst_42 : f32 to vector<2x30xf32>
    %85 = vector.broadcast %cst_43 : f32 to vector<2x30xf32>
    %86 = arith.select %83, %84, %85 : vector<2x30xi1>, vector<2x30xf32>
    %cst_44 = arith.constant dense<0.000000e+00> : vector<2x104xf32>
    %87 = tpu.matmul %86, %64, %cst_44 {dimension_numbers = #tpu.dot_dimension_numbers<[1], [0], [0], [1], [0, 0, 1, 1], [], []>} : vector<2x30xf32>, vector<30x104xf32>, vector<2x104xf32> -> vector<2x104xf32>
    %88 = arith.maximumf %76, %87 : vector<2x104xf32>
    %89 = vector.extract_strided_slice %88 {offsets = [0, 0], sizes = [2, 96], strides = [1, 1]} : vector<2x104xf32> to vector<2x96xf32>
    %90 = vector.extract_strided_slice %88 {offsets = [0, 8], sizes = [2, 96], strides = [1, 1]} : vector<2x104xf32> to vector<2x96xf32>
    %91 = arith.maximumf %89, %90 : vector<2x96xf32>
    %c0_45 = arith.constant 0 : index
    %c0_46 = arith.constant 0 : index
    %c0_47 = arith.constant 0 : index
    %92 = vector.load %arg6[%c0_45, %c0_46, %c0_47] : memref<6x96x32xf32, #tpu.memory_space<vmem>>, vector<1x96x32xf32>
    %93 = vector.shape_cast %92 : vector<1x96x32xf32> to vector<96x32xf32>
    %cst_48 = arith.constant dense<0.000000e+00> : vector<2x32xf32>
    %94 = tpu.matmul %91, %93, %cst_48 {dimension_numbers = #tpu.dot_dimension_numbers<[1], [0], [0], [1], [0, 0, 1, 1], [], []>} : vector<2x96xf32>, vector<96x32xf32>, vector<2x32xf32> -> vector<2x32xf32>
    %95 = arith.addf %65, %94 : vector<2x32xf32>
    %96 = tpu.iota {dimensions = array<i32: 0>} : vector<2x30xi32>
    %97 = tpu.iota {dimensions = array<i32: 1>} : vector<2x30xi32>
    %c16_i32_49 = arith.constant 16 : i32
    %98 = vector.broadcast %c16_i32_49 : i32 to vector<2x30xi32>
    %99 = arith.muli %98, %96 : vector<2x30xi32>
    %c2_i32_50 = arith.constant 2 : i32
    %100 = vector.broadcast %c2_i32_50 : i32 to vector<2x30xi32>
    %101 = arith.addi %99, %100 : vector<2x30xi32>
    %102 = arith.cmpi eq, %97, %101 : vector<2x30xi32>
    %cst_51 = arith.constant 1.000000e+00 : f32
    %cst_52 = arith.constant 0.000000e+00 : f32
    %103 = vector.broadcast %cst_51 : f32 to vector<2x30xf32>
    %104 = vector.broadcast %cst_52 : f32 to vector<2x30xf32>
    %105 = arith.select %102, %103, %104 : vector<2x30xi1>, vector<2x30xf32>
    %cst_53 = arith.constant dense<0.000000e+00> : vector<2x104xf32>
    %106 = tpu.matmul %105, %64, %cst_53 {dimension_numbers = #tpu.dot_dimension_numbers<[1], [0], [0], [1], [0, 0, 1, 1], [], []>} : vector<2x30xf32>, vector<30x104xf32>, vector<2x104xf32> -> vector<2x104xf32>
    %107 = tpu.iota {dimensions = array<i32: 0>} : vector<2x30xi32>
    %108 = tpu.iota {dimensions = array<i32: 1>} : vector<2x30xi32>
    %c16_i32_54 = arith.constant 16 : i32
    %109 = vector.broadcast %c16_i32_54 : i32 to vector<2x30xi32>
    %110 = arith.muli %109, %107 : vector<2x30xi32>
    %c3_i32 = arith.constant 3 : i32
    %111 = vector.broadcast %c3_i32 : i32 to vector<2x30xi32>
    %112 = arith.addi %110, %111 : vector<2x30xi32>
    %113 = arith.cmpi eq, %108, %112 : vector<2x30xi32>
    %cst_55 = arith.constant 1.000000e+00 : f32
    %cst_56 = arith.constant 0.000000e+00 : f32
    %114 = vector.broadcast %cst_55 : f32 to vector<2x30xf32>
    %115 = vector.broadcast %cst_56 : f32 to vector<2x30xf32>
    %116 = arith.select %113, %114, %115 : vector<2x30xi1>, vector<2x30xf32>
    %cst_57 = arith.constant dense<0.000000e+00> : vector<2x104xf32>
    %117 = tpu.matmul %116, %64, %cst_57 {dimension_numbers = #tpu.dot_dimension_numbers<[1], [0], [0], [1], [0, 0, 1, 1], [], []>} : vector<2x30xf32>, vector<30x104xf32>, vector<2x104xf32> -> vector<2x104xf32>
    %118 = arith.maximumf %106, %117 : vector<2x104xf32>
    %119 = vector.extract_strided_slice %118 {offsets = [0, 0], sizes = [2, 96], strides = [1, 1]} : vector<2x104xf32> to vector<2x96xf32>
    %120 = vector.extract_strided_slice %118 {offsets = [0, 8], sizes = [2, 96], strides = [1, 1]} : vector<2x104xf32> to vector<2x96xf32>
    %121 = arith.maximumf %119, %120 : vector<2x96xf32>
    %c1_58 = arith.constant 1 : index
    %c0_59 = arith.constant 0 : index
    %c0_60 = arith.constant 0 : index
    %122 = vector.load %arg6[%c1_58, %c0_59, %c0_60] : memref<6x96x32xf32, #tpu.memory_space<vmem>>, vector<1x96x32xf32>
    %123 = vector.shape_cast %122 : vector<1x96x32xf32> to vector<96x32xf32>
    %cst_61 = arith.constant dense<0.000000e+00> : vector<2x32xf32>
    %124 = tpu.matmul %121, %123, %cst_61 {dimension_numbers = #tpu.dot_dimension_numbers<[1], [0], [0], [1], [0, 0, 1, 1], [], []>} : vector<2x96xf32>, vector<96x32xf32>, vector<2x32xf32> -> vector<2x32xf32>
    %125 = arith.addf %95, %124 : vector<2x32xf32>
    %126 = tpu.iota {dimensions = array<i32: 0>} : vector<2x30xi32>
    %127 = tpu.iota {dimensions = array<i32: 1>} : vector<2x30xi32>
    %c16_i32_62 = arith.constant 16 : i32
    %128 = vector.broadcast %c16_i32_62 : i32 to vector<2x30xi32>
    %129 = arith.muli %128, %126 : vector<2x30xi32>
    %c4_i32 = arith.constant 4 : i32
    %130 = vector.broadcast %c4_i32 : i32 to vector<2x30xi32>
    %131 = arith.addi %129, %130 : vector<2x30xi32>
    %132 = arith.cmpi eq, %127, %131 : vector<2x30xi32>
    %cst_63 = arith.constant 1.000000e+00 : f32
    %cst_64 = arith.constant 0.000000e+00 : f32
    %133 = vector.broadcast %cst_63 : f32 to vector<2x30xf32>
    %134 = vector.broadcast %cst_64 : f32 to vector<2x30xf32>
    %135 = arith.select %132, %133, %134 : vector<2x30xi1>, vector<2x30xf32>
    %cst_65 = arith.constant dense<0.000000e+00> : vector<2x104xf32>
    %136 = tpu.matmul %135, %64, %cst_65 {dimension_numbers = #tpu.dot_dimension_numbers<[1], [0], [0], [1], [0, 0, 1, 1], [], []>} : vector<2x30xf32>, vector<30x104xf32>, vector<2x104xf32> -> vector<2x104xf32>
    %137 = tpu.iota {dimensions = array<i32: 0>} : vector<2x30xi32>
    %138 = tpu.iota {dimensions = array<i32: 1>} : vector<2x30xi32>
    %c16_i32_66 = arith.constant 16 : i32
    %139 = vector.broadcast %c16_i32_66 : i32 to vector<2x30xi32>
    %140 = arith.muli %139, %137 : vector<2x30xi32>
    %c5_i32 = arith.constant 5 : i32
    %141 = vector.broadcast %c5_i32 : i32 to vector<2x30xi32>
    %142 = arith.addi %140, %141 : vector<2x30xi32>
    %143 = arith.cmpi eq, %138, %142 : vector<2x30xi32>
    %cst_67 = arith.constant 1.000000e+00 : f32
    %cst_68 = arith.constant 0.000000e+00 : f32
    %144 = vector.broadcast %cst_67 : f32 to vector<2x30xf32>
    %145 = vector.broadcast %cst_68 : f32 to vector<2x30xf32>
    %146 = arith.select %143, %144, %145 : vector<2x30xi1>, vector<2x30xf32>
    %cst_69 = arith.constant dense<0.000000e+00> : vector<2x104xf32>
    %147 = tpu.matmul %146, %64, %cst_69 {dimension_numbers = #tpu.dot_dimension_numbers<[1], [0], [0], [1], [0, 0, 1, 1], [], []>} : vector<2x30xf32>, vector<30x104xf32>, vector<2x104xf32> -> vector<2x104xf32>
    %148 = arith.maximumf %136, %147 : vector<2x104xf32>
    %149 = vector.extract_strided_slice %148 {offsets = [0, 0], sizes = [2, 96], strides = [1, 1]} : vector<2x104xf32> to vector<2x96xf32>
    %150 = vector.extract_strided_slice %148 {offsets = [0, 8], sizes = [2, 96], strides = [1, 1]} : vector<2x104xf32> to vector<2x96xf32>
    %151 = arith.maximumf %149, %150 : vector<2x96xf32>
    %c2_70 = arith.constant 2 : index
    %c0_71 = arith.constant 0 : index
    %c0_72 = arith.constant 0 : index
    %152 = vector.load %arg6[%c2_70, %c0_71, %c0_72] : memref<6x96x32xf32, #tpu.memory_space<vmem>>, vector<1x96x32xf32>
    %153 = vector.shape_cast %152 : vector<1x96x32xf32> to vector<96x32xf32>
    %cst_73 = arith.constant dense<0.000000e+00> : vector<2x32xf32>
    %154 = tpu.matmul %151, %153, %cst_73 {dimension_numbers = #tpu.dot_dimension_numbers<[1], [0], [0], [1], [0, 0, 1, 1], [], []>} : vector<2x96xf32>, vector<96x32xf32>, vector<2x32xf32> -> vector<2x32xf32>
    %155 = arith.addf %125, %154 : vector<2x32xf32>
    %156 = tpu.iota {dimensions = array<i32: 0>} : vector<2x30xi32>
    %157 = tpu.iota {dimensions = array<i32: 1>} : vector<2x30xi32>
    %c16_i32_74 = arith.constant 16 : i32
    %158 = vector.broadcast %c16_i32_74 : i32 to vector<2x30xi32>
    %159 = arith.muli %158, %156 : vector<2x30xi32>
    %c6_i32 = arith.constant 6 : i32
    %160 = vector.broadcast %c6_i32 : i32 to vector<2x30xi32>
    %161 = arith.addi %159, %160 : vector<2x30xi32>
    %162 = arith.cmpi eq, %157, %161 : vector<2x30xi32>
    %cst_75 = arith.constant 1.000000e+00 : f32
    %cst_76 = arith.constant 0.000000e+00 : f32
    %163 = vector.broadcast %cst_75 : f32 to vector<2x30xf32>
    %164 = vector.broadcast %cst_76 : f32 to vector<2x30xf32>
    %165 = arith.select %162, %163, %164 : vector<2x30xi1>, vector<2x30xf32>
    %cst_77 = arith.constant dense<0.000000e+00> : vector<2x104xf32>
    %166 = tpu.matmul %165, %64, %cst_77 {dimension_numbers = #tpu.dot_dimension_numbers<[1], [0], [0], [1], [0, 0, 1, 1], [], []>} : vector<2x30xf32>, vector<30x104xf32>, vector<2x104xf32> -> vector<2x104xf32>
    %167 = tpu.iota {dimensions = array<i32: 0>} : vector<2x30xi32>
    %168 = tpu.iota {dimensions = array<i32: 1>} : vector<2x30xi32>
    %c16_i32_78 = arith.constant 16 : i32
    %169 = vector.broadcast %c16_i32_78 : i32 to vector<2x30xi32>
    %170 = arith.muli %169, %167 : vector<2x30xi32>
    %c7_i32 = arith.constant 7 : i32
    %171 = vector.broadcast %c7_i32 : i32 to vector<2x30xi32>
    %172 = arith.addi %170, %171 : vector<2x30xi32>
    %173 = arith.cmpi eq, %168, %172 : vector<2x30xi32>
    %cst_79 = arith.constant 1.000000e+00 : f32
    %cst_80 = arith.constant 0.000000e+00 : f32
    %174 = vector.broadcast %cst_79 : f32 to vector<2x30xf32>
    %175 = vector.broadcast %cst_80 : f32 to vector<2x30xf32>
    %176 = arith.select %173, %174, %175 : vector<2x30xi1>, vector<2x30xf32>
    %cst_81 = arith.constant dense<0.000000e+00> : vector<2x104xf32>
    %177 = tpu.matmul %176, %64, %cst_81 {dimension_numbers = #tpu.dot_dimension_numbers<[1], [0], [0], [1], [0, 0, 1, 1], [], []>} : vector<2x30xf32>, vector<30x104xf32>, vector<2x104xf32> -> vector<2x104xf32>
    %178 = arith.maximumf %166, %177 : vector<2x104xf32>
    %179 = vector.extract_strided_slice %178 {offsets = [0, 0], sizes = [2, 96], strides = [1, 1]} : vector<2x104xf32> to vector<2x96xf32>
    %180 = vector.extract_strided_slice %178 {offsets = [0, 8], sizes = [2, 96], strides = [1, 1]} : vector<2x104xf32> to vector<2x96xf32>
    %181 = arith.maximumf %179, %180 : vector<2x96xf32>
    %c3 = arith.constant 3 : index
    %c0_82 = arith.constant 0 : index
    %c0_83 = arith.constant 0 : index
    %182 = vector.load %arg6[%c3, %c0_82, %c0_83] : memref<6x96x32xf32, #tpu.memory_space<vmem>>, vector<1x96x32xf32>
    %183 = vector.shape_cast %182 : vector<1x96x32xf32> to vector<96x32xf32>
    %cst_84 = arith.constant dense<0.000000e+00> : vector<2x32xf32>
    %184 = tpu.matmul %181, %183, %cst_84 {dimension_numbers = #tpu.dot_dimension_numbers<[1], [0], [0], [1], [0, 0, 1, 1], [], []>} : vector<2x96xf32>, vector<96x32xf32>, vector<2x32xf32> -> vector<2x32xf32>
    %185 = arith.addf %155, %184 : vector<2x32xf32>
    %186 = tpu.iota {dimensions = array<i32: 0>} : vector<2x30xi32>
    %187 = tpu.iota {dimensions = array<i32: 1>} : vector<2x30xi32>
    %c16_i32_85 = arith.constant 16 : i32
    %188 = vector.broadcast %c16_i32_85 : i32 to vector<2x30xi32>
    %189 = arith.muli %188, %186 : vector<2x30xi32>
    %c8_i32 = arith.constant 8 : i32
    %190 = vector.broadcast %c8_i32 : i32 to vector<2x30xi32>
    %191 = arith.addi %189, %190 : vector<2x30xi32>
    %192 = arith.cmpi eq, %187, %191 : vector<2x30xi32>
    %cst_86 = arith.constant 1.000000e+00 : f32
    %cst_87 = arith.constant 0.000000e+00 : f32
    %193 = vector.broadcast %cst_86 : f32 to vector<2x30xf32>
    %194 = vector.broadcast %cst_87 : f32 to vector<2x30xf32>
    %195 = arith.select %192, %193, %194 : vector<2x30xi1>, vector<2x30xf32>
    %cst_88 = arith.constant dense<0.000000e+00> : vector<2x104xf32>
    %196 = tpu.matmul %195, %64, %cst_88 {dimension_numbers = #tpu.dot_dimension_numbers<[1], [0], [0], [1], [0, 0, 1, 1], [], []>} : vector<2x30xf32>, vector<30x104xf32>, vector<2x104xf32> -> vector<2x104xf32>
    %197 = tpu.iota {dimensions = array<i32: 0>} : vector<2x30xi32>
    %198 = tpu.iota {dimensions = array<i32: 1>} : vector<2x30xi32>
    %c16_i32_89 = arith.constant 16 : i32
    %199 = vector.broadcast %c16_i32_89 : i32 to vector<2x30xi32>
    %200 = arith.muli %199, %197 : vector<2x30xi32>
    %c9_i32 = arith.constant 9 : i32
    %201 = vector.broadcast %c9_i32 : i32 to vector<2x30xi32>
    %202 = arith.addi %200, %201 : vector<2x30xi32>
    %203 = arith.cmpi eq, %198, %202 : vector<2x30xi32>
    %cst_90 = arith.constant 1.000000e+00 : f32
    %cst_91 = arith.constant 0.000000e+00 : f32
    %204 = vector.broadcast %cst_90 : f32 to vector<2x30xf32>
    %205 = vector.broadcast %cst_91 : f32 to vector<2x30xf32>
    %206 = arith.select %203, %204, %205 : vector<2x30xi1>, vector<2x30xf32>
    %cst_92 = arith.constant dense<0.000000e+00> : vector<2x104xf32>
    %207 = tpu.matmul %206, %64, %cst_92 {dimension_numbers = #tpu.dot_dimension_numbers<[1], [0], [0], [1], [0, 0, 1, 1], [], []>} : vector<2x30xf32>, vector<30x104xf32>, vector<2x104xf32> -> vector<2x104xf32>
    %208 = arith.maximumf %196, %207 : vector<2x104xf32>
    %209 = vector.extract_strided_slice %208 {offsets = [0, 0], sizes = [2, 96], strides = [1, 1]} : vector<2x104xf32> to vector<2x96xf32>
    %210 = vector.extract_strided_slice %208 {offsets = [0, 8], sizes = [2, 96], strides = [1, 1]} : vector<2x104xf32> to vector<2x96xf32>
    %211 = arith.maximumf %209, %210 : vector<2x96xf32>
    %c4 = arith.constant 4 : index
    %c0_93 = arith.constant 0 : index
    %c0_94 = arith.constant 0 : index
    %212 = vector.load %arg6[%c4, %c0_93, %c0_94] : memref<6x96x32xf32, #tpu.memory_space<vmem>>, vector<1x96x32xf32>
    %213 = vector.shape_cast %212 : vector<1x96x32xf32> to vector<96x32xf32>
    %cst_95 = arith.constant dense<0.000000e+00> : vector<2x32xf32>
    %214 = tpu.matmul %211, %213, %cst_95 {dimension_numbers = #tpu.dot_dimension_numbers<[1], [0], [0], [1], [0, 0, 1, 1], [], []>} : vector<2x96xf32>, vector<96x32xf32>, vector<2x32xf32> -> vector<2x32xf32>
    %215 = arith.addf %185, %214 : vector<2x32xf32>
    %216 = tpu.iota {dimensions = array<i32: 0>} : vector<2x30xi32>
    %217 = tpu.iota {dimensions = array<i32: 1>} : vector<2x30xi32>
    %c16_i32_96 = arith.constant 16 : i32
    %218 = vector.broadcast %c16_i32_96 : i32 to vector<2x30xi32>
    %219 = arith.muli %218, %216 : vector<2x30xi32>
    %c10_i32 = arith.constant 10 : i32
    %220 = vector.broadcast %c10_i32 : i32 to vector<2x30xi32>
    %221 = arith.addi %219, %220 : vector<2x30xi32>
    %222 = arith.cmpi eq, %217, %221 : vector<2x30xi32>
    %cst_97 = arith.constant 1.000000e+00 : f32
    %cst_98 = arith.constant 0.000000e+00 : f32
    %223 = vector.broadcast %cst_97 : f32 to vector<2x30xf32>
    %224 = vector.broadcast %cst_98 : f32 to vector<2x30xf32>
    %225 = arith.select %222, %223, %224 : vector<2x30xi1>, vector<2x30xf32>
    %cst_99 = arith.constant dense<0.000000e+00> : vector<2x104xf32>
    %226 = tpu.matmul %225, %64, %cst_99 {dimension_numbers = #tpu.dot_dimension_numbers<[1], [0], [0], [1], [0, 0, 1, 1], [], []>} : vector<2x30xf32>, vector<30x104xf32>, vector<2x104xf32> -> vector<2x104xf32>
    %227 = tpu.iota {dimensions = array<i32: 0>} : vector<2x30xi32>
    %228 = tpu.iota {dimensions = array<i32: 1>} : vector<2x30xi32>
    %c16_i32_100 = arith.constant 16 : i32
    %229 = vector.broadcast %c16_i32_100 : i32 to vector<2x30xi32>
    %230 = arith.muli %229, %227 : vector<2x30xi32>
    %c11_i32 = arith.constant 11 : i32
    %231 = vector.broadcast %c11_i32 : i32 to vector<2x30xi32>
    %232 = arith.addi %230, %231 : vector<2x30xi32>
    %233 = arith.cmpi eq, %228, %232 : vector<2x30xi32>
    %cst_101 = arith.constant 1.000000e+00 : f32
    %cst_102 = arith.constant 0.000000e+00 : f32
    %234 = vector.broadcast %cst_101 : f32 to vector<2x30xf32>
    %235 = vector.broadcast %cst_102 : f32 to vector<2x30xf32>
    %236 = arith.select %233, %234, %235 : vector<2x30xi1>, vector<2x30xf32>
    %cst_103 = arith.constant dense<0.000000e+00> : vector<2x104xf32>
    %237 = tpu.matmul %236, %64, %cst_103 {dimension_numbers = #tpu.dot_dimension_numbers<[1], [0], [0], [1], [0, 0, 1, 1], [], []>} : vector<2x30xf32>, vector<30x104xf32>, vector<2x104xf32> -> vector<2x104xf32>
    %238 = arith.maximumf %226, %237 : vector<2x104xf32>
    %239 = vector.extract_strided_slice %238 {offsets = [0, 0], sizes = [2, 96], strides = [1, 1]} : vector<2x104xf32> to vector<2x96xf32>
    %240 = vector.extract_strided_slice %238 {offsets = [0, 8], sizes = [2, 96], strides = [1, 1]} : vector<2x104xf32> to vector<2x96xf32>
    %241 = arith.maximumf %239, %240 : vector<2x96xf32>
    %c5 = arith.constant 5 : index
    %c0_104 = arith.constant 0 : index
    %c0_105 = arith.constant 0 : index
    %242 = vector.load %arg6[%c5, %c0_104, %c0_105] : memref<6x96x32xf32, #tpu.memory_space<vmem>>, vector<1x96x32xf32>
    %243 = vector.shape_cast %242 : vector<1x96x32xf32> to vector<96x32xf32>
    %cst_106 = arith.constant dense<0.000000e+00> : vector<2x32xf32>
    %244 = tpu.matmul %241, %243, %cst_106 {dimension_numbers = #tpu.dot_dimension_numbers<[1], [0], [0], [1], [0, 0, 1, 1], [], []>} : vector<2x96xf32>, vector<96x32xf32>, vector<2x32xf32> -> vector<2x32xf32>
    %245 = arith.addf %215, %244 : vector<2x32xf32>
    %c0_107 = arith.constant 0 : index
    %c0_108 = arith.constant 0 : index
    %246 = vector.load %arg7[%c0_107, %c0_108] : memref<1x32xf32, #tpu.memory_space<vmem>>, vector<1x32xf32>
    %247 = vector.broadcast %246 : vector<1x32xf32> to vector<2x32xf32>
    %248 = arith.addf %245, %247 : vector<2x32xf32>
    %cst_109 = arith.constant 0.000000e+00 : f32
    %249 = vector.broadcast %cst_109 : f32 to vector<2x32xf32>
    %250 = arith.maximumf %248, %249 : vector<2x32xf32>
    %c0_110 = arith.constant 0 : index
    %c0_111 = arith.constant 0 : index
    %251 = vector.load %arg8[%c0_110, %c0_111] : memref<32x10xf32, #tpu.memory_space<vmem>>, vector<32x10xf32>
    %cst_112 = arith.constant dense<0.000000e+00> : vector<2x10xf32>
    %252 = tpu.matmul %250, %251, %cst_112 {dimension_numbers = #tpu.dot_dimension_numbers<[1], [0], [0], [1], [0, 0, 1, 1], [], []>} : vector<2x32xf32>, vector<32x10xf32>, vector<2x10xf32> -> vector<2x10xf32>
    %c0_113 = arith.constant 0 : index
    %c0_114 = arith.constant 0 : index
    %253 = vector.load %arg9[%c0_113, %c0_114] : memref<1x10xf32, #tpu.memory_space<vmem>>, vector<1x10xf32>
    %254 = vector.broadcast %253 : vector<1x10xf32> to vector<2x10xf32>
    %255 = arith.addf %252, %254 : vector<2x10xf32>
    %c0_115 = arith.constant 0 : index
    %c0_116 = arith.constant 0 : index
    %256 = vector.load %arg10[%c0_115, %c0_116] : memref<2x10xf32, #tpu.memory_space<vmem>>, vector<2x10xf32>
    tpu.vector_store %arg10[%c0_115, %c0_116], %255 {strides = array<i32>} : memref<2x10xf32, #tpu.memory_space<vmem>>, vector<2x10xf32>,
    return
  }
  func.func @transform_0(%arg0: i32) -> (i32, i32) {
    %c0_i32 = arith.constant 0 : i32
    %c0_i32_0 = arith.constant 0 : i32
    return %arg0, %c0_i32 : i32, i32
  }
  func.func @transform_1(%arg0: i32) -> (i32, i32, i32) {
    %c0_i32 = arith.constant 0 : i32
    %c0_i32_0 = arith.constant 0 : i32
    %c0_i32_1 = arith.constant 0 : i32
    %c0_i32_2 = arith.constant 0 : i32
    return %c0_i32, %c0_i32_0, %c0_i32_1 : i32, i32, i32
  }
  func.func @transform_2(%arg0: i32) -> (i32, i32) {
    %c0_i32 = arith.constant 0 : i32
    %c0_i32_0 = arith.constant 0 : i32
    %c0_i32_1 = arith.constant 0 : i32
    return %c0_i32, %c0_i32_0 : i32, i32
  }
  func.func @transform_3(%arg0: i32) -> (i32, i32, i32) {
    %c0_i32 = arith.constant 0 : i32
    %c0_i32_0 = arith.constant 0 : i32
    %c0_i32_1 = arith.constant 0 : i32
    %c0_i32_2 = arith.constant 0 : i32
    return %c0_i32, %c0_i32_0, %c0_i32_1 : i32, i32, i32
  }
  func.func @transform_4(%arg0: i32) -> (i32, i32) {
    %c0_i32 = arith.constant 0 : i32
    %c0_i32_0 = arith.constant 0 : i32
    %c0_i32_1 = arith.constant 0 : i32
    return %c0_i32, %c0_i32_0 : i32, i32
  }
  func.func @transform_5(%arg0: i32) -> (i32, i32, i32) {
    %c0_i32 = arith.constant 0 : i32
    %c0_i32_0 = arith.constant 0 : i32
    %c0_i32_1 = arith.constant 0 : i32
    %c0_i32_2 = arith.constant 0 : i32
    return %c0_i32, %c0_i32_0, %c0_i32_1 : i32, i32, i32
  }
  func.func @transform_6(%arg0: i32) -> (i32, i32) {
    %c0_i32 = arith.constant 0 : i32
    %c0_i32_0 = arith.constant 0 : i32
    %c0_i32_1 = arith.constant 0 : i32
    return %c0_i32, %c0_i32_0 : i32, i32
  }
  func.func @transform_7(%arg0: i32) -> (i32, i32) {
    %c0_i32 = arith.constant 0 : i32
    %c0_i32_0 = arith.constant 0 : i32
    %c0_i32_1 = arith.constant 0 : i32
    return %c0_i32, %c0_i32_0 : i32, i32
  }
  func.func @transform_8(%arg0: i32) -> (i32, i32) {
    %c0_i32 = arith.constant 0 : i32
    %c0_i32_0 = arith.constant 0 : i32
    %c0_i32_1 = arith.constant 0 : i32
    return %c0_i32, %c0_i32_0 : i32, i32
  }
  func.func @transform_9(%arg0: i32) -> (i32, i32) {
    %c0_i32 = arith.constant 0 : i32
    %c0_i32_0 = arith.constant 0 : i32
    return %arg0, %c0_i32 : i32, i32
  }
}

</mosaic_0001>

<llo_original>
// kernel: tile.13
$region0: #{tile.13}
  #allocation0 [shape = 's32[1]{0}', space=sflag, size = 0x4, scoped, tag = 'scoped memory for tile.13']
  %s0 = inlined_call_operand.vmem [shape: f32[4], index: 0, kind: input, shape index: {}]
  %s1 = inlined_call_operand.vmem [shape: f32[30,4], index: 1, kind: output, shape index: {}]
  // Predicated region
  $region2: #{tile.13} parent=0 // pred_check
    _
  $region3: #{tile.13} parent=0 // pred_check_branch
    %3 = sbr.rel (0) target = $region5
  $region4: #{tile.13} parent=0 // pred_region
    _
  $region5: #{tile.13} parent=0 // pred_fallthru
    _
  %v4 = vld [vmem:[%s0] ss:$0 sm:$0xff]
  %5 = vst [vmem:[%s1] sm:$0xff] %v4
  %s6 = scalar_lea.vmem %s1, 8
  %7 = vst [vmem:[%s6] sm:$0xff] %v4
  %s8 = scalar_lea.vmem %s1, 16
  %9 = vst [vmem:[%s8] sm:$0xff] %v4
  %s10 = scalar_lea.vmem %s1, 24
  %11 = vst [vmem:[%s10] sm:$0xff] %v4

// kernel: tile.14
$region0: #{tile.14}
  %s0 = inlined_call_operand.vmem [shape: f32[30,4], index: 0, kind: input, shape index: {}]
  %s1 = inlined_call_operand.vmem [shape: f32[1,120], index: 1, kind: output, shape index: {}]
  $region1: #{tile.14} parent=0
    #allocation0 [shape = 'u8[4096]{0}', space=vmem, size = 0x1000, scoped, tag = 'scoped mem for output reshape']
    %v2 = vld [vmem:[%s0] sm:$0x1]
    %vm3 = vcmask 31744
    %4 = vst.msk [vmem:[#allocation0] sm:$0x1] %vm3, %v2
    %s5 = scalar_lea.vmem %s0, 29
    %v6 = vld [vmem:[%s5] sm:$0x1]
    %7 = vrot.lane.b32.xlu0 %v6, 116
    %v8 = vpop.permute.xlu0 %7
    %vm9 = vcmask 982944
    %10 = vst.msk [vmem:[#allocation0] sm:$0x1] %vm9, %v8
    %s11 = scalar_lea.vmem %s0, 28
    %v12 = vld [vmem:[%s11] sm:$0x1]
    %13 = vrot.lane.b32.xlu0 %v12, 112
    %v14 = vpop.permute.xlu0 %13
    %vm15 = vcmask 950144
    %16 = vst.msk [vmem:[#allocation0] sm:$0x1] %vm15, %v14
    %s17 = scalar_lea.vmem %s0, 27
    %v18 = vld [vmem:[%s17] sm:$0x1]
    %19 = vrot.lane.b32.xlu0 %v18, 108
    %v20 = vpop.permute.xlu0 %19
    %vm21 = vcmask 917344
    %22 = vst.msk [vmem:[#allocation0] sm:$0x1] %vm21, %v20
    %s23 = scalar_lea.vmem %s0, 26
    %v24 = vld [vmem:[%s23] sm:$0x1]
    %25 = vrot.lane.b32.xlu0 %v24, 104
    %v26 = vpop.permute.xlu0 %25
    %vm27 = vcmask 884544
    %28 = vst.msk [vmem:[#allocation0] sm:$0x1] %vm27, %v26
    %s29 = scalar_lea.vmem %s0, 25
    %v30 = vld [vmem:[%s29] sm:$0x1]
    %31 = vrot.lane.b32.xlu0 %v30, 100
    %v32 = vpop.permute.xlu0 %31
    %vm33 = vcmask 851744
    %34 = vst.msk [vmem:[#allocation0] sm:$0x1] %vm33, %v32
    %s35 = scalar_lea.vmem %s0, 24
    %v36 = vld [vmem:[%s35] sm:$0x1]
    %37 = vrot.lane.b32.xlu0 %v36, 96
    %v38 = vpop.permute.xlu0 %37
    %vm39 = vcmask 818944
    %40 = vst.msk [vmem:[#allocation0] sm:$0x1] %vm39, %v38
    %s41 = scalar_lea.vmem %s0, 23
    %v42 = vld [vmem:[%s41] sm:$0x1]
    %43 = vrot.lane.b32.xlu0 %v42, 92
    %v44 = vpop.permute.xlu0 %43
    %vm45 = vcmask 786144
    %46 = vst.msk [vmem:[#allocation0] sm:$0x1] %vm45, %v44
    %s47 = scalar_lea.vmem %s0, 22
    %v48 = vld [vmem:[%s47] sm:$0x1]
    %49 = vrot.lane.b32.xlu0 %v48, 88
    %v50 = vpop.permute.xlu0 %49
    %vm51 = vcmask 753344
    %52 = vst.msk [vmem:[#allocation0] sm:$0x1] %vm51, %v50
    %s53 = scalar_lea.vmem %s0, 21
    %v54 = vld [vmem:[%s53] sm:$0x1]
    %55 = vrot.lane.b32.xlu0 %v54, 84
    %v56 = vpop.permute.xlu0 %55
    %vm57 = vcmask 720544
    %58 = vst.msk [vmem:[#allocation0] sm:$0x1] %vm57, %v56
    %s59 = scalar_lea.vmem %s0, 20
    %v60 = vld [vmem:[%s59] sm:$0x1]
    %61 = vrot.lane.b32.xlu0 %v60, 80
    %v62 = vpop.permute.xlu0 %61
    %vm63 = vcmask 687744
    %64 = vst.msk [vmem:[#allocation0] sm:$0x1] %vm63, %v62
    %s65 = scalar_lea.vmem %s0, 19
    %v66 = vld [vmem:[%s65] sm:$0x1]
    %67 = vrot.lane.b32.xlu0 %v66, 76
    %v68 = vpop.permute.xlu0 %67
    %vm69 = vcmask 654944
    %70 = vst.msk [vmem:[#allocation0] sm:$0x1] %vm69, %v68
    %s71 = scalar_lea.vmem %s0, 18
    %v72 = vld [vmem:[%s71] sm:$0x1]
    %73 = vrot.lane.b32.xlu0 %v72, 72
    %v74 = vpop.permute.xlu0 %73
    %vm75 = vcmask 622144
    %76 = vst.msk [vmem:[#allocation0] sm:$0x1] %vm75, %v74
    %s77 = scalar_lea.vmem %s0, 17
    %v78 = vld [vmem:[%s77] sm:$0x1]
    %79 = vrot.lane.b32.xlu0 %v78, 68
    %v80 = vpop.permute.xlu0 %79
    %vm81 = vcmask 589344
    %82 = vst.msk [vmem:[#allocation0] sm:$0x1] %vm81, %v80
    %s83 = scalar_lea.vmem %s0, 16
    %v84 = vld [vmem:[%s83] sm:$0x1]
    %85 = vrot.lane.b32.xlu0 %v84, 64
    %v86 = vpop.permute.xlu0 %85
    %vm87 = vcmask 556544
    %88 = vst.msk [vmem:[#allocation0] sm:$0x1] %vm87, %v86
    %s89 = scalar_lea.vmem %s0, 15
    %v90 = vld [vmem:[%s89] sm:$0x1]
    %91 = vrot.lane.b32.xlu0 %v90, 60
    %v92 = vpop.permute.xlu0 %91
    %vm93 = vcmask 523744
    %94 = vst.msk [vmem:[#allocation0] sm:$0x1] %vm93, %v92
    %s95 = scalar_lea.vmem %s0, 14
    %v96 = vld [vmem:[%s95] sm:$0x1]
    %97 = vrot.lane.b32.xlu0 %v96, 56
    %v98 = vpop.permute.xlu0 %97
    %vm99 = vcmask 490944
    %100 = vst.msk [vmem:[#allocation0] sm:$0x1] %vm99, %v98
    %s101 = scalar_lea.vmem %s0, 13
    %v102 = vld [vmem:[%s101] sm:$0x1]
    %103 = vrot.lane.b32.xlu0 %v102, 52
    %v104 = vpop.permute.xlu0 %103
    %vm105 = vcmask 458144
    %106 = vst.msk [vmem:[#allocation0] sm:$0x1] %vm105, %v104
    %s107 = scalar_lea.vmem %s0, 12
    %v108 = vld [vmem:[%s107] sm:$0x1]
    %109 = vrot.lane.b32.xlu0 %v108, 48
    %v110 = vpop.permute.xlu0 %109
    %vm111 = vcmask 425344
    %112 = vst.msk [vmem:[#allocation0] sm:$0x1] %vm111, %v110
    %s113 = scalar_lea.vmem %s0, 11
    %v114 = vld [vmem:[%s113] sm:$0x1]
    %115 = vrot.lane.b32.xlu0 %v114, 44
    %v116 = vpop.permute.xlu0 %115
    %vm117 = vcmask 392544
    %118 = vst.msk [vmem:[#allocation0] sm:$0x1] %vm117, %v116
    %s119 = scalar_lea.vmem %s0, 10
    %v120 = vld [vmem:[%s119] sm:$0x1]
    %121 = vrot.lane.b32.xlu0 %v120, 40
    %v122 = vpop.permute.xlu0 %121
    %vm123 = vcmask 359744
    %124 = vst.msk [vmem:[#allocation0] sm:$0x1] %vm123, %v122
    %s125 = scalar_lea.vmem %s0, 9
    %v126 = vld [vmem:[%s125] sm:$0x1]
    %127 = vrot.lane.b32.xlu0 %v126, 36
    %v128 = vpop.permute.xlu0 %127
    %vm129 = vcmask 326944
    %130 = vst.msk [vmem:[#allocation0] sm:$0x1] %vm129, %v128
    %s131 = scalar_lea.vmem %s0, 8
    %v132 = vld [vmem:[%s131] sm:$0x1]
    %133 = vrot.lane.b32.xlu0 %v132, 32
    %v134 = vpop.permute.xlu0 %133
    %vm135 = vcmask 294144
    %136 = vst.msk [vmem:[#allocation0] sm:$0x1] %vm135, %v134
    %s137 = scalar_lea.vmem %s0, 7
    %v138 = vld [vmem:[%s137] sm:$0x1]
    %139 = vrot.lane.b32.xlu0 %v138, 28
    %v140 = vpop.permute.xlu0 %139
    %vm141 = vcmask 261344
    %142 = vst.msk [vmem:[#allocation0] sm:$0x1] %vm141, %v140
    %s143 = scalar_lea.vmem %s0, 6
    %v144 = vld [vmem:[%s143] sm:$0x1]
    %145 = vrot.lane.b32.xlu0 %v144, 24
    %v146 = vpop.permute.xlu0 %145
    %vm147 = vcmask 228544
    %148 = vst.msk [vmem:[#allocation0] sm:$0x1] %vm147, %v146
    %s149 = scalar_lea.vmem %s0, 5
    %v150 = vld [vmem:[%s149] sm:$0x1]
    %151 = vrot.lane.b32.xlu0 %v150, 20
    %v152 = vpop.permute.xlu0 %151
    %vm153 = vcmask 195744
    %154 = vst.msk [vmem:[#allocation0] sm:$0x1] %vm153, %v152
    %s155 = scalar_lea.vmem %s0, 4
    %v156 = vld [vmem:[%s155] sm:$0x1]
    %157 = vrot.lane.b32.xlu0 %v156, 16
    %v158 = vpop.permute.xlu0 %157
    %vm159 = vcmask 162944
    %160 = vst.msk [vmem:[#allocation0] sm:$0x1] %vm159, %v158
    %s161 = scalar_lea.vmem %s0, 3
    %v162 = vld [vmem:[%s161] sm:$0x1]
    %163 = vrot.lane.b32.xlu0 %v162, 12
    %v164 = vpop.permute.xlu0 %163
    %vm165 = vcmask 130144
    %166 = vst.msk [vmem:[#allocation0] sm:$0x1] %vm165, %v164
    %s167 = scalar_lea.vmem %s0, 2
    %v168 = vld [vmem:[%s167] sm:$0x1]
    %169 = vrot.lane.b32.xlu0 %v168, 8
    %v170 = vpop.permute.xlu0 %169
    %vm171 = vcmask 97344
    %172 = vst.msk [vmem:[#allocation0] sm:$0x1] %vm171, %v170
    %s173 = scalar_lea.vmem %s0, 1
    %v174 = vld [vmem:[%s173] sm:$0x1]
    %175 = vrot.lane.b32.xlu0 %v174, 4
    %v176 = vpop.permute.xlu0 %175
    %vm177 = vcmask 64544
    %178 = vst.msk [vmem:[#allocation0] sm:$0x1] %vm177, %v176
    %s180 = sshllo.u32 0, 1
    %v182 = vld [vmem:[#allocation0] sm:%s180]
    %s183 = sshllo.u32 0, 1
    %184 = vst [vmem:[%s1] sm:%s183] %v182

// kernel: tile.18
$region0: #{tile.18}
  #allocation0 [shape = 's32[1]{0}', space=sflag, size = 0x4, scoped, tag = 'scoped memory for tile.18']
  %s0 = inlined_call_operand.vmem [shape: f32[8], index: 0, kind: input, shape index: {}]
  %s1 = inlined_call_operand.vmem [shape: f32[13,8], index: 1, kind: output, shape index: {}]
  // Predicated region
  $region2: #{tile.18} parent=0 // pred_check
    _
  $region3: #{tile.18} parent=0 // pred_check_branch
    %3 = sbr.rel (0) target = $region5
  $region4: #{tile.18} parent=0 // pred_region
    _
  $region5: #{tile.18} parent=0 // pred_fallthru
    _
  %v4 = vld [vmem:[%s0] ss:$0 sm:$0xff]
  %5 = vst [vmem:[%s1] sm:$0xff] %v4
  %s6 = scalar_lea.vmem %s1, 8
  %7 = vst [vmem:[%s6] sm:$0xff] %v4

// kernel: tile.19
$region0: #{tile.19}
  %s0 = inlined_call_operand.vmem [shape: f32[13,8], index: 0, kind: input, shape index: {}]
  %s1 = inlined_call_operand.vmem [shape: f32[1,104], index: 1, kind: output, shape index: {}]
  $region1: #{tile.19} parent=0
    #allocation0 [shape = 'u8[4096]{0}', space=vmem, size = 0x1000, scoped, tag = 'scoped mem for output reshape']
    %v2 = vld [vmem:[%s0] sm:$0x1]
    %vm3 = vcmask 64512
    %4 = vst.msk [vmem:[#allocation0] sm:$0x1] %vm3, %v2
    %s5 = scalar_lea.vmem %s0, 12
    %v6 = vld [vmem:[%s5] sm:$0x1]
    %7 = vrot.lane.b32.xlu0 %v6, 96
    %v8 = vpop.permute.xlu0 %7
    %vm9 = vcmask 851712
    %10 = vst.msk [vmem:[#allocation0] sm:$0x1] %vm9, %v8
    %s11 = scalar_lea.vmem %s0, 11
    %v12 = vld [vmem:[%s11] sm:$0x1]
    %13 = vrot.lane.b32.xlu0 %v12, 88
    %v14 = vpop.permute.xlu0 %13
    %vm15 = vcmask 786112
    %16 = vst.msk [vmem:[#allocation0] sm:$0x1] %vm15, %v14
    %s17 = scalar_lea.vmem %s0, 10
    %v18 = vld [vmem:[%s17] sm:$0x1]
    %19 = vrot.lane.b32.xlu0 %v18, 80
    %v20 = vpop.permute.xlu0 %19
    %vm21 = vcmask 720512
    %22 = vst.msk [vmem:[#allocation0] sm:$0x1] %vm21, %v20
    %s23 = scalar_lea.vmem %s0, 9
    %v24 = vld [vmem:[%s23] sm:$0x1]
    %25 = vrot.lane.b32.xlu0 %v24, 72
    %v26 = vpop.permute.xlu0 %25
    %vm27 = vcmask 654912
    %28 = vst.msk [vmem:[#allocation0] sm:$0x1] %vm27, %v26
    %s29 = scalar_lea.vmem %s0, 8
    %v30 = vld [vmem:[%s29] sm:$0x1]
    %31 = vrot.lane.b32.xlu0 %v30, 64
    %v32 = vpop.permute.xlu0 %31
    %vm33 = vcmask 589312
    %34 = vst.msk [vmem:[#allocation0] sm:$0x1] %vm33, %v32
    %s35 = scalar_lea.vmem %s0, 7
    %v36 = vld [vmem:[%s35] sm:$0x1]
    %37 = vrot.lane.b32.xlu0 %v36, 56
    %v38 = vpop.permute.xlu0 %37
    %vm39 = vcmask 523712
    %40 = vst.msk [vmem:[#allocation0] sm:$0x1] %vm39, %v38
    %s41 = scalar_lea.vmem %s0, 6
    %v42 = vld [vmem:[%s41] sm:$0x1]
    %43 = vrot.lane.b32.xlu0 %v42, 48
    %v44 = vpop.permute.xlu0 %43
    %vm45 = vcmask 458112
    %46 = vst.msk [vmem:[#allocation0] sm:$0x1] %vm45, %v44
    %s47 = scalar_lea.vmem %s0, 5
    %v48 = vld [vmem:[%s47] sm:$0x1]
    %49 = vrot.lane.b32.xlu0 %v48, 40
    %v50 = vpop.permute.xlu0 %49
    %vm51 = vcmask 392512
    %52 = vst.msk [vmem:[#allocation0] sm:$0x1] %vm51, %v50
    %s53 = scalar_lea.vmem %s0, 4
    %v54 = vld [vmem:[%s53] sm:$0x1]
    %55 = vrot.lane.b32.xlu0 %v54, 32
    %v56 = vpop.permute.xlu0 %55
    %vm57 = vcmask 326912
    %58 = vst.msk [vmem:[#allocation0] sm:$0x1] %vm57, %v56
    %s59 = scalar_lea.vmem %s0, 3
    %v60 = vld [vmem:[%s59] sm:$0x1]
    %61 = vrot.lane.b32.xlu0 %v60, 24
    %v62 = vpop.permute.xlu0 %61
    %vm63 = vcmask 261312
    %64 = vst.msk [vmem:[#allocation0] sm:$0x1] %vm63, %v62
    %s65 = scalar_lea.vmem %s0, 2
    %v66 = vld [vmem:[%s65] sm:$0x1]
    %67 = vrot.lane.b32.xlu0 %v66, 16
    %v68 = vpop.permute.xlu0 %67
    %vm69 = vcmask 195712
    %70 = vst.msk [vmem:[#allocation0] sm:$0x1] %vm69, %v68
    %s71 = scalar_lea.vmem %s0, 1
    %v72 = vld [vmem:[%s71] sm:$0x1]
    %73 = vrot.lane.b32.xlu0 %v72, 8
    %v74 = vpop.permute.xlu0 %73
    %vm75 = vcmask 130112
    %76 = vst.msk [vmem:[#allocation0] sm:$0x1] %vm75, %v74
    %s78 = sshllo.u32 0, 1
    %v80 = vld [vmem:[#allocation0] sm:%s78]
    %s81 = sshllo.u32 0, 1
    %82 = vst [vmem:[%s1] sm:%s81] %v80

// kernel: convnet_forward.1
$region0: #{convnet_forward.1}
  #allocation0 [shape = 'u32[]', space=smem, size = 0x4, offset = 0x4, fixed_abs, tag = 'smem constant byte address 0x4 - core index']
  #allocation1 [shape = 'u32[144,128]{1,0:T(1,128)}', space=vmem, size = 0x12000, scoped, tag = 'internal scratch']
  %s0 = inlined_call_operand.vmem [shape: f32[64,96], index: 0, kind: input, shape index: {}]
  %s1 = inlined_call_operand.vmem [shape: f32[3,96,120], index: 1, kind: input, shape index: {}]
  %s2 = inlined_call_operand.vmem [shape: f32[1,120], index: 2, kind: input, shape index: {}]
  %s3 = inlined_call_operand.vmem [shape: f32[3,116,104], index: 3, kind: input, shape index: {}]
  %s4 = inlined_call_operand.vmem [shape: f32[1,104], index: 4, kind: input, shape index: {}]
  %s5 = inlined_call_operand.vmem [shape: f32[6,96,32], index: 5, kind: input, shape index: {}]
  %s6 = inlined_call_operand.vmem [shape: f32[1,32], index: 6, kind: input, shape index: {}]
  %s7 = inlined_call_operand.vmem [shape: f32[32,10], index: 7, kind: input, shape index: {}]
  %s8 = inlined_call_operand.vmem [shape: f32[1,10], index: 8, kind: input, shape index: {}]
  %s9 = inlined_call_operand.hbm [shape: f32[2,10], index: 9, kind: output, shape index: {}]
  %s10 = sld [smem:[#allocation0]]
  $region46: #{convnet_forward.1} parent=0
    _
  %s12 = ssub.s32 1, %s10
  %s13 = scalar_select 0, %s12, %s10
  $region1: #{convnet_forward.1} parent=0
    #allocation2 [shape = 'u8[1024]{0}', space=vmem, size = 0x400, scoped, tag = 'output window, operand 0, single buffered']
    #allocation3 [shape = 's32[1]{0}', space=sflag, size = 0x4, scoped, tag = 'scoped memory for convnet_forward.1']
    %14 = vsyncpa [#allocation3], 0
    // Predicated region
    $region2: #{convnet_forward.1} parent=1 // pred_check
      _
    $region3: #{convnet_forward.1} parent=1 // pred_check_branch
      %16 = sbr.rel (0) target = $region5
    $region4: #{convnet_forward.1} parent=1 // pred_region
      _
    $region5: #{convnet_forward.1} parent=1 // pred_fallthru
      _
    // Predicated region
    $region6: #{convnet_forward.1} parent=1 // pred_check
      _
    $region7: #{convnet_forward.1} parent=1 // pred_check_branch
      %18 = sbr.rel (0) target = $region9
    $region8: #{convnet_forward.1} parent=1 // pred_region
      _
    $region9: #{convnet_forward.1} parent=1 // pred_fallthru
      _
    // Predicated region
    $region10: #{convnet_forward.1} parent=1 // pred_check
      _
    $region11: #{convnet_forward.1} parent=1 // pred_check_branch
      %20 = sbr.rel (0) target = $region13
    $region12: #{convnet_forward.1} parent=1 // pred_region
      _
    $region13: #{convnet_forward.1} parent=1 // pred_fallthru
      _
    // Predicated region
    $region14: #{convnet_forward.1} parent=1 // pred_check
      _
    $region15: #{convnet_forward.1} parent=1 // pred_check_branch
      %22 = sbr.rel (0) target = $region17
    $region16: #{convnet_forward.1} parent=1 // pred_region
      _
    $region17: #{convnet_forward.1} parent=1 // pred_fallthru
      _
    // Predicated region
    $region18: #{convnet_forward.1} parent=1 // pred_check
      _
    $region19: #{convnet_forward.1} parent=1 // pred_check_branch
      %24 = sbr.rel (0) target = $region21
    $region20: #{convnet_forward.1} parent=1 // pred_region
      _
    $region21: #{convnet_forward.1} parent=1 // pred_fallthru
      _
    // Predicated region
    $region22: #{convnet_forward.1} parent=1 // pred_check
      _
    $region23: #{convnet_forward.1} parent=1 // pred_check_branch
      %26 = sbr.rel (0) target = $region25
    $region24: #{convnet_forward.1} parent=1 // pred_region
      _
    $region25: #{convnet_forward.1} parent=1 // pred_fallthru
      _
    // Predicated region
    $region26: #{convnet_forward.1} parent=1 // pred_check
      _
    $region27: #{convnet_forward.1} parent=1 // pred_check_branch
      %28 = sbr.rel (0) target = $region29
    $region28: #{convnet_forward.1} parent=1 // pred_region
      _
    $region29: #{convnet_forward.1} parent=1 // pred_fallthru
      _
    // Predicated region
    $region30: #{convnet_forward.1} parent=1 // pred_check
      _
    $region31: #{convnet_forward.1} parent=1 // pred_check_branch
      %30 = sbr.rel (0) target = $region33
    $region32: #{convnet_forward.1} parent=1 // pred_region
      _
    $region33: #{convnet_forward.1} parent=1 // pred_fallthru
      _
    // Predicated region
    $region34: #{convnet_forward.1} parent=1 // pred_check
      _
    $region35: #{convnet_forward.1} parent=1 // pred_check_branch
      %32 = sbr.rel (0) target = $region37
    $region36: #{convnet_forward.1} parent=1 // pred_region
      _
    $region37: #{convnet_forward.1} parent=1 // pred_fallthru
      _
    %v33 = vld [vmem:[%s0] sm:$0xff]
    %v34 = vld [vmem:[%s0 + $0x8] sm:$0xff]
    %v35 = vld [vmem:[%s0 + $0x10] sm:$0xff]
    %v36 = vld [vmem:[%s0 + $0x18] sm:$0xff]
    %v37 = vld [vmem:[%s0 + $0x20] sm:$0xff]
    %v38 = vld [vmem:[%s0 + $0x28] sm:$0xff]
    %v39 = vld [vmem:[%s0 + $0x30] sm:$0xff]
    %v40 = vld [vmem:[%s0 + $0x38] sm:$0xff]
    %v41 = vld [vmem:[%s1] sm:$0xff]
    %v42 = vld [vmem:[%s1 + $0x8] sm:$0xff]
    %v43 = vld [vmem:[%s1 + $0x10] sm:$0xff]
    %v44 = vld [vmem:[%s1 + $0x18] sm:$0xff]
    %v45 = vld [vmem:[%s1 + $0x20] sm:$0xff]
    %v46 = vld [vmem:[%s1 + $0x28] sm:$0xff]
    %v47 = vld [vmem:[%s1 + $0x30] sm:$0xff]
    %v48 = vld [vmem:[%s1 + $0x38] sm:$0xff]
    %v49 = vld [vmem:[%s1 + $0x40] sm:$0xff]
    %v50 = vld [vmem:[%s1 + $0x48] sm:$0xff]
    %v51 = vld [vmem:[%s1 + $0x50] sm:$0xff]
    %v52 = vld [vmem:[%s1 + $0x58] sm:$0xff]
    %s53 = scalar_lea.vmem %s1, 96
    %v54 = vld [vmem:[%s53] sm:$0xff]
    %v55 = vld [vmem:[%s53 + $0x8] sm:$0xff]
    %v56 = vld [vmem:[%s53 + $0x10] sm:$0xff]
    %v57 = vld [vmem:[%s53 + $0x18] sm:$0xff]
    %v58 = vld [vmem:[%s53 + $0x20] sm:$0xff]
    %v59 = vld [vmem:[%s53 + $0x28] sm:$0xff]
    %v60 = vld [vmem:[%s53 + $0x30] sm:$0xff]
    %v61 = vld [vmem:[%s53 + $0x38] sm:$0xff]
    %v62 = vld [vmem:[%s53 + $0x40] sm:$0xff]
    %v63 = vld [vmem:[%s53 + $0x48] sm:$0xff]
    %v64 = vld [vmem:[%s53 + $0x50] sm:$0xff]
    %v65 = vld [vmem:[%s53 + $0x58] sm:$0xff]
    %vm74 = vcmask 1046528
    %v75 = vrot.slane %v33, 1
    %v76 = vrot.slane %v34, 1
    %v77 = vsel %vm74, %v75, %v76
    %v78 = vrot.slane %v35, 1
    %v79 = vsel %vm74, %v76, %v78
    %v80 = vrot.slane %v36, 1
    %v81 = vsel %vm74, %v78, %v80
    %v82 = vrot.slane %v37, 1
    %v83 = vsel %vm74, %v80, %v82
    %v84 = vrot.slane %v38, 1
    %v85 = vsel %vm74, %v82, %v84
    %v86 = vrot.slane %v39, 1
    %v87 = vsel %vm74, %v84, %v86
    %v88 = vrot.slane %v40, 1
    %v89 = vsel %vm74, %v86, %v88
    %vm90 = vcmask 785408
    %v91 = vsel %vm90, %v77, 0
    %v93 = vsel %vm90, %v79, 0
    %v95 = vsel %vm90, %v81, 0
    %v97 = vsel %vm90, %v83, 0
    %v99 = vsel %vm90, %v85, 0
    %v101 = vsel %vm90, %v87, 0
    %v103 = vsel %vm90, %v89, 0
    %v105 = vsel %vm90, %v88, 0
    %107 = vmatprep.subr.mxu0 0.0
    %108 = vmatpush1.msra.mxu0 %v54
    %109 = vmatprep.subr.mxu0 0.0
    %110 = vmatpush1.msra.mxu0 %v55
    %111 = vmatprep.subr.mxu0 0.0
    %112 = vmatpush1.msra.mxu0 %v56
    %113 = vmatprep.subr.mxu0 0.0
    %114 = vmatpush1.msra.mxu0 %v57
    %115 = vmatprep.subr.mxu0 0.0
    %116 = vmatpush1.msra.mxu0 %v58
    %117 = vmatprep.subr.mxu0 0.0
    %118 = vmatpush1.msra.mxu0 %v59
    %119 = vmatprep.subr.mxu0 0.0
    %120 = vmatpush1.msra.mxu0 %v60
    %121 = vmatprep.subr.mxu0 0.0
    %122 = vmatpush1.msra.mxu0 %v61
    %123 = vmatprep.subr.mxu0 0.0
    %124 = vmatpush1.msra.mxu0 %v62
    %125 = vmatprep.subr.mxu0 0.0
    %126 = vmatpush1.msra.mxu0 %v63
    %127 = vmatprep.subr.mxu0 0.0
    %128 = vmatpush1.msra.mxu0 %v64
    %129 = vmatprep.subr.mxu0 0.0
    %130 = vmatpush1.msra.mxu0 %v65
    %131 = vmatprep.subr.mxu0 0.0
    %132 = vmatpush1.msra.mxu0 0.0
    %133 = vmatprep.subr.mxu0 0.0
    %134 = vmatpush1.msra.mxu0 0.0
    %135 = vmatprep.subr.mxu0 0.0
    %136 = vmatpush1.msra.mxu0 0.0
    %137 = vmatprep.subr.mxu0 0.0
    %138 = vmatpush1.msra.mxu0 0.0
    %139 = vmatprep.subr.mxu0 0.0
    %140 = vmatpush1.msra.mxu0 0.0
    %141 = vmatprep.subr.mxu0 0.0
    %142 = vmatpush1.msra.mxu0 0.0
    %143 = vmatprep.subr.mxu0 0.0
    %144 = vmatpush1.msra.mxu0 0.0
    %145 = vmatprep.subr.mxu0 0.0
    %146 = vmatpush1.msra.mxu0 0.0
    %147 = vmatprep.subr.mxu0 0.0
    %148 = vmatpush1.msra.mxu0 0.0
    %149 = vmatprep.subr.mxu0 0.0
    %150 = vmatpush1.msra.mxu0 0.0
    %151 = vmatprep.subr.mxu0 0.0
    %152 = vmatpush1.msra.mxu0 0.0
    %153 = vmatprep.subr.mxu0 0.0
    %154 = vmatpush1.msra.mxu0 0.0
    %155 = vmatprep.subr.mxu0 0.0
    %156 = vmatpush1.msra.mxu0 0.0
    %157 = vmatprep.subr.mxu0 0.0
    %158 = vmatpush1.msra.mxu0 0.0
    %159 = vmatprep.subr.mxu0 0.0
    %160 = vmatpush1.msra.mxu0 0.0
    %161 = vmatprep.subr.mxu0 0.0
    %162 = vmatpush1.msra.mxu0 0.0
    %163 = vmatprep.subr.mxu0 0.0
    %164 = vmatpush1.msra.mxu0 0.0
    %165 = vmatprep.subr.mxu0 0.0
    %166 = vmatpush1.msra.mxu0 0.0
    %167 = vmatprep.subr.mxu0 0.0
    %168 = vmatpush1.msra.mxu0 0.0
    %169 = vmatprep.subr.mxu0 0.0
    %170 = vmatpush1.msra.mxu0 0.0
    %171 = vmatprep.mubr.f32.mxu0 0.0
    %172 = vmatmul.mubr.f32.gmra.mrb[0].mxu0 %v91
    %v173 = vpop.f32.mrb[0].mxu0
    %v174 = vadd.f32 0.0, %v173
    %v175 = vpop.f32.mrb[0].mxu0
    %176 = vmatprep.mubr.f32.mxu0 0.0
    %177 = vmatmul.mubr.f32.gmra.mrb[0].mxu0 %v93
    %v178 = vpop.f32.mrb[0].mxu0
    %v179 = vadd.f32 0.0, %v178
    %v180 = vpop.f32.mrb[0].mxu0
    %181 = vmatprep.mubr.f32.mxu0 0.0
    %182 = vmatmul.mubr.f32.gmra.mrb[0].mxu0 %v95
    %v183 = vpop.f32.mrb[0].mxu0
    %v184 = vadd.f32 0.0, %v183
    %v185 = vpop.f32.mrb[0].mxu0
    %186 = vmatprep.mubr.f32.mxu0 0.0
    %187 = vmatmul.mubr.f32.gmra.mrb[0].mxu0 %v97
    %v188 = vpop.f32.mrb[0].mxu0
    %v189 = vadd.f32 0.0, %v188
    %v190 = vpop.f32.mrb[0].mxu0
    %191 = vmatprep.mubr.f32.mxu0 0.0
    %192 = vmatmul.mubr.f32.gmra.mrb[0].mxu0 %v99
    %v193 = vpop.f32.mrb[0].mxu0
    %v194 = vadd.f32 0.0, %v193
    %v195 = vpop.f32.mrb[0].mxu0
    %196 = vmatprep.mubr.f32.mxu0 0.0
    %197 = vmatmul.mubr.f32.gmra.mrb[0].mxu0 %v101
    %v198 = vpop.f32.mrb[0].mxu0
    %v199 = vadd.f32 0.0, %v198
    %v200 = vpop.f32.mrb[0].mxu0
    %201 = vmatprep.mubr.f32.mxu0 0.0
    %202 = vmatmul.mubr.f32.gmra.mrb[0].mxu0 %v103
    %v203 = vpop.f32.mrb[0].mxu0
    %v204 = vadd.f32 0.0, %v203
    %v205 = vpop.f32.mrb[0].mxu0
    %206 = vmatprep.mubr.f32.mxu0 0.0
    %207 = vmatmul.mubr.f32.gmra.mrb[0].mxu0 %v105
    %v208 = vpop.f32.mrb[0].mxu0
    %v209 = vadd.f32 0.0, %v208
    %v210 = vpop.f32.mrb[0].mxu0
    %211 = vdwg.mxu0
    %v212 = vsel %vm90, %v33, 0
    %v214 = vsel %vm90, %v34, 0
    %v216 = vsel %vm90, %v35, 0
    %v218 = vsel %vm90, %v36, 0
    %v220 = vsel %vm90, %v37, 0
    %v222 = vsel %vm90, %v38, 0
    %v224 = vsel %vm90, %v39, 0
    %v226 = vsel %vm90, %v40, 0
    %228 = vmatprep.subr.mxu0 0.0
    %229 = vmatpush1.msra.mxu0 %v41
    %230 = vmatprep.subr.mxu0 0.0
    %231 = vmatpush1.msra.mxu0 %v42
    %232 = vmatprep.subr.mxu0 0.0
    %233 = vmatpush1.msra.mxu0 %v43
    %234 = vmatprep.subr.mxu0 0.0
    %235 = vmatpush1.msra.mxu0 %v44
    %236 = vmatprep.subr.mxu0 0.0
    %237 = vmatpush1.msra.mxu0 %v45
    %238 = vmatprep.subr.mxu0 0.0
    %239 = vmatpush1.msra.mxu0 %v46
    %240 = vmatprep.subr.mxu0 0.0
    %241 = vmatpush1.msra.mxu0 %v47
    %242 = vmatprep.subr.mxu0 0.0
    %243 = vmatpush1.msra.mxu0 %v48
    %244 = vmatprep.subr.mxu0 0.0
    %245 = vmatpush1.msra.mxu0 %v49
    %246 = vmatprep.subr.mxu0 0.0
    %247 = vmatpush1.msra.mxu0 %v50
    %248 = vmatprep.subr.mxu0 0.0
    %249 = vmatpush1.msra.mxu0 %v51
    %250 = vmatprep.subr.mxu0 0.0
    %251 = vmatpush1.msra.mxu0 %v52
    %252 = vmatprep.subr.mxu0 0.0
    %253 = vmatpush1.msra.mxu0 0.0
    %254 = vmatprep.subr.mxu0 0.0
    %255 = vmatpush1.msra.mxu0 0.0
    %256 = vmatprep.subr.mxu0 0.0
    %257 = vmatpush1.msra.mxu0 0.0
    %258 = vmatprep.subr.mxu0 0.0
    %259 = vmatpush1.msra.mxu0 0.0
    %260 = vmatprep.subr.mxu0 0.0
    %261 = vmatpush1.msra.mxu0 0.0
    %262 = vmatprep.subr.mxu0 0.0
    %263 = vmatpush1.msra.mxu0 0.0
    %264 = vmatprep.subr.mxu0 0.0
    %265 = vmatpush1.msra.mxu0 0.0
    %266 = vmatprep.subr.mxu0 0.0
    %267 = vmatpush1.msra.mxu0 0.0
    %268 = vmatprep.subr.mxu0 0.0
    %269 = vmatpush1.msra.mxu0 0.0
    %270 = vmatprep.subr.mxu0 0.0
    %271 = vmatpush1.msra.mxu0 0.0
    %272 = vmatprep.subr.mxu0 0.0
    %273 = vmatpush1.msra.mxu0 0.0
    %274 = vmatprep.subr.mxu0 0.0
    %275 = vmatpush1.msra.mxu0 0.0
    %276 = vmatprep.subr.mxu0 0.0
    %277 = vmatpush1.msra.mxu0 0.0
    %278 = vmatprep.subr.mxu0 0.0
    %279 = vmatpush1.msra.mxu0 0.0
    %280 = vmatprep.subr.mxu0 0.0
    %281 = vmatpush1.msra.mxu0 0.0
    %282 = vmatprep.subr.mxu0 0.0
    %283 = vmatpush1.msra.mxu0 0.0
    %284 = vmatprep.subr.mxu0 0.0
    %285 = vmatpush1.msra.mxu0 0.0
    %286 = vmatprep.subr.mxu0 0.0
    %287 = vmatpush1.msra.mxu0 0.0
    %288 = vmatprep.subr.mxu0 0.0
    %289 = vmatpush1.msra.mxu0 0.0
    %290 = vmatprep.subr.mxu0 0.0
    %291 = vmatpush1.msra.mxu0 0.0
    %292 = vmatprep.mubr.f32.mxu0 0.0
    %293 = vmatmul.mubr.f32.gmra.mrb[0].mxu0 %v212
    %v294 = vpop.f32.mrb[0].mxu0
    %v295 = vadd.f32 %v174, %v294
    %v296 = vpop.f32.mrb[0].mxu0
    %297 = vmatprep.mubr.f32.mxu0 0.0
    %298 = vmatmul.mubr.f32.gmra.mrb[0].mxu0 %v214
    %v299 = vpop.f32.mrb[0].mxu0
    %v300 = vadd.f32 %v179, %v299
    %v301 = vpop.f32.mrb[0].mxu0
    %302 = vmatprep.mubr.f32.mxu0 0.0
    %303 = vmatmul.mubr.f32.gmra.mrb[0].mxu0 %v216
    %v304 = vpop.f32.mrb[0].mxu0
    %v305 = vadd.f32 %v184, %v304
    %v306 = vpop.f32.mrb[0].mxu0
    %307 = vmatprep.mubr.f32.mxu0 0.0
    %308 = vmatmul.mubr.f32.gmra.mrb[0].mxu0 %v218
    %v309 = vpop.f32.mrb[0].mxu0
    %v310 = vadd.f32 %v189, %v309
    %v311 = vpop.f32.mrb[0].mxu0
    %312 = vmatprep.mubr.f32.mxu0 0.0
    %313 = vmatmul.mubr.f32.gmra.mrb[0].mxu0 %v220
    %v314 = vpop.f32.mrb[0].mxu0
    %v315 = vadd.f32 %v194, %v314
    %v316 = vpop.f32.mrb[0].mxu0
    %317 = vmatprep.mubr.f32.mxu0 0.0
    %318 = vmatmul.mubr.f32.gmra.mrb[0].mxu0 %v222
    %v319 = vpop.f32.mrb[0].mxu0
    %v320 = vadd.f32 %v199, %v319
    %v321 = vpop.f32.mrb[0].mxu0
    %322 = vmatprep.mubr.f32.mxu0 0.0
    %323 = vmatmul.mubr.f32.gmra.mrb[0].mxu0 %v224
    %v324 = vpop.f32.mrb[0].mxu0
    %v325 = vadd.f32 %v204, %v324
    %v326 = vpop.f32.mrb[0].mxu0
    %327 = vmatprep.mubr.f32.mxu0 0.0
    %328 = vmatmul.mubr.f32.gmra.mrb[0].mxu0 %v226
    %v329 = vpop.f32.mrb[0].mxu0
    %v330 = vadd.f32 %v209, %v329
    %v331 = vpop.f32.mrb[0].mxu0
    %332 = vdwg.mxu0
    %s333 = scalar_lea.vmem %s1, 192
    %v334 = vld [vmem:[%s333] sm:$0xff]
    %v335 = vld [vmem:[%s333 + $0x8] sm:$0xff]
    %v336 = vld [vmem:[%s333 + $0x10] sm:$0xff]
    %v337 = vld [vmem:[%s333 + $0x18] sm:$0xff]
    %v338 = vld [vmem:[%s333 + $0x20] sm:$0xff]
    %v339 = vld [vmem:[%s333 + $0x28] sm:$0xff]
    %v340 = vld [vmem:[%s333 + $0x30] sm:$0xff]
    %v341 = vld [vmem:[%s333 + $0x38] sm:$0xff]
    %v342 = vld [vmem:[%s333 + $0x40] sm:$0xff]
    %v343 = vld [vmem:[%s333 + $0x48] sm:$0xff]
    %v344 = vld [vmem:[%s333 + $0x50] sm:$0xff]
    %v345 = vld [vmem:[%s333 + $0x58] sm:$0xff]
    %vm346 = vcmask 1045504
    %v347 = vrot.slane %v33, 2
    %v348 = vrot.slane %v34, 2
    %v349 = vsel %vm346, %v347, %v348
    %v350 = vrot.slane %v35, 2
    %v351 = vsel %vm346, %v348, %v350
    %v352 = vrot.slane %v36, 2
    %v353 = vsel %vm346, %v350, %v352
    %v354 = vrot.slane %v37, 2
    %v355 = vsel %vm346, %v352, %v354
    %v356 = vrot.slane %v38, 2
    %v357 = vsel %vm346, %v354, %v356
    %v358 = vrot.slane %v39, 2
    %v359 = vsel %vm346, %v356, %v358
    %v360 = vrot.slane %v40, 2
    %v361 = vsel %vm346, %v358, %v360
    %v362 = vsel %vm90, %v349, 0
    %v364 = vsel %vm90, %v351, 0
    %v366 = vsel %vm90, %v353, 0
    %v368 = vsel %vm90, %v355, 0
    %v370 = vsel %vm90, %v357, 0
    %v372 = vsel %vm90, %v359, 0
    %v374 = vsel %vm90, %v361, 0
    %v376 = vsel %vm90, %v360, 0
    %378 = vmatprep.subr.mxu0 0.0
    %379 = vmatpush1.msra.mxu0 %v334
    %380 = vmatprep.subr.mxu0 0.0
    %381 = vmatpush1.msra.mxu0 %v335
    %382 = vmatprep.subr.mxu0 0.0
    %383 = vmatpush1.msra.mxu0 %v336
    %384 = vmatprep.subr.mxu0 0.0
    %385 = vmatpush1.msra.mxu0 %v337
    %386 = vmatprep.subr.mxu0 0.0
    %387 = vmatpush1.msra.mxu0 %v338
    %388 = vmatprep.subr.mxu0 0.0
    %389 = vmatpush1.msra.mxu0 %v339
    %390 = vmatprep.subr.mxu0 0.0
    %391 = vmatpush1.msra.mxu0 %v340
    %392 = vmatprep.subr.mxu0 0.0
    %393 = vmatpush1.msra.mxu0 %v341
    %394 = vmatprep.subr.mxu0 0.0
    %395 = vmatpush1.msra.mxu0 %v342
    %396 = vmatprep.subr.mxu0 0.0
    %397 = vmatpush1.msra.mxu0 %v343
    %398 = vmatprep.subr.mxu0 0.0
    %399 = vmatpush1.msra.mxu0 %v344
    %400 = vmatprep.subr.mxu0 0.0
    %401 = vmatpush1.msra.mxu0 %v345
    %402 = vmatprep.subr.mxu0 0.0
    %403 = vmatpush1.msra.mxu0 0.0
    %404 = vmatprep.subr.mxu0 0.0
    %405 = vmatpush1.msra.mxu0 0.0
    %406 = vmatprep.subr.mxu0 0.0
    %407 = vmatpush1.msra.mxu0 0.0
    %408 = vmatprep.subr.mxu0 0.0
    %409 = vmatpush1.msra.mxu0 0.0
    %410 = vmatprep.subr.mxu0 0.0
    %411 = vmatpush1.msra.mxu0 0.0
    %412 = vmatprep.subr.mxu0 0.0
    %413 = vmatpush1.msra.mxu0 0.0
    %414 = vmatprep.subr.mxu0 0.0
    %415 = vmatpush1.msra.mxu0 0.0
    %416 = vmatprep.subr.mxu0 0.0
    %417 = vmatpush1.msra.mxu0 0.0
    %418 = vmatprep.subr.mxu0 0.0
    %419 = vmatpush1.msra.mxu0 0.0
    %420 = vmatprep.subr.mxu0 0.0
    %421 = vmatpush1.msra.mxu0 0.0
    %422 = vmatprep.subr.mxu0 0.0
    %423 = vmatpush1.msra.mxu0 0.0
    %424 = vmatprep.subr.mxu0 0.0
    %425 = vmatpush1.msra.mxu0 0.0
    %426 = vmatprep.subr.mxu0 0.0
    %427 = vmatpush1.msra.mxu0 0.0
    %428 = vmatprep.subr.mxu0 0.0
    %429 = vmatpush1.msra.mxu0 0.0
    %430 = vmatprep.subr.mxu0 0.0
    %431 = vmatpush1.msra.mxu0 0.0
    %432 = vmatprep.subr.mxu0 0.0
    %433 = vmatpush1.msra.mxu0 0.0
    %434 = vmatprep.subr.mxu0 0.0
    %435 = vmatpush1.msra.mxu0 0.0
    %436 = vmatprep.subr.mxu0 0.0
    %437 = vmatpush1.msra.mxu0 0.0
    %438 = vmatprep.subr.mxu0 0.0
    %439 = vmatpush1.msra.mxu0 0.0
    %440 = vmatprep.subr.mxu0 0.0
    %441 = vmatpush1.msra.mxu0 0.0
    %442 = vmatprep.mubr.f32.mxu0 0.0
    %443 = vmatmul.mubr.f32.gmra.mrb[0].mxu0 %v362
    %v444 = vpop.f32.mrb[0].mxu0
    %v445 = vadd.f32 0.0, %v444
    %v446 = vpop.f32.mrb[0].mxu0
    %447 = vmatprep.mubr.f32.mxu0 0.0
    %448 = vmatmul.mubr.f32.gmra.mrb[0].mxu0 %v364
    %v449 = vpop.f32.mrb[0].mxu0
    %v450 = vadd.f32 0.0, %v449
    %v451 = vpop.f32.mrb[0].mxu0
    %452 = vmatprep.mubr.f32.mxu0 0.0
    %453 = vmatmul.mubr.f32.gmra.mrb[0].mxu0 %v366
    %v454 = vpop.f32.mrb[0].mxu0
    %v455 = vadd.f32 0.0, %v454
    %v456 = vpop.f32.mrb[0].mxu0
    %457 = vmatprep.mubr.f32.mxu0 0.0
    %458 = vmatmul.mubr.f32.gmra.mrb[0].mxu0 %v368
    %v459 = vpop.f32.mrb[0].mxu0
    %v460 = vadd.f32 0.0, %v459
    %v461 = vpop.f32.mrb[0].mxu0
    %462 = vmatprep.mubr.f32.mxu0 0.0
    %463 = vmatmul.mubr.f32.gmra.mrb[0].mxu0 %v370
    %v464 = vpop.f32.mrb[0].mxu0
    %v465 = vadd.f32 0.0, %v464
    %v466 = vpop.f32.mrb[0].mxu0
    %467 = vmatprep.mubr.f32.mxu0 0.0
    %468 = vmatmul.mubr.f32.gmra.mrb[0].mxu0 %v372
    %v469 = vpop.f32.mrb[0].mxu0
    %v470 = vadd.f32 0.0, %v469
    %v471 = vpop.f32.mrb[0].mxu0
    %472 = vmatprep.mubr.f32.mxu0 0.0
    %473 = vmatmul.mubr.f32.gmra.mrb[0].mxu0 %v374
    %v474 = vpop.f32.mrb[0].mxu0
    %v475 = vadd.f32 0.0, %v474
    %v476 = vpop.f32.mrb[0].mxu0
    %477 = vmatprep.mubr.f32.mxu0 0.0
    %478 = vmatmul.mubr.f32.gmra.mrb[0].mxu0 %v376
    %v479 = vpop.f32.mrb[0].mxu0
    %v480 = vadd.f32 0.0, %v479
    %v481 = vpop.f32.mrb[0].mxu0
    %482 = vdwg.mxu0
    %v483 = vadd.f32 %v295, %v445
    %v484 = vadd.f32 %v300, %v450
    %v485 = vadd.f32 %v305, %v455
    %v486 = vadd.f32 %v310, %v460
    %v487 = vadd.f32 %v315, %v465
    %v488 = vadd.f32 %v320, %v470
    %v489 = vadd.f32 %v325, %v475
    %v490 = vadd.f32 %v330, %v480
    %v491 = vld [vmem:[%s2] sm:$0x1]
    %v493 = vlaneseq
    %v494 = vshrl.u32 %v493, 7
    %v495 = vsub.s32 0, %v494
    %v496 = vrot.slane %v491, %v495
    %v498 = vadd.f32 %v483, %v496
    %v499 = vadd.f32 %v484, %v496
    %v500 = vadd.f32 %v485, %v496
    %v501 = vadd.f32 %v486, %v496
    %v502 = vadd.f32 %v487, %v496
    %v503 = vadd.f32 %v488, %v496
    %v504 = vadd.f32 %v489, %v496
    %v505 = vadd.f32 %v490, %v496
    %v506 = vmax.f32 %v498, 0.0
    %v507 = vmax.f32 %v499, 0.0
    %v508 = vmax.f32 %v500, 0.0
    %v509 = vmax.f32 %v501, 0.0
    %v510 = vmax.f32 %v502, 0.0
    %v511 = vmax.f32 %v503, 0.0
    %v512 = vmax.f32 %v504, 0.0
    %v513 = vmax.f32 %v505, 0.0
    %v514 = vlaneseq
    %v515 = vshrl.u32 %v514, 7
    %v516 = vadd.s32 %v515, 8
    %v517 = vadd.s32 %v515, 16
    %v518 = vadd.s32 %v515, 24
    %v519 = vlaneseq
    %v520 = vand.u32 %v519, 127
    %v521 = vmul.u32 %v515, 2
    %v522 = vmul.u32 %v516, 2
    %v523 = vmul.u32 %v517, 2
    %v524 = vmul.u32 %v518, 2
    %vm525 = vcmp.eq.s32.totalorder %v520, %v521
    %vm526 = vcmp.eq.s32.totalorder %v520, %v522
    %vm527 = vcmp.eq.s32.totalorder %v520, %v523
    %vm528 = vcmp.eq.s32.totalorder %v520, %v524
    %v529 = vsel %vm525, 1.0, 0.0
    %v530 = vsel %vm526, 1.0, 0.0
    %v531 = vsel %vm527, 1.0, 0.0
    %v532 = vsel %vm528, 1.0, 0.0
    %vm533 = vcmask 506880
    %v535 = vsel %vm533, %v529, 0
    %v538 = vsel %vm533, %v530, 0
    %v541 = vsel %vm533, %v531, 0
    %v544 = vsel %vm533, %v532, 0
    %v547 = vsel %vm346, %v513, 0
    %549 = vmatprep.subr.mxu0 0.0
    %550 = vmatpush1.msra.mxu0 %v506
    %551 = vmatprep.subr.mxu0 0.0
    %552 = vmatpush1.msra.mxu0 %v507
    %553 = vmatprep.subr.mxu0 0.0
    %554 = vmatpush1.msra.mxu0 %v508
    %555 = vmatprep.subr.mxu0 0.0
    %556 = vmatpush1.msra.mxu0 %v509
    %557 = vmatprep.subr.mxu0 0.0
    %558 = vmatpush1.msra.mxu0 %v510
    %559 = vmatprep.subr.mxu0 0.0
    %560 = vmatpush1.msra.mxu0 %v511
    %561 = vmatprep.subr.mxu0 0.0
    %562 = vmatpush1.msra.mxu0 %v512
    %563 = vmatprep.subr.mxu0 0.0
    %564 = vmatpush1.msra.mxu0 %v547
    %565 = vmatprep.subr.mxu0 0.0
    %566 = vmatpush1.msra.mxu0 0.0
    %567 = vmatprep.subr.mxu0 0.0
    %568 = vmatpush1.msra.mxu0 0.0
    %569 = vmatprep.subr.mxu0 0.0
    %570 = vmatpush1.msra.mxu0 0.0
    %571 = vmatprep.subr.mxu0 0.0
    %572 = vmatpush1.msra.mxu0 0.0
    %573 = vmatprep.subr.mxu0 0.0
    %574 = vmatpush1.msra.mxu0 0.0
    %575 = vmatprep.subr.mxu0 0.0
    %576 = vmatpush1.msra.mxu0 0.0
    %577 = vmatprep.subr.mxu0 0.0
    %578 = vmatpush1.msra.mxu0 0.0
    %579 = vmatprep.subr.mxu0 0.0
    %580 = vmatpush1.msra.mxu0 0.0
    %581 = vmatprep.subr.mxu0 0.0
    %582 = vmatpush1.msra.mxu0 0.0
    %583 = vmatprep.subr.mxu0 0.0
    %584 = vmatpush1.msra.mxu0 0.0
    %585 = vmatprep.subr.mxu0 0.0
    %586 = vmatpush1.msra.mxu0 0.0
    %587 = vmatprep.subr.mxu0 0.0
    %588 = vmatpush1.msra.mxu0 0.0
    %589 = vmatprep.subr.mxu0 0.0
    %590 = vmatpush1.msra.mxu0 0.0
    %591 = vmatprep.subr.mxu0 0.0
    %592 = vmatpush1.msra.mxu0 0.0
    %593 = vmatprep.subr.mxu0 0.0
    %594 = vmatpush1.msra.mxu0 0.0
    %595 = vmatprep.subr.mxu0 0.0
    %596 = vmatpush1.msra.mxu0 0.0
    %597 = vmatprep.subr.mxu0 0.0
    %598 = vmatpush1.msra.mxu0 0.0
    %599 = vmatprep.subr.mxu0 0.0
    %600 = vmatpush1.msra.mxu0 0.0
    %601 = vmatprep.subr.mxu0 0.0
    %602 = vmatpush1.msra.mxu0 0.0
    %603 = vmatprep.subr.mxu0 0.0
    %604 = vmatpush1.msra.mxu0 0.0
    %605 = vmatprep.subr.mxu0 0.0
    %606 = vmatpush1.msra.mxu0 0.0
    %607 = vmatprep.subr.mxu0 0.0
    %608 = vmatpush1.msra.mxu0 0.0
    %609 = vmatprep.subr.mxu0 0.0
    %610 = vmatpush1.msra.mxu0 0.0
    %611 = vmatprep.subr.mxu0 0.0
    %612 = vmatpush1.msra.mxu0 0.0
    %613 = vmatprep.mubr.f32.mxu0 0.0
    %614 = vmatmul.mubr.f32.gmra.mrb[0].mxu0 %v535
    %v615 = vpop.f32.mrb[0].mxu0
    %v616 = vadd.f32 0.0, %v615
    %v617 = vpop.f32.mrb[0].mxu0
    %618 = vmatprep.mubr.f32.mxu0 0.0
    %619 = vmatmul.mubr.f32.gmra.mrb[0].mxu0 %v538
    %v620 = vpop.f32.mrb[0].mxu0
    %v621 = vadd.f32 0.0, %v620
    %v622 = vpop.f32.mrb[0].mxu0
    %623 = vmatprep.mubr.f32.mxu0 0.0
    %624 = vmatmul.mubr.f32.gmra.mrb[0].mxu0 %v541
    %v625 = vpop.f32.mrb[0].mxu0
    %v626 = vadd.f32 0.0, %v625
    %v627 = vpop.f32.mrb[0].mxu0
    %628 = vmatprep.mubr.f32.mxu0 0.0
    %629 = vmatmul.mubr.f32.gmra.mrb[0].mxu0 %v544
    %v630 = vpop.f32.mrb[0].mxu0
    %v631 = vadd.f32 0.0, %v630
    %v632 = vpop.f32.mrb[0].mxu0
    %633 = vdwg.mxu0
    %v634 = vadd.s32 %v521, 1
    %v635 = vadd.s32 %v522, 1
    %v636 = vadd.s32 %v523, 1
    %v637 = vadd.s32 %v524, 1
    %vm638 = vcmp.eq.s32.totalorder %v520, %v634
    %vm639 = vcmp.eq.s32.totalorder %v520, %v635
    %vm640 = vcmp.eq.s32.totalorder %v520, %v636
    %vm641 = vcmp.eq.s32.totalorder %v520, %v637
    %v642 = vsel %vm638, 1.0, 0.0
    %v643 = vsel %vm639, 1.0, 0.0
    %v644 = vsel %vm640, 1.0, 0.0
    %v645 = vsel %vm641, 1.0, 0.0
    %v647 = vsel %vm533, %v642, 0
    %v650 = vsel %vm533, %v643, 0
    %v653 = vsel %vm533, %v644, 0
    %v656 = vsel %vm533, %v645, 0
    %658 = vmatprep.subr.mxu0 0.0
    %659 = vmatpush1.msra.mxu0 %v506
    %660 = vmatprep.subr.mxu0 0.0
    %661 = vmatpush1.msra.mxu0 %v507
    %662 = vmatprep.subr.mxu0 0.0
    %663 = vmatpush1.msra.mxu0 %v508
    %664 = vmatprep.subr.mxu0 0.0
    %665 = vmatpush1.msra.mxu0 %v509
    %666 = vmatprep.subr.mxu0 0.0
    %667 = vmatpush1.msra.mxu0 %v510
    %668 = vmatprep.subr.mxu0 0.0
    %669 = vmatpush1.msra.mxu0 %v511
    %670 = vmatprep.subr.mxu0 0.0
    %671 = vmatpush1.msra.mxu0 %v512
    %672 = vmatprep.subr.mxu0 0.0
    %673 = vmatpush1.msra.mxu0 %v547
    %674 = vmatprep.subr.mxu0 0.0
    %675 = vmatpush1.msra.mxu0 0.0
    %676 = vmatprep.subr.mxu0 0.0
    %677 = vmatpush1.msra.mxu0 0.0
    %678 = vmatprep.subr.mxu0 0.0
    %679 = vmatpush1.msra.mxu0 0.0
    %680 = vmatprep.subr.mxu0 0.0
    %681 = vmatpush1.msra.mxu0 0.0
    %682 = vmatprep.subr.mxu0 0.0
    %683 = vmatpush1.msra.mxu0 0.0
    %684 = vmatprep.subr.mxu0 0.0
    %685 = vmatpush1.msra.mxu0 0.0
    %686 = vmatprep.subr.mxu0 0.0
    %687 = vmatpush1.msra.mxu0 0.0
    %688 = vmatprep.subr.mxu0 0.0
    %689 = vmatpush1.msra.mxu0 0.0
    %690 = vmatprep.subr.mxu0 0.0
    %691 = vmatpush1.msra.mxu0 0.0
    %692 = vmatprep.subr.mxu0 0.0
    %693 = vmatpush1.msra.mxu0 0.0
    %694 = vmatprep.subr.mxu0 0.0
    %695 = vmatpush1.msra.mxu0 0.0
    %696 = vmatprep.subr.mxu0 0.0
    %697 = vmatpush1.msra.mxu0 0.0
    %698 = vmatprep.subr.mxu0 0.0
    %699 = vmatpush1.msra.mxu0 0.0
    %700 = vmatprep.subr.mxu0 0.0
    %701 = vmatpush1.msra.mxu0 0.0
    %702 = vmatprep.subr.mxu0 0.0
    %703 = vmatpush1.msra.mxu0 0.0
    %704 = vmatprep.subr.mxu0 0.0
    %705 = vmatpush1.msra.mxu0 0.0
    %706 = vmatprep.subr.mxu0 0.0
    %707 = vmatpush1.msra.mxu0 0.0
    %708 = vmatprep.subr.mxu0 0.0
    %709 = vmatpush1.msra.mxu0 0.0
    %710 = vmatprep.subr.mxu0 0.0
    %711 = vmatpush1.msra.mxu0 0.0
    %712 = vmatprep.subr.mxu0 0.0
    %713 = vmatpush1.msra.mxu0 0.0
    %714 = vmatprep.subr.mxu0 0.0
    %715 = vmatpush1.msra.mxu0 0.0
    %716 = vmatprep.subr.mxu0 0.0
    %717 = vmatpush1.msra.mxu0 0.0
    %718 = vmatprep.subr.mxu0 0.0
    %719 = vmatpush1.msra.mxu0 0.0
    %720 = vmatprep.subr.mxu0 0.0
    %721 = vmatpush1.msra.mxu0 0.0
    %722 = vmatprep.mubr.f32.mxu0 0.0
    %723 = vmatmul.mubr.f32.gmra.mrb[0].mxu0 %v647
    %v724 = vpop.f32.mrb[0].mxu0
    %v725 = vadd.f32 0.0, %v724
    %v726 = vpop.f32.mrb[0].mxu0
    %727 = vmatprep.mubr.f32.mxu0 0.0
    %728 = vmatmul.mubr.f32.gmra.mrb[0].mxu0 %v650
    %v729 = vpop.f32.mrb[0].mxu0
    %v730 = vadd.f32 0.0, %v729
    %v731 = vpop.f32.mrb[0].mxu0
    %732 = vmatprep.mubr.f32.mxu0 0.0
    %733 = vmatmul.mubr.f32.gmra.mrb[0].mxu0 %v653
    %v734 = vpop.f32.mrb[0].mxu0
    %v735 = vadd.f32 0.0, %v734
    %v736 = vpop.f32.mrb[0].mxu0
    %737 = vmatprep.mubr.f32.mxu0 0.0
    %738 = vmatmul.mubr.f32.gmra.mrb[0].mxu0 %v656
    %v739 = vpop.f32.mrb[0].mxu0
    %v740 = vadd.f32 0.0, %v739
    %v741 = vpop.f32.mrb[0].mxu0
    %742 = vdwg.mxu0
    %v743 = vmax.f32 %v616, %v725
    %v744 = vmax.f32 %v621, %v730
    %v745 = vmax.f32 %v626, %v735
    %v746 = vmax.f32 %v631, %v740
    %751 = vrot.lane.b32.xlu0 %v743, 124
    %v752 = vpop.permute.xlu0 %751
    %753 = vrot.lane.b32.xlu0 %v744, 124
    %v754 = vpop.permute.xlu0 %753
    %755 = vrot.lane.b32.xlu0 %v745, 124
    %v756 = vpop.permute.xlu0 %755
    %757 = vrot.lane.b32.xlu0 %v746, 124
    %v758 = vpop.permute.xlu0 %757
    %v763 = vmax.f32 %v743, %v752
    %v764 = vmax.f32 %v744, %v754
    %v765 = vmax.f32 %v745, %v756
    %v766 = vmax.f32 %v746, %v758
    %v767 = vld [vmem:[%s3] sm:$0xff]
    %v768 = vld [vmem:[%s3 + $0x8] sm:$0xff]
    %v769 = vld [vmem:[%s3 + $0x10] sm:$0xff]
    %v770 = vld [vmem:[%s3 + $0x18] sm:$0xff]
    %v771 = vld [vmem:[%s3 + $0x20] sm:$0xff]
    %v772 = vld [vmem:[%s3 + $0x28] sm:$0xff]
    %v773 = vld [vmem:[%s3 + $0x30] sm:$0xff]
    %v774 = vld [vmem:[%s3 + $0x38] sm:$0xff]
    %v775 = vld [vmem:[%s3 + $0x40] sm:$0xff]
    %v776 = vld [vmem:[%s3 + $0x48] sm:$0xff]
    %v777 = vld [vmem:[%s3 + $0x50] sm:$0xff]
    %v778 = vld [vmem:[%s3 + $0x58] sm:$0xff]
    %v779 = vld [vmem:[%s3 + $0x60] sm:$0xff]
    %v780 = vld [vmem:[%s3 + $0x68] sm:$0xff]
    %v781 = vld [vmem:[%s3 + $0x70] sm:$0xf]
    %s782 = scalar_lea.vmem %s3, 120
    %v783 = vld [vmem:[%s782] sm:$0xff]
    %v784 = vld [vmem:[%s782 + $0x8] sm:$0xff]
    %v785 = vld [vmem:[%s782 + $0x10] sm:$0xff]
    %v786 = vld [vmem:[%s782 + $0x18] sm:$0xff]
    %v787 = vld [vmem:[%s782 + $0x20] sm:$0xff]
    %v788 = vld [vmem:[%s782 + $0x28] sm:$0xff]
    %v789 = vld [vmem:[%s782 + $0x30] sm:$0xff]
    %v790 = vld [vmem:[%s782 + $0x38] sm:$0xff]
    %v791 = vld [vmem:[%s782 + $0x40] sm:$0xff]
    %v792 = vld [vmem:[%s782 + $0x48] sm:$0xff]
    %v793 = vld [vmem:[%s782 + $0x50] sm:$0xff]
    %v794 = vld [vmem:[%s782 + $0x58] sm:$0xff]
    %v795 = vld [vmem:[%s782 + $0x60] sm:$0xff]
    %v796 = vld [vmem:[%s782 + $0x68] sm:$0xff]
    %v797 = vld [vmem:[%s782 + $0x70] sm:$0xf]
    %v802 = vrot.slane %v763, 1
    %v803 = vrot.slane %v764, 1
    %v804 = vsel %vm74, %v802, %v803
    %v805 = vrot.slane %v765, 1
    %v806 = vsel %vm74, %v803, %v805
    %v807 = vrot.slane %v766, 1
    %v808 = vsel %vm74, %v805, %v807
    %vm809 = vcmask 949248
    %v810 = vsel %vm809, %v804, 0
    %v812 = vsel %vm809, %v806, 0
    %v814 = vsel %vm809, %v808, 0
    %v816 = vsel %vm809, %v807, 0
    %vm818 = vcmask 1043456
    %v820 = vsel %vm818, %v797, 0
    %822 = vmatprep.subr.mxu0 0.0
    %823 = vmatpush1.msra.mxu0 %v783
    %824 = vmatprep.subr.mxu0 0.0
    %825 = vmatpush1.msra.mxu0 %v784
    %826 = vmatprep.subr.mxu0 0.0
    %827 = vmatpush1.msra.mxu0 %v785
    %828 = vmatprep.subr.mxu0 0.0
    %829 = vmatpush1.msra.mxu0 %v786
    %830 = vmatprep.subr.mxu0 0.0
    %831 = vmatpush1.msra.mxu0 %v787
    %832 = vmatprep.subr.mxu0 0.0
    %833 = vmatpush1.msra.mxu0 %v788
    %834 = vmatprep.subr.mxu0 0.0
    %835 = vmatpush1.msra.mxu0 %v789
    %836 = vmatprep.subr.mxu0 0.0
    %837 = vmatpush1.msra.mxu0 %v790
    %838 = vmatprep.subr.mxu0 0.0
    %839 = vmatpush1.msra.mxu0 %v791
    %840 = vmatprep.subr.mxu0 0.0
    %841 = vmatpush1.msra.mxu0 %v792
    %842 = vmatprep.subr.mxu0 0.0
    %843 = vmatpush1.msra.mxu0 %v793
    %844 = vmatprep.subr.mxu0 0.0
    %845 = vmatpush1.msra.mxu0 %v794
    %846 = vmatprep.subr.mxu0 0.0
    %847 = vmatpush1.msra.mxu0 %v795
    %848 = vmatprep.subr.mxu0 0.0
    %849 = vmatpush1.msra.mxu0 %v796
    %850 = vmatprep.subr.mxu0 0.0
    %851 = vmatpush1.msra.mxu0 %v820
    %852 = vmatprep.subr.mxu0 0.0
    %853 = vmatpush1.msra.mxu0 0.0
    %854 = vmatprep.subr.mxu0 0.0
    %855 = vmatpush1.msra.mxu0 0.0
    %856 = vmatprep.subr.mxu0 0.0
    %857 = vmatpush1.msra.mxu0 0.0
    %858 = vmatprep.subr.mxu0 0.0
    %859 = vmatpush1.msra.mxu0 0.0
    %860 = vmatprep.subr.mxu0 0.0
    %861 = vmatpush1.msra.mxu0 0.0
    %862 = vmatprep.subr.mxu0 0.0
    %863 = vmatpush1.msra.mxu0 0.0
    %864 = vmatprep.subr.mxu0 0.0
    %865 = vmatpush1.msra.mxu0 0.0
    %866 = vmatprep.subr.mxu0 0.0
    %867 = vmatpush1.msra.mxu0 0.0
    %868 = vmatprep.subr.mxu0 0.0
    %869 = vmatpush1.msra.mxu0 0.0
    %870 = vmatprep.subr.mxu0 0.0
    %871 = vmatpush1.msra.mxu0 0.0
    %872 = vmatprep.subr.mxu0 0.0
    %873 = vmatpush1.msra.mxu0 0.0
    %874 = vmatprep.subr.mxu0 0.0
    %875 = vmatpush1.msra.mxu0 0.0
    %876 = vmatprep.subr.mxu0 0.0
    %877 = vmatpush1.msra.mxu0 0.0
    %878 = vmatprep.subr.mxu0 0.0
    %879 = vmatpush1.msra.mxu0 0.0
    %880 = vmatprep.subr.mxu0 0.0
    %881 = vmatpush1.msra.mxu0 0.0
    %882 = vmatprep.subr.mxu0 0.0
    %883 = vmatpush1.msra.mxu0 0.0
    %884 = vmatprep.subr.mxu0 0.0
    %885 = vmatpush1.msra.mxu0 0.0
    %886 = vmatprep.mubr.f32.mxu0 0.0
    %887 = vmatmul.mubr.f32.gmra.mrb[0].mxu0 %v810
    %v888 = vpop.f32.mrb[0].mxu0
    %v889 = vadd.f32 0.0, %v888
    %v890 = vpop.f32.mrb[0].mxu0
    %891 = vmatprep.mubr.f32.mxu0 0.0
    %892 = vmatmul.mubr.f32.gmra.mrb[0].mxu0 %v812
    %v893 = vpop.f32.mrb[0].mxu0
    %v894 = vadd.f32 0.0, %v893
    %v895 = vpop.f32.mrb[0].mxu0
    %896 = vmatprep.mubr.f32.mxu0 0.0
    %897 = vmatmul.mubr.f32.gmra.mrb[0].mxu0 %v814
    %v898 = vpop.f32.mrb[0].mxu0
    %v899 = vadd.f32 0.0, %v898
    %v900 = vpop.f32.mrb[0].mxu0
    %901 = vmatprep.mubr.f32.mxu0 0.0
    %902 = vmatmul.mubr.f32.gmra.mrb[0].mxu0 %v816
    %v903 = vpop.f32.mrb[0].mxu0
    %v904 = vadd.f32 0.0, %v903
    %v905 = vpop.f32.mrb[0].mxu0
    %906 = vdwg.mxu0
    %v907 = vsel %vm809, %v763, 0
    %v909 = vsel %vm809, %v764, 0
    %v911 = vsel %vm809, %v765, 0
    %v913 = vsel %vm809, %v766, 0
    %v916 = vsel %vm818, %v781, 0
    %918 = vmatprep.subr.mxu0 0.0
    %919 = vmatpush1.msra.mxu0 %v767
    %920 = vmatprep.subr.mxu0 0.0
    %921 = vmatpush1.msra.mxu0 %v768
    %922 = vmatprep.subr.mxu0 0.0
    %923 = vmatpush1.msra.mxu0 %v769
    %924 = vmatprep.subr.mxu0 0.0
    %925 = vmatpush1.msra.mxu0 %v770
    %926 = vmatprep.subr.mxu0 0.0
    %927 = vmatpush1.msra.mxu0 %v771
    %928 = vmatprep.subr.mxu0 0.0
    %929 = vmatpush1.msra.mxu0 %v772
    %930 = vmatprep.subr.mxu0 0.0
    %931 = vmatpush1.msra.mxu0 %v773
    %932 = vmatprep.subr.mxu0 0.0
    %933 = vmatpush1.msra.mxu0 %v774
    %934 = vmatprep.subr.mxu0 0.0
    %935 = vmatpush1.msra.mxu0 %v775
    %936 = vmatprep.subr.mxu0 0.0
    %937 = vmatpush1.msra.mxu0 %v776
    %938 = vmatprep.subr.mxu0 0.0
    %939 = vmatpush1.msra.mxu0 %v777
    %940 = vmatprep.subr.mxu0 0.0
    %941 = vmatpush1.msra.mxu0 %v778
    %942 = vmatprep.subr.mxu0 0.0
    %943 = vmatpush1.msra.mxu0 %v779
    %944 = vmatprep.subr.mxu0 0.0
    %945 = vmatpush1.msra.mxu0 %v780
    %946 = vmatprep.subr.mxu0 0.0
    %947 = vmatpush1.msra.mxu0 %v916
    %948 = vmatprep.subr.mxu0 0.0
    %949 = vmatpush1.msra.mxu0 0.0
    %950 = vmatprep.subr.mxu0 0.0
    %951 = vmatpush1.msra.mxu0 0.0
    %952 = vmatprep.subr.mxu0 0.0
    %953 = vmatpush1.msra.mxu0 0.0
    %954 = vmatprep.subr.mxu0 0.0
    %955 = vmatpush1.msra.mxu0 0.0
    %956 = vmatprep.subr.mxu0 0.0
    %957 = vmatpush1.msra.mxu0 0.0
    %958 = vmatprep.subr.mxu0 0.0
    %959 = vmatpush1.msra.mxu0 0.0
    %960 = vmatprep.subr.mxu0 0.0
    %961 = vmatpush1.msra.mxu0 0.0
    %962 = vmatprep.subr.mxu0 0.0
    %963 = vmatpush1.msra.mxu0 0.0
    %964 = vmatprep.subr.mxu0 0.0
    %965 = vmatpush1.msra.mxu0 0.0
    %966 = vmatprep.subr.mxu0 0.0
    %967 = vmatpush1.msra.mxu0 0.0
    %968 = vmatprep.subr.mxu0 0.0
    %969 = vmatpush1.msra.mxu0 0.0
    %970 = vmatprep.subr.mxu0 0.0
    %971 = vmatpush1.msra.mxu0 0.0
    %972 = vmatprep.subr.mxu0 0.0
    %973 = vmatpush1.msra.mxu0 0.0
    %974 = vmatprep.subr.mxu0 0.0
    %975 = vmatpush1.msra.mxu0 0.0
    %976 = vmatprep.subr.mxu0 0.0
    %977 = vmatpush1.msra.mxu0 0.0
    %978 = vmatprep.subr.mxu0 0.0
    %979 = vmatpush1.msra.mxu0 0.0
    %980 = vmatprep.subr.mxu0 0.0
    %981 = vmatpush1.msra.mxu0 0.0
    %982 = vmatprep.mubr.f32.mxu0 0.0
    %983 = vmatmul.mubr.f32.gmra.mrb[0].mxu0 %v907
    %v984 = vpop.f32.mrb[0].mxu0
    %v985 = vadd.f32 %v889, %v984
    %v986 = vpop.f32.mrb[0].mxu0
    %987 = vmatprep.mubr.f32.mxu0 0.0
    %988 = vmatmul.mubr.f32.gmra.mrb[0].mxu0 %v909
    %v989 = vpop.f32.mrb[0].mxu0
    %v990 = vadd.f32 %v894, %v989
    %v991 = vpop.f32.mrb[0].mxu0
    %992 = vmatprep.mubr.f32.mxu0 0.0
    %993 = vmatmul.mubr.f32.gmra.mrb[0].mxu0 %v911
    %v994 = vpop.f32.mrb[0].mxu0
    %v995 = vadd.f32 %v899, %v994
    %v996 = vpop.f32.mrb[0].mxu0
    %997 = vmatprep.mubr.f32.mxu0 0.0
    %998 = vmatmul.mubr.f32.gmra.mrb[0].mxu0 %v913
    %v999 = vpop.f32.mrb[0].mxu0
    %v1000 = vadd.f32 %v904, %v999
    %v1001 = vpop.f32.mrb[0].mxu0
    %1002 = vdwg.mxu0
    %s1003 = scalar_lea.vmem %s3, 240
    %v1004 = vld [vmem:[%s1003] sm:$0xff]
    %v1005 = vld [vmem:[%s1003 + $0x8] sm:$0xff]
    %v1006 = vld [vmem:[%s1003 + $0x10] sm:$0xff]
    %v1007 = vld [vmem:[%s1003 + $0x18] sm:$0xff]
    %v1008 = vld [vmem:[%s1003 + $0x20] sm:$0xff]
    %v1009 = vld [vmem:[%s1003 + $0x28] sm:$0xff]
    %v1010 = vld [vmem:[%s1003 + $0x30] sm:$0xff]
    %v1011 = vld [vmem:[%s1003 + $0x38] sm:$0xff]
    %v1012 = vld [vmem:[%s1003 + $0x40] sm:$0xff]
    %v1013 = vld [vmem:[%s1003 + $0x48] sm:$0xff]
    %v1014 = vld [vmem:[%s1003 + $0x50] sm:$0xff]
    %v1015 = vld [vmem:[%s1003 + $0x58] sm:$0xff]
    %v1016 = vld [vmem:[%s1003 + $0x60] sm:$0xff]
    %v1017 = vld [vmem:[%s1003 + $0x68] sm:$0xff]
    %v1018 = vld [vmem:[%s1003 + $0x70] sm:$0xf]
    %v1019 = vrot.slane %v763, 2
    %v1020 = vrot.slane %v764, 2
    %v1021 = vsel %vm346, %v1019, %v1020
    %v1022 = vrot.slane %v765, 2
    %v1023 = vsel %vm346, %v1020, %v1022
    %v1024 = vrot.slane %v766, 2
    %v1025 = vsel %vm346, %v1022, %v1024
    %v1026 = vsel %vm809, %v1021, 0
    %v1028 = vsel %vm809, %v1023, 0
    %v1030 = vsel %vm809, %v1025, 0
    %v1032 = vsel %vm809, %v1024, 0
    %v1035 = vsel %vm818, %v1018, 0
    %1037 = vmatprep.subr.mxu0 0.0
    %1038 = vmatpush1.msra.mxu0 %v1004
    %1039 = vmatprep.subr.mxu0 0.0
    %1040 = vmatpush1.msra.mxu0 %v1005
    %1041 = vmatprep.subr.mxu0 0.0
    %1042 = vmatpush1.msra.mxu0 %v1006
    %1043 = vmatprep.subr.mxu0 0.0
    %1044 = vmatpush1.msra.mxu0 %v1007
    %1045 = vmatprep.subr.mxu0 0.0
    %1046 = vmatpush1.msra.mxu0 %v1008
    %1047 = vmatprep.subr.mxu0 0.0
    %1048 = vmatpush1.msra.mxu0 %v1009
    %1049 = vmatprep.subr.mxu0 0.0
    %1050 = vmatpush1.msra.mxu0 %v1010
    %1051 = vmatprep.subr.mxu0 0.0
    %1052 = vmatpush1.msra.mxu0 %v1011
    %1053 = vmatprep.subr.mxu0 0.0
    %1054 = vmatpush1.msra.mxu0 %v1012
    %1055 = vmatprep.subr.mxu0 0.0
    %1056 = vmatpush1.msra.mxu0 %v1013
    %1057 = vmatprep.subr.mxu0 0.0
    %1058 = vmatpush1.msra.mxu0 %v1014
    %1059 = vmatprep.subr.mxu0 0.0
    %1060 = vmatpush1.msra.mxu0 %v1015
    %1061 = vmatprep.subr.mxu0 0.0
    %1062 = vmatpush1.msra.mxu0 %v1016
    %1063 = vmatprep.subr.mxu0 0.0
    %1064 = vmatpush1.msra.mxu0 %v1017
    %1065 = vmatprep.subr.mxu0 0.0
    %1066 = vmatpush1.msra.mxu0 %v1035
    %1067 = vmatprep.subr.mxu0 0.0
    %1068 = vmatpush1.msra.mxu0 0.0
    %1069 = vmatprep.subr.mxu0 0.0
    %1070 = vmatpush1.msra.mxu0 0.0
    %1071 = vmatprep.subr.mxu0 0.0
    %1072 = vmatpush1.msra.mxu0 0.0
    %1073 = vmatprep.subr.mxu0 0.0
    %1074 = vmatpush1.msra.mxu0 0.0
    %1075 = vmatprep.subr.mxu0 0.0
    %1076 = vmatpush1.msra.mxu0 0.0
    %1077 = vmatprep.subr.mxu0 0.0
    %1078 = vmatpush1.msra.mxu0 0.0
    %1079 = vmatprep.subr.mxu0 0.0
    %1080 = vmatpush1.msra.mxu0 0.0
    %1081 = vmatprep.subr.mxu0 0.0
    %1082 = vmatpush1.msra.mxu0 0.0
    %1083 = vmatprep.subr.mxu0 0.0
    %1084 = vmatpush1.msra.mxu0 0.0
    %1085 = vmatprep.subr.mxu0 0.0
    %1086 = vmatpush1.msra.mxu0 0.0
    %1087 = vmatprep.subr.mxu0 0.0
    %1088 = vmatpush1.msra.mxu0 0.0
    %1089 = vmatprep.subr.mxu0 0.0
    %1090 = vmatpush1.msra.mxu0 0.0
    %1091 = vmatprep.subr.mxu0 0.0
    %1092 = vmatpush1.msra.mxu0 0.0
    %1093 = vmatprep.subr.mxu0 0.0
    %1094 = vmatpush1.msra.mxu0 0.0
    %1095 = vmatprep.subr.mxu0 0.0
    %1096 = vmatpush1.msra.mxu0 0.0
    %1097 = vmatprep.subr.mxu0 0.0
    %1098 = vmatpush1.msra.mxu0 0.0
    %1099 = vmatprep.subr.mxu0 0.0
    %1100 = vmatpush1.msra.mxu0 0.0
    %1101 = vmatprep.mubr.f32.mxu0 0.0
    %1102 = vmatmul.mubr.f32.gmra.mrb[0].mxu0 %v1026
    %v1103 = vpop.f32.mrb[0].mxu0
    %v1104 = vadd.f32 0.0, %v1103
    %v1105 = vpop.f32.mrb[0].mxu0
    %1106 = vmatprep.mubr.f32.mxu0 0.0
    %1107 = vmatmul.mubr.f32.gmra.mrb[0].mxu0 %v1028
    %v1108 = vpop.f32.mrb[0].mxu0
    %v1109 = vadd.f32 0.0, %v1108
    %v1110 = vpop.f32.mrb[0].mxu0
    %1111 = vmatprep.mubr.f32.mxu0 0.0
    %1112 = vmatmul.mubr.f32.gmra.mrb[0].mxu0 %v1030
    %v1113 = vpop.f32.mrb[0].mxu0
    %v1114 = vadd.f32 0.0, %v1113
    %v1115 = vpop.f32.mrb[0].mxu0
    %1116 = vmatprep.mubr.f32.mxu0 0.0
    %1117 = vmatmul.mubr.f32.gmra.mrb[0].mxu0 %v1032
    %v1118 = vpop.f32.mrb[0].mxu0
    %v1119 = vadd.f32 0.0, %v1118
    %v1120 = vpop.f32.mrb[0].mxu0
    %1121 = vdwg.mxu0
    %v1122 = vadd.f32 %v985, %v1104
    %v1123 = vadd.f32 %v990, %v1109
    %v1124 = vadd.f32 %v995, %v1114
    %v1125 = vadd.f32 %v1000, %v1119
    %v1126 = vld [vmem:[%s4] sm:$0x1]
    %v1128 = vlaneseq
    %v1129 = vshrl.u32 %v1128, 7
    %v1130 = vsub.s32 0, %v1129
    %v1131 = vrot.slane %v1126, %v1130
    %v1133 = vadd.f32 %v1122, %v1131
    %v1134 = vadd.f32 %v1123, %v1131
    %v1135 = vadd.f32 %v1124, %v1131
    %v1136 = vadd.f32 %v1125, %v1131
    %v1137 = vmax.f32 %v1133, 0.0
    %v1138 = vmax.f32 %v1134, 0.0
    %v1139 = vmax.f32 %v1135, 0.0
    %v1140 = vmax.f32 %v1136, 0.0
    %v1141 = vmul.u32 %v515, 16
    %vm1142 = vcmp.eq.s32.totalorder %v520, %v1141
    %v1143 = vsel %vm1142, 1.0, 0.0
    %vm1144 = vcmask 244736
    %v1146 = vsel %vm1144, %v1143, 0
    %v1149 = vsel %vm346, %v1140, 0
    %1151 = vmatprep.subr.mxu0 0.0
    %1152 = vmatpush1.msra.mxu0 %v1137
    %1153 = vmatprep.subr.mxu0 0.0
    %1154 = vmatpush1.msra.mxu0 %v1138
    %1155 = vmatprep.subr.mxu0 0.0
    %1156 = vmatpush1.msra.mxu0 %v1139
    %1157 = vmatprep.subr.mxu0 0.0
    %1158 = vmatpush1.msra.mxu0 %v1149
    %1159 = vmatprep.subr.mxu0 0.0
    %1160 = vmatpush1.msra.mxu0 0.0
    %1161 = vmatprep.subr.mxu0 0.0
    %1162 = vmatpush1.msra.mxu0 0.0
    %1163 = vmatprep.subr.mxu0 0.0
    %1164 = vmatpush1.msra.mxu0 0.0
    %1165 = vmatprep.subr.mxu0 0.0
    %1166 = vmatpush1.msra.mxu0 0.0
    %1167 = vmatprep.subr.mxu0 0.0
    %1168 = vmatpush1.msra.mxu0 0.0
    %1169 = vmatprep.subr.mxu0 0.0
    %1170 = vmatpush1.msra.mxu0 0.0
    %1171 = vmatprep.subr.mxu0 0.0
    %1172 = vmatpush1.msra.mxu0 0.0
    %1173 = vmatprep.subr.mxu0 0.0
    %1174 = vmatpush1.msra.mxu0 0.0
    %1175 = vmatprep.subr.mxu0 0.0
    %1176 = vmatpush1.msra.mxu0 0.0
    %1177 = vmatprep.subr.mxu0 0.0
    %1178 = vmatpush1.msra.mxu0 0.0
    %1179 = vmatprep.subr.mxu0 0.0
    %1180 = vmatpush1.msra.mxu0 0.0
    %1181 = vmatprep.subr.mxu0 0.0
    %1182 = vmatpush1.msra.mxu0 0.0
    %1183 = vmatprep.subr.mxu0 0.0
    %1184 = vmatpush1.msra.mxu0 0.0
    %1185 = vmatprep.subr.mxu0 0.0
    %1186 = vmatpush1.msra.mxu0 0.0
    %1187 = vmatprep.subr.mxu0 0.0
    %1188 = vmatpush1.msra.mxu0 0.0
    %1189 = vmatprep.subr.mxu0 0.0
    %1190 = vmatpush1.msra.mxu0 0.0
    %1191 = vmatprep.subr.mxu0 0.0
    %1192 = vmatpush1.msra.mxu0 0.0
    %1193 = vmatprep.subr.mxu0 0.0
    %1194 = vmatpush1.msra.mxu0 0.0
    %1195 = vmatprep.subr.mxu0 0.0
    %1196 = vmatpush1.msra.mxu0 0.0
    %1197 = vmatprep.subr.mxu0 0.0
    %1198 = vmatpush1.msra.mxu0 0.0
    %1199 = vmatprep.subr.mxu0 0.0
    %1200 = vmatpush1.msra.mxu0 0.0
    %1201 = vmatprep.subr.mxu0 0.0
    %1202 = vmatpush1.msra.mxu0 0.0
    %1203 = vmatprep.subr.mxu0 0.0
    %1204 = vmatpush1.msra.mxu0 0.0
    %1205 = vmatprep.subr.mxu0 0.0
    %1206 = vmatpush1.msra.mxu0 0.0
    %1207 = vmatprep.subr.mxu0 0.0
    %1208 = vmatpush1.msra.mxu0 0.0
    %1209 = vmatprep.subr.mxu0 0.0
    %1210 = vmatpush1.msra.mxu0 0.0
    %1211 = vmatprep.subr.mxu0 0.0
    %1212 = vmatpush1.msra.mxu0 0.0
    %1213 = vmatprep.subr.mxu0 0.0
    %1214 = vmatpush1.msra.mxu0 0.0
    %1215 = vmatprep.mubr.f32.mxu0 0.0
    %1216 = vmatmul.mubr.f32.gmra.mrb[0].mxu0 %v1146
    %v1217 = vpop.f32.mrb[0].mxu0
    %v1218 = vadd.f32 0.0, %v1217
    %v1219 = vpop.f32.mrb[0].mxu0
    %1220 = vdwg.mxu0
    %v1221 = vadd.s32 %v1141, 1
    %vm1222 = vcmp.eq.s32.totalorder %v520, %v1221
    %v1223 = vsel %vm1222, 1.0, 0.0
    %v1225 = vsel %vm1144, %v1223, 0
    %1227 = vmatprep.subr.mxu0 0.0
    %1228 = vmatpush1.msra.mxu0 %v1137
    %1229 = vmatprep.subr.mxu0 0.0
    %1230 = vmatpush1.msra.mxu0 %v1138
    %1231 = vmatprep.subr.mxu0 0.0
    %1232 = vmatpush1.msra.mxu0 %v1139
    %1233 = vmatprep.subr.mxu0 0.0
    %1234 = vmatpush1.msra.mxu0 %v1149
    %1235 = vmatprep.subr.mxu0 0.0
    %1236 = vmatpush1.msra.mxu0 0.0
    %1237 = vmatprep.subr.mxu0 0.0
    %1238 = vmatpush1.msra.mxu0 0.0
    %1239 = vmatprep.subr.mxu0 0.0
    %1240 = vmatpush1.msra.mxu0 0.0
    %1241 = vmatprep.subr.mxu0 0.0
    %1242 = vmatpush1.msra.mxu0 0.0
    %1243 = vmatprep.subr.mxu0 0.0
    %1244 = vmatpush1.msra.mxu0 0.0
    %1245 = vmatprep.subr.mxu0 0.0
    %1246 = vmatpush1.msra.mxu0 0.0
    %1247 = vmatprep.subr.mxu0 0.0
    %1248 = vmatpush1.msra.mxu0 0.0
    %1249 = vmatprep.subr.mxu0 0.0
    %1250 = vmatpush1.msra.mxu0 0.0
    %1251 = vmatprep.subr.mxu0 0.0
    %1252 = vmatpush1.msra.mxu0 0.0
    %1253 = vmatprep.subr.mxu0 0.0
    %1254 = vmatpush1.msra.mxu0 0.0
    %1255 = vmatprep.subr.mxu0 0.0
    %1256 = vmatpush1.msra.mxu0 0.0
    %1257 = vmatprep.subr.mxu0 0.0
    %1258 = vmatpush1.msra.mxu0 0.0
    %1259 = vmatprep.subr.mxu0 0.0
    %1260 = vmatpush1.msra.mxu0 0.0
    %1261 = vmatprep.subr.mxu0 0.0
    %1262 = vmatpush1.msra.mxu0 0.0
    %1263 = vmatprep.subr.mxu0 0.0
    %1264 = vmatpush1.msra.mxu0 0.0
    %1265 = vmatprep.subr.mxu0 0.0
    %1266 = vmatpush1.msra.mxu0 0.0
    %1267 = vmatprep.subr.mxu0 0.0
    %1268 = vmatpush1.msra.mxu0 0.0
    %1269 = vmatprep.subr.mxu0 0.0
    %1270 = vmatpush1.msra.mxu0 0.0
    %1271 = vmatprep.subr.mxu0 0.0
    %1272 = vmatpush1.msra.mxu0 0.0
    %1273 = vmatprep.subr.mxu0 0.0
    %1274 = vmatpush1.msra.mxu0 0.0
    %1275 = vmatprep.subr.mxu0 0.0
    %1276 = vmatpush1.msra.mxu0 0.0
    %1277 = vmatprep.subr.mxu0 0.0
    %1278 = vmatpush1.msra.mxu0 0.0
    %1279 = vmatprep.subr.mxu0 0.0
    %1280 = vmatpush1.msra.mxu0 0.0
    %1281 = vmatprep.subr.mxu0 0.0
    %1282 = vmatpush1.msra.mxu0 0.0
    %1283 = vmatprep.subr.mxu0 0.0
    %1284 = vmatpush1.msra.mxu0 0.0
    %1285 = vmatprep.subr.mxu0 0.0
    %1286 = vmatpush1.msra.mxu0 0.0
    %1287 = vmatprep.subr.mxu0 0.0
    %1288 = vmatpush1.msra.mxu0 0.0
    %1289 = vmatprep.subr.mxu0 0.0
    %1290 = vmatpush1.msra.mxu0 0.0
    %1291 = vmatprep.mubr.f32.mxu0 0.0
    %1292 = vmatmul.mubr.f32.gmra.mrb[0].mxu0 %v1225
    %v1293 = vpop.f32.mrb[0].mxu0
    %v1294 = vadd.f32 0.0, %v1293
    %v1295 = vpop.f32.mrb[0].mxu0
    %1296 = vdwg.mxu0
    %v1297 = vmax.f32 %v1218, %v1294
    %1299 = vrot.lane.b32.xlu0 %v1297, 120
    %v1300 = vpop.permute.xlu0 %1299
    %v1302 = vmax.f32 %v1297, %v1300
    %v1303 = vld [vmem:[%s5] sm:$0xff]
    %v1304 = vld [vmem:[%s5 + $0x8] sm:$0xff]
    %v1305 = vld [vmem:[%s5 + $0x10] sm:$0xff]
    %v1306 = vld [vmem:[%s5 + $0x18] sm:$0xff]
    %v1307 = vld [vmem:[%s5 + $0x20] sm:$0xff]
    %v1308 = vld [vmem:[%s5 + $0x28] sm:$0xff]
    %v1309 = vld [vmem:[%s5 + $0x30] sm:$0xff]
    %v1310 = vld [vmem:[%s5 + $0x38] sm:$0xff]
    %v1311 = vld [vmem:[%s5 + $0x40] sm:$0xff]
    %v1312 = vld [vmem:[%s5 + $0x48] sm:$0xff]
    %v1313 = vld [vmem:[%s5 + $0x50] sm:$0xff]
    %v1314 = vld [vmem:[%s5 + $0x58] sm:$0xff]
    %v1315 = vadd.s32 %v1141, 2
    %vm1316 = vcmp.eq.s32.totalorder %v520, %v1315
    %v1317 = vsel %vm1316, 1.0, 0.0
    %v1319 = vsel %vm1144, %v1317, 0
    %1321 = vmatprep.subr.mxu0 0.0
    %1322 = vmatpush1.msra.mxu0 %v1137
    %1323 = vmatprep.subr.mxu0 0.0
    %1324 = vmatpush1.msra.mxu0 %v1138
    %1325 = vmatprep.subr.mxu0 0.0
    %1326 = vmatpush1.msra.mxu0 %v1139
    %1327 = vmatprep.subr.mxu0 0.0
    %1328 = vmatpush1.msra.mxu0 %v1149
    %1329 = vmatprep.subr.mxu0 0.0
    %1330 = vmatpush1.msra.mxu0 0.0
    %1331 = vmatprep.subr.mxu0 0.0
    %1332 = vmatpush1.msra.mxu0 0.0
    %1333 = vmatprep.subr.mxu0 0.0
    %1334 = vmatpush1.msra.mxu0 0.0
    %1335 = vmatprep.subr.mxu0 0.0
    %1336 = vmatpush1.msra.mxu0 0.0
    %1337 = vmatprep.subr.mxu0 0.0
    %1338 = vmatpush1.msra.mxu0 0.0
    %1339 = vmatprep.subr.mxu0 0.0
    %1340 = vmatpush1.msra.mxu0 0.0
    %1341 = vmatprep.subr.mxu0 0.0
    %1342 = vmatpush1.msra.mxu0 0.0
    %1343 = vmatprep.subr.mxu0 0.0
    %1344 = vmatpush1.msra.mxu0 0.0
    %1345 = vmatprep.subr.mxu0 0.0
    %1346 = vmatpush1.msra.mxu0 0.0
    %1347 = vmatprep.subr.mxu0 0.0
    %1348 = vmatpush1.msra.mxu0 0.0
    %1349 = vmatprep.subr.mxu0 0.0
    %1350 = vmatpush1.msra.mxu0 0.0
    %1351 = vmatprep.subr.mxu0 0.0
    %1352 = vmatpush1.msra.mxu0 0.0
    %1353 = vmatprep.subr.mxu0 0.0
    %1354 = vmatpush1.msra.mxu0 0.0
    %1355 = vmatprep.subr.mxu0 0.0
    %1356 = vmatpush1.msra.mxu0 0.0
    %1357 = vmatprep.subr.mxu0 0.0
    %1358 = vmatpush1.msra.mxu0 0.0
    %1359 = vmatprep.subr.mxu0 0.0
    %1360 = vmatpush1.msra.mxu0 0.0
    %1361 = vmatprep.subr.mxu0 0.0
    %1362 = vmatpush1.msra.mxu0 0.0
    %1363 = vmatprep.subr.mxu0 0.0
    %1364 = vmatpush1.msra.mxu0 0.0
    %1365 = vmatprep.subr.mxu0 0.0
    %1366 = vmatpush1.msra.mxu0 0.0
    %1367 = vmatprep.subr.mxu0 0.0
    %1368 = vmatpush1.msra.mxu0 0.0
    %1369 = vmatprep.subr.mxu0 0.0
    %1370 = vmatpush1.msra.mxu0 0.0
    %1371 = vmatprep.subr.mxu0 0.0
    %1372 = vmatpush1.msra.mxu0 0.0
    %1373 = vmatprep.subr.mxu0 0.0
    %1374 = vmatpush1.msra.mxu0 0.0
    %1375 = vmatprep.subr.mxu0 0.0
    %1376 = vmatpush1.msra.mxu0 0.0
    %1377 = vmatprep.subr.mxu0 0.0
    %1378 = vmatpush1.msra.mxu0 0.0
    %1379 = vmatprep.subr.mxu0 0.0
    %1380 = vmatpush1.msra.mxu0 0.0
    %1381 = vmatprep.subr.mxu0 0.0
    %1382 = vmatpush1.msra.mxu0 0.0
    %1383 = vmatprep.subr.mxu0 0.0
    %1384 = vmatpush1.msra.mxu0 0.0
    %1385 = vmatprep.mubr.f32.mxu0 0.0
    %1386 = vmatmul.mubr.f32.gmra.mrb[0].mxu0 %v1319
    %v1387 = vpop.f32.mrb[0].mxu0
    %v1388 = vadd.f32 0.0, %v1387
    %v1389 = vpop.f32.mrb[0].mxu0
    %1390 = vdwg.mxu0
    %v1391 = vadd.s32 %v1141, 3
    %vm1392 = vcmp.eq.s32.totalorder %v520, %v1391
    %v1393 = vsel %vm1392, 1.0, 0.0
    %v1395 = vsel %vm1144, %v1393, 0
    %1397 = vmatprep.subr.mxu0 0.0
    %1398 = vmatpush1.msra.mxu0 %v1137
    %1399 = vmatprep.subr.mxu0 0.0
    %1400 = vmatpush1.msra.mxu0 %v1138
    %1401 = vmatprep.subr.mxu0 0.0
    %1402 = vmatpush1.msra.mxu0 %v1139
    %1403 = vmatprep.subr.mxu0 0.0
    %1404 = vmatpush1.msra.mxu0 %v1149
    %1405 = vmatprep.subr.mxu0 0.0
    %1406 = vmatpush1.msra.mxu0 0.0
    %1407 = vmatprep.subr.mxu0 0.0
    %1408 = vmatpush1.msra.mxu0 0.0
    %1409 = vmatprep.subr.mxu0 0.0
    %1410 = vmatpush1.msra.mxu0 0.0
    %1411 = vmatprep.subr.mxu0 0.0
    %1412 = vmatpush1.msra.mxu0 0.0
    %1413 = vmatprep.subr.mxu0 0.0
    %1414 = vmatpush1.msra.mxu0 0.0
    %1415 = vmatprep.subr.mxu0 0.0
    %1416 = vmatpush1.msra.mxu0 0.0
    %1417 = vmatprep.subr.mxu0 0.0
    %1418 = vmatpush1.msra.mxu0 0.0
    %1419 = vmatprep.subr.mxu0 0.0
    %1420 = vmatpush1.msra.mxu0 0.0
    %1421 = vmatprep.subr.mxu0 0.0
    %1422 = vmatpush1.msra.mxu0 0.0
    %1423 = vmatprep.subr.mxu0 0.0
    %1424 = vmatpush1.msra.mxu0 0.0
    %1425 = vmatprep.subr.mxu0 0.0
    %1426 = vmatpush1.msra.mxu0 0.0
    %1427 = vmatprep.subr.mxu0 0.0
    %1428 = vmatpush1.msra.mxu0 0.0
    %1429 = vmatprep.subr.mxu0 0.0
    %1430 = vmatpush1.msra.mxu0 0.0
    %1431 = vmatprep.subr.mxu0 0.0
    %1432 = vmatpush1.msra.mxu0 0.0
    %1433 = vmatprep.subr.mxu0 0.0
    %1434 = vmatpush1.msra.mxu0 0.0
    %1435 = vmatprep.subr.mxu0 0.0
    %1436 = vmatpush1.msra.mxu0 0.0
    %1437 = vmatprep.subr.mxu0 0.0
    %1438 = vmatpush1.msra.mxu0 0.0
    %1439 = vmatprep.subr.mxu0 0.0
    %1440 = vmatpush1.msra.mxu0 0.0
    %1441 = vmatprep.subr.mxu0 0.0
    %1442 = vmatpush1.msra.mxu0 0.0
    %1443 = vmatprep.subr.mxu0 0.0
    %1444 = vmatpush1.msra.mxu0 0.0
    %1445 = vmatprep.subr.mxu0 0.0
    %1446 = vmatpush1.msra.mxu0 0.0
    %1447 = vmatprep.subr.mxu0 0.0
    %1448 = vmatpush1.msra.mxu0 0.0
    %1449 = vmatprep.subr.mxu0 0.0
    %1450 = vmatpush1.msra.mxu0 0.0
    %1451 = vmatprep.subr.mxu0 0.0
    %1452 = vmatpush1.msra.mxu0 0.0
    %1453 = vmatprep.subr.mxu0 0.0
    %1454 = vmatpush1.msra.mxu0 0.0
    %1455 = vmatprep.subr.mxu0 0.0
    %1456 = vmatpush1.msra.mxu0 0.0
    %1457 = vmatprep.subr.mxu0 0.0
    %1458 = vmatpush1.msra.mxu0 0.0
    %1459 = vmatprep.subr.mxu0 0.0
    %1460 = vmatpush1.msra.mxu0 0.0
    %1461 = vmatprep.mubr.f32.mxu0 0.0
    %1462 = vmatmul.mubr.f32.gmra.mrb[0].mxu0 %v1395
    %v1463 = vpop.f32.mrb[0].mxu0
    %v1464 = vadd.f32 0.0, %v1463
    %v1465 = vpop.f32.mrb[0].mxu0
    %1466 = vdwg.mxu0
    %v1467 = vmax.f32 %v1388, %v1464
    %1469 = vrot.lane.b32.xlu0 %v1467, 120
    %v1470 = vpop.permute.xlu0 %1469
    %v1472 = vmax.f32 %v1467, %v1470
    %s1473 = scalar_lea.vmem %s5, 96
    %v1474 = vld [vmem:[%s1473] sm:$0xff]
    %v1475 = vld [vmem:[%s1473 + $0x8] sm:$0xff]
    %v1476 = vld [vmem:[%s1473 + $0x10] sm:$0xff]
    %v1477 = vld [vmem:[%s1473 + $0x18] sm:$0xff]
    %v1478 = vld [vmem:[%s1473 + $0x20] sm:$0xff]
    %v1479 = vld [vmem:[%s1473 + $0x28] sm:$0xff]
    %v1480 = vld [vmem:[%s1473 + $0x30] sm:$0xff]
    %v1481 = vld [vmem:[%s1473 + $0x38] sm:$0xff]
    %v1482 = vld [vmem:[%s1473 + $0x40] sm:$0xff]
    %v1483 = vld [vmem:[%s1473 + $0x48] sm:$0xff]
    %v1484 = vld [vmem:[%s1473 + $0x50] sm:$0xff]
    %v1485 = vld [vmem:[%s1473 + $0x58] sm:$0xff]
    %v1487 = vsel %vm90, %v1472, 0
    %1489 = vmatprep.subr.mxu0 0.0
    %1490 = vmatpush1.msra.mxu0 %v1474
    %1491 = vmatprep.subr.mxu0 0.0
    %1492 = vmatpush1.msra.mxu0 %v1475
    %1493 = vmatprep.subr.mxu0 0.0
    %1494 = vmatpush1.msra.mxu0 %v1476
    %1495 = vmatprep.subr.mxu0 0.0
    %1496 = vmatpush1.msra.mxu0 %v1477
    %1497 = vmatprep.subr.mxu0 0.0
    %1498 = vmatpush1.msra.mxu0 %v1478
    %1499 = vmatprep.subr.mxu0 0.0
    %1500 = vmatpush1.msra.mxu0 %v1479
    %1501 = vmatprep.subr.mxu0 0.0
    %1502 = vmatpush1.msra.mxu0 %v1480
    %1503 = vmatprep.subr.mxu0 0.0
    %1504 = vmatpush1.msra.mxu0 %v1481
    %1505 = vmatprep.subr.mxu0 0.0
    %1506 = vmatpush1.msra.mxu0 %v1482
    %1507 = vmatprep.subr.mxu0 0.0
    %1508 = vmatpush1.msra.mxu0 %v1483
    %1509 = vmatprep.subr.mxu0 0.0
    %1510 = vmatpush1.msra.mxu0 %v1484
    %1511 = vmatprep.subr.mxu0 0.0
    %1512 = vmatpush1.msra.mxu0 %v1485
    %1513 = vmatprep.subr.mxu0 0.0
    %1514 = vmatpush1.msra.mxu0 0.0
    %1515 = vmatprep.subr.mxu0 0.0
    %1516 = vmatpush1.msra.mxu0 0.0
    %1517 = vmatprep.subr.mxu0 0.0
    %1518 = vmatpush1.msra.mxu0 0.0
    %1519 = vmatprep.subr.mxu0 0.0
    %1520 = vmatpush1.msra.mxu0 0.0
    %1521 = vmatprep.subr.mxu0 0.0
    %1522 = vmatpush1.msra.mxu0 0.0
    %1523 = vmatprep.subr.mxu0 0.0
    %1524 = vmatpush1.msra.mxu0 0.0
    %1525 = vmatprep.subr.mxu0 0.0
    %1526 = vmatpush1.msra.mxu0 0.0
    %1527 = vmatprep.subr.mxu0 0.0
    %1528 = vmatpush1.msra.mxu0 0.0
    %1529 = vmatprep.subr.mxu0 0.0
    %1530 = vmatpush1.msra.mxu0 0.0
    %1531 = vmatprep.subr.mxu0 0.0
    %1532 = vmatpush1.msra.mxu0 0.0
    %1533 = vmatprep.subr.mxu0 0.0
    %1534 = vmatpush1.msra.mxu0 0.0
    %1535 = vmatprep.subr.mxu0 0.0
    %1536 = vmatpush1.msra.mxu0 0.0
    %1537 = vmatprep.subr.mxu0 0.0
    %1538 = vmatpush1.msra.mxu0 0.0
    %1539 = vmatprep.subr.mxu0 0.0
    %1540 = vmatpush1.msra.mxu0 0.0
    %1541 = vmatprep.subr.mxu0 0.0
    %1542 = vmatpush1.msra.mxu0 0.0
    %1543 = vmatprep.subr.mxu0 0.0
    %1544 = vmatpush1.msra.mxu0 0.0
    %1545 = vmatprep.subr.mxu0 0.0
    %1546 = vmatpush1.msra.mxu0 0.0
    %1547 = vmatprep.subr.mxu0 0.0
    %1548 = vmatpush1.msra.mxu0 0.0
    %1549 = vmatprep.subr.mxu0 0.0
    %1550 = vmatpush1.msra.mxu0 0.0
    %1551 = vmatprep.subr.mxu0 0.0
    %1552 = vmatpush1.msra.mxu0 0.0
    %1553 = vmatprep.mubr.f32.mxu0 0.0
    %1554 = vmatmul.mubr.f32.gmra.mrb[0].mxu0 %v1487
    %v1555 = vpop.f32.mrb[0].mxu0
    %v1556 = vadd.f32 0.0, %v1555
    %v1557 = vpop.f32.mrb[0].mxu0
    %1558 = vdwg.mxu0
    %v1560 = vsel %vm90, %v1302, 0
    %1562 = vmatprep.subr.mxu0 0.0
    %1563 = vmatpush1.msra.mxu0 %v1303
    %1564 = vmatprep.subr.mxu0 0.0
    %1565 = vmatpush1.msra.mxu0 %v1304
    %1566 = vmatprep.subr.mxu0 0.0
    %1567 = vmatpush1.msra.mxu0 %v1305
    %1568 = vmatprep.subr.mxu0 0.0
    %1569 = vmatpush1.msra.mxu0 %v1306
    %1570 = vmatprep.subr.mxu0 0.0
    %1571 = vmatpush1.msra.mxu0 %v1307
    %1572 = vmatprep.subr.mxu0 0.0
    %1573 = vmatpush1.msra.mxu0 %v1308
    %1574 = vmatprep.subr.mxu0 0.0
    %1575 = vmatpush1.msra.mxu0 %v1309
    %1576 = vmatprep.subr.mxu0 0.0
    %1577 = vmatpush1.msra.mxu0 %v1310
    %1578 = vmatprep.subr.mxu0 0.0
    %1579 = vmatpush1.msra.mxu0 %v1311
    %1580 = vmatprep.subr.mxu0 0.0
    %1581 = vmatpush1.msra.mxu0 %v1312
    %1582 = vmatprep.subr.mxu0 0.0
    %1583 = vmatpush1.msra.mxu0 %v1313
    %1584 = vmatprep.subr.mxu0 0.0
    %1585 = vmatpush1.msra.mxu0 %v1314
    %1586 = vmatprep.subr.mxu0 0.0
    %1587 = vmatpush1.msra.mxu0 0.0
    %1588 = vmatprep.subr.mxu0 0.0
    %1589 = vmatpush1.msra.mxu0 0.0
    %1590 = vmatprep.subr.mxu0 0.0
    %1591 = vmatpush1.msra.mxu0 0.0
    %1592 = vmatprep.subr.mxu0 0.0
    %1593 = vmatpush1.msra.mxu0 0.0
    %1594 = vmatprep.subr.mxu0 0.0
    %1595 = vmatpush1.msra.mxu0 0.0
    %1596 = vmatprep.subr.mxu0 0.0
    %1597 = vmatpush1.msra.mxu0 0.0
    %1598 = vmatprep.subr.mxu0 0.0
    %1599 = vmatpush1.msra.mxu0 0.0
    %1600 = vmatprep.subr.mxu0 0.0
    %1601 = vmatpush1.msra.mxu0 0.0
    %1602 = vmatprep.subr.mxu0 0.0
    %1603 = vmatpush1.msra.mxu0 0.0
    %1604 = vmatprep.subr.mxu0 0.0
    %1605 = vmatpush1.msra.mxu0 0.0
    %1606 = vmatprep.subr.mxu0 0.0
    %1607 = vmatpush1.msra.mxu0 0.0
    %1608 = vmatprep.subr.mxu0 0.0
    %1609 = vmatpush1.msra.mxu0 0.0
    %1610 = vmatprep.subr.mxu0 0.0
    %1611 = vmatpush1.msra.mxu0 0.0
    %1612 = vmatprep.subr.mxu0 0.0
    %1613 = vmatpush1.msra.mxu0 0.0
    %1614 = vmatprep.subr.mxu0 0.0
    %1615 = vmatpush1.msra.mxu0 0.0
    %1616 = vmatprep.subr.mxu0 0.0
    %1617 = vmatpush1.msra.mxu0 0.0
    %1618 = vmatprep.subr.mxu0 0.0
    %1619 = vmatpush1.msra.mxu0 0.0
    %1620 = vmatprep.subr.mxu0 0.0
    %1621 = vmatpush1.msra.mxu0 0.0
    %1622 = vmatprep.subr.mxu0 0.0
    %1623 = vmatpush1.msra.mxu0 0.0
    %1624 = vmatprep.subr.mxu0 0.0
    %1625 = vmatpush1.msra.mxu0 0.0
    %1626 = vmatprep.mubr.f32.mxu0 0.0
    %1627 = vmatmul.mubr.f32.gmra.mrb[0].mxu0 %v1560
    %v1628 = vpop.f32.mrb[0].mxu0
    %v1629 = vadd.f32 %v1556, %v1628
    %v1630 = vpop.f32.mrb[0].mxu0
    %1631 = vdwg.mxu0
    %v1632 = vadd.s32 %v1141, 4
    %vm1633 = vcmp.eq.s32.totalorder %v520, %v1632
    %v1634 = vsel %vm1633, 1.0, 0.0
    %v1636 = vsel %vm1144, %v1634, 0
    %1638 = vmatprep.subr.mxu0 0.0
    %1639 = vmatpush1.msra.mxu0 %v1137
    %1640 = vmatprep.subr.mxu0 0.0
    %1641 = vmatpush1.msra.mxu0 %v1138
    %1642 = vmatprep.subr.mxu0 0.0
    %1643 = vmatpush1.msra.mxu0 %v1139
    %1644 = vmatprep.subr.mxu0 0.0
    %1645 = vmatpush1.msra.mxu0 %v1149
    %1646 = vmatprep.subr.mxu0 0.0
    %1647 = vmatpush1.msra.mxu0 0.0
    %1648 = vmatprep.subr.mxu0 0.0
    %1649 = vmatpush1.msra.mxu0 0.0
    %1650 = vmatprep.subr.mxu0 0.0
    %1651 = vmatpush1.msra.mxu0 0.0
    %1652 = vmatprep.subr.mxu0 0.0
    %1653 = vmatpush1.msra.mxu0 0.0
    %1654 = vmatprep.subr.mxu0 0.0
    %1655 = vmatpush1.msra.mxu0 0.0
    %1656 = vmatprep.subr.mxu0 0.0
    %1657 = vmatpush1.msra.mxu0 0.0
    %1658 = vmatprep.subr.mxu0 0.0
    %1659 = vmatpush1.msra.mxu0 0.0
    %1660 = vmatprep.subr.mxu0 0.0
    %1661 = vmatpush1.msra.mxu0 0.0
    %1662 = vmatprep.subr.mxu0 0.0
    %1663 = vmatpush1.msra.mxu0 0.0
    %1664 = vmatprep.subr.mxu0 0.0
    %1665 = vmatpush1.msra.mxu0 0.0
    %1666 = vmatprep.subr.mxu0 0.0
    %1667 = vmatpush1.msra.mxu0 0.0
    %1668 = vmatprep.subr.mxu0 0.0
    %1669 = vmatpush1.msra.mxu0 0.0
    %1670 = vmatprep.subr.mxu0 0.0
    %1671 = vmatpush1.msra.mxu0 0.0
    %1672 = vmatprep.subr.mxu0 0.0
    %1673 = vmatpush1.msra.mxu0 0.0
    %1674 = vmatprep.subr.mxu0 0.0
    %1675 = vmatpush1.msra.mxu0 0.0
    %1676 = vmatprep.subr.mxu0 0.0
    %1677 = vmatpush1.msra.mxu0 0.0
    %1678 = vmatprep.subr.mxu0 0.0
    %1679 = vmatpush1.msra.mxu0 0.0
    %1680 = vmatprep.subr.mxu0 0.0
    %1681 = vmatpush1.msra.mxu0 0.0
    %1682 = vmatprep.subr.mxu0 0.0
    %1683 = vmatpush1.msra.mxu0 0.0
    %1684 = vmatprep.subr.mxu0 0.0
    %1685 = vmatpush1.msra.mxu0 0.0
    %1686 = vmatprep.subr.mxu0 0.0
    %1687 = vmatpush1.msra.mxu0 0.0
    %1688 = vmatprep.subr.mxu0 0.0
    %1689 = vmatpush1.msra.mxu0 0.0
    %1690 = vmatprep.subr.mxu0 0.0
    %1691 = vmatpush1.msra.mxu0 0.0
    %1692 = vmatprep.subr.mxu0 0.0
    %1693 = vmatpush1.msra.mxu0 0.0
    %1694 = vmatprep.subr.mxu0 0.0
    %1695 = vmatpush1.msra.mxu0 0.0
    %1696 = vmatprep.subr.mxu0 0.0
    %1697 = vmatpush1.msra.mxu0 0.0
    %1698 = vmatprep.subr.mxu0 0.0
    %1699 = vmatpush1.msra.mxu0 0.0
    %1700 = vmatprep.subr.mxu0 0.0
    %1701 = vmatpush1.msra.mxu0 0.0
    %1702 = vmatprep.mubr.f32.mxu0 0.0
    %1703 = vmatmul.mubr.f32.gmra.mrb[0].mxu0 %v1636
    %v1704 = vpop.f32.mrb[0].mxu0
    %v1705 = vadd.f32 0.0, %v1704
    %v1706 = vpop.f32.mrb[0].mxu0
    %1707 = vdwg.mxu0
    %v1708 = vadd.s32 %v1141, 5
    %vm1709 = vcmp.eq.s32.totalorder %v520, %v1708
    %v1710 = vsel %vm1709, 1.0, 0.0
    %v1712 = vsel %vm1144, %v1710, 0
    %1714 = vmatprep.subr.mxu0 0.0
    %1715 = vmatpush1.msra.mxu0 %v1137
    %1716 = vmatprep.subr.mxu0 0.0
    %1717 = vmatpush1.msra.mxu0 %v1138
    %1718 = vmatprep.subr.mxu0 0.0
    %1719 = vmatpush1.msra.mxu0 %v1139
    %1720 = vmatprep.subr.mxu0 0.0
    %1721 = vmatpush1.msra.mxu0 %v1149
    %1722 = vmatprep.subr.mxu0 0.0
    %1723 = vmatpush1.msra.mxu0 0.0
    %1724 = vmatprep.subr.mxu0 0.0
    %1725 = vmatpush1.msra.mxu0 0.0
    %1726 = vmatprep.subr.mxu0 0.0
    %1727 = vmatpush1.msra.mxu0 0.0
    %1728 = vmatprep.subr.mxu0 0.0
    %1729 = vmatpush1.msra.mxu0 0.0
    %1730 = vmatprep.subr.mxu0 0.0
    %1731 = vmatpush1.msra.mxu0 0.0
    %1732 = vmatprep.subr.mxu0 0.0
    %1733 = vmatpush1.msra.mxu0 0.0
    %1734 = vmatprep.subr.mxu0 0.0
    %1735 = vmatpush1.msra.mxu0 0.0
    %1736 = vmatprep.subr.mxu0 0.0
    %1737 = vmatpush1.msra.mxu0 0.0
    %1738 = vmatprep.subr.mxu0 0.0
    %1739 = vmatpush1.msra.mxu0 0.0
    %1740 = vmatprep.subr.mxu0 0.0
    %1741 = vmatpush1.msra.mxu0 0.0
    %1742 = vmatprep.subr.mxu0 0.0
    %1743 = vmatpush1.msra.mxu0 0.0
    %1744 = vmatprep.subr.mxu0 0.0
    %1745 = vmatpush1.msra.mxu0 0.0
    %1746 = vmatprep.subr.mxu0 0.0
    %1747 = vmatpush1.msra.mxu0 0.0
    %1748 = vmatprep.subr.mxu0 0.0
    %1749 = vmatpush1.msra.mxu0 0.0
    %1750 = vmatprep.subr.mxu0 0.0
    %1751 = vmatpush1.msra.mxu0 0.0
    %1752 = vmatprep.subr.mxu0 0.0
    %1753 = vmatpush1.msra.mxu0 0.0
    %1754 = vmatprep.subr.mxu0 0.0
    %1755 = vmatpush1.msra.mxu0 0.0
    %1756 = vmatprep.subr.mxu0 0.0
    %1757 = vmatpush1.msra.mxu0 0.0
    %1758 = vmatprep.subr.mxu0 0.0
    %1759 = vmatpush1.msra.mxu0 0.0
    %1760 = vmatprep.subr.mxu0 0.0
    %1761 = vmatpush1.msra.mxu0 0.0
    %1762 = vmatprep.subr.mxu0 0.0
    %1763 = vmatpush1.msra.mxu0 0.0
    %1764 = vmatprep.subr.mxu0 0.0
    %1765 = vmatpush1.msra.mxu0 0.0
    %1766 = vmatprep.subr.mxu0 0.0
    %1767 = vmatpush1.msra.mxu0 0.0
    %1768 = vmatprep.subr.mxu0 0.0
    %1769 = vmatpush1.msra.mxu0 0.0
    %1770 = vmatprep.subr.mxu0 0.0
    %1771 = vmatpush1.msra.mxu0 0.0
    %1772 = vmatprep.subr.mxu0 0.0
    %1773 = vmatpush1.msra.mxu0 0.0
    %1774 = vmatprep.subr.mxu0 0.0
    %1775 = vmatpush1.msra.mxu0 0.0
    %1776 = vmatprep.subr.mxu0 0.0
    %1777 = vmatpush1.msra.mxu0 0.0
    %1778 = vmatprep.mubr.f32.mxu0 0.0
    %1779 = vmatmul.mubr.f32.gmra.mrb[0].mxu0 %v1712
    %v1780 = vpop.f32.mrb[0].mxu0
    %v1781 = vadd.f32 0.0, %v1780
    %v1782 = vpop.f32.mrb[0].mxu0
    %1783 = vdwg.mxu0
    %v1784 = vmax.f32 %v1705, %v1781
    %1786 = vrot.lane.b32.xlu0 %v1784, 120
    %v1787 = vpop.permute.xlu0 %1786
    %v1789 = vmax.f32 %v1784, %v1787
    %s1790 = scalar_lea.vmem %s5, 192
    %v1791 = vld [vmem:[%s1790] sm:$0xff]
    %v1792 = vld [vmem:[%s1790 + $0x8] sm:$0xff]
    %v1793 = vld [vmem:[%s1790 + $0x10] sm:$0xff]
    %v1794 = vld [vmem:[%s1790 + $0x18] sm:$0xff]
    %v1795 = vld [vmem:[%s1790 + $0x20] sm:$0xff]
    %v1796 = vld [vmem:[%s1790 + $0x28] sm:$0xff]
    %v1797 = vld [vmem:[%s1790 + $0x30] sm:$0xff]
    %v1798 = vld [vmem:[%s1790 + $0x38] sm:$0xff]
    %v1799 = vld [vmem:[%s1790 + $0x40] sm:$0xff]
    %v1800 = vld [vmem:[%s1790 + $0x48] sm:$0xff]
    %v1801 = vld [vmem:[%s1790 + $0x50] sm:$0xff]
    %v1802 = vld [vmem:[%s1790 + $0x58] sm:$0xff]
    %v1804 = vsel %vm90, %v1789, 0
    %1806 = vmatprep.subr.mxu0 0.0
    %1807 = vmatpush1.msra.mxu0 %v1791
    %1808 = vmatprep.subr.mxu0 0.0
    %1809 = vmatpush1.msra.mxu0 %v1792
    %1810 = vmatprep.subr.mxu0 0.0
    %1811 = vmatpush1.msra.mxu0 %v1793
    %1812 = vmatprep.subr.mxu0 0.0
    %1813 = vmatpush1.msra.mxu0 %v1794
    %1814 = vmatprep.subr.mxu0 0.0
    %1815 = vmatpush1.msra.mxu0 %v1795
    %1816 = vmatprep.subr.mxu0 0.0
    %1817 = vmatpush1.msra.mxu0 %v1796
    %1818 = vmatprep.subr.mxu0 0.0
    %1819 = vmatpush1.msra.mxu0 %v1797
    %1820 = vmatprep.subr.mxu0 0.0
    %1821 = vmatpush1.msra.mxu0 %v1798
    %1822 = vmatprep.subr.mxu0 0.0
    %1823 = vmatpush1.msra.mxu0 %v1799
    %1824 = vmatprep.subr.mxu0 0.0
    %1825 = vmatpush1.msra.mxu0 %v1800
    %1826 = vmatprep.subr.mxu0 0.0
    %1827 = vmatpush1.msra.mxu0 %v1801
    %1828 = vmatprep.subr.mxu0 0.0
    %1829 = vmatpush1.msra.mxu0 %v1802
    %1830 = vmatprep.subr.mxu0 0.0
    %1831 = vmatpush1.msra.mxu0 0.0
    %1832 = vmatprep.subr.mxu0 0.0
    %1833 = vmatpush1.msra.mxu0 0.0
    %1834 = vmatprep.subr.mxu0 0.0
    %1835 = vmatpush1.msra.mxu0 0.0
    %1836 = vmatprep.subr.mxu0 0.0
    %1837 = vmatpush1.msra.mxu0 0.0
    %1838 = vmatprep.subr.mxu0 0.0
    %1839 = vmatpush1.msra.mxu0 0.0
    %1840 = vmatprep.subr.mxu0 0.0
    %1841 = vmatpush1.msra.mxu0 0.0
    %1842 = vmatprep.subr.mxu0 0.0
    %1843 = vmatpush1.msra.mxu0 0.0
    %1844 = vmatprep.subr.mxu0 0.0
    %1845 = vmatpush1.msra.mxu0 0.0
    %1846 = vmatprep.subr.mxu0 0.0
    %1847 = vmatpush1.msra.mxu0 0.0
    %1848 = vmatprep.subr.mxu0 0.0
    %1849 = vmatpush1.msra.mxu0 0.0
    %1850 = vmatprep.subr.mxu0 0.0
    %1851 = vmatpush1.msra.mxu0 0.0
    %1852 = vmatprep.subr.mxu0 0.0
    %1853 = vmatpush1.msra.mxu0 0.0
    %1854 = vmatprep.subr.mxu0 0.0
    %1855 = vmatpush1.msra.mxu0 0.0
    %1856 = vmatprep.subr.mxu0 0.0
    %1857 = vmatpush1.msra.mxu0 0.0
    %1858 = vmatprep.subr.mxu0 0.0
    %1859 = vmatpush1.msra.mxu0 0.0
    %1860 = vmatprep.subr.mxu0 0.0
    %1861 = vmatpush1.msra.mxu0 0.0
    %1862 = vmatprep.subr.mxu0 0.0
    %1863 = vmatpush1.msra.mxu0 0.0
    %1864 = vmatprep.subr.mxu0 0.0
    %1865 = vmatpush1.msra.mxu0 0.0
    %1866 = vmatprep.subr.mxu0 0.0
    %1867 = vmatpush1.msra.mxu0 0.0
    %1868 = vmatprep.subr.mxu0 0.0
    %1869 = vmatpush1.msra.mxu0 0.0
    %1870 = vmatprep.mubr.f32.mxu0 0.0
    %1871 = vmatmul.mubr.f32.gmra.mrb[0].mxu0 %v1804
    %v1872 = vpop.f32.mrb[0].mxu0
    %v1873 = vadd.f32 0.0, %v1872
    %v1874 = vpop.f32.mrb[0].mxu0
    %1875 = vdwg.mxu0
    %v1876 = vadd.f32 %v1629, %v1873
    %v1877 = vadd.s32 %v1141, 6
    %vm1878 = vcmp.eq.s32.totalorder %v520, %v1877
    %v1879 = vsel %vm1878, 1.0, 0.0
    %v1881 = vsel %vm1144, %v1879, 0
    %1883 = vmatprep.subr.mxu0 0.0
    %1884 = vmatpush1.msra.mxu0 %v1137
    %1885 = vmatprep.subr.mxu0 0.0
    %1886 = vmatpush1.msra.mxu0 %v1138
    %1887 = vmatprep.subr.mxu0 0.0
    %1888 = vmatpush1.msra.mxu0 %v1139
    %1889 = vmatprep.subr.mxu0 0.0
    %1890 = vmatpush1.msra.mxu0 %v1149
    %1891 = vmatprep.subr.mxu0 0.0
    %1892 = vmatpush1.msra.mxu0 0.0
    %1893 = vmatprep.subr.mxu0 0.0
    %1894 = vmatpush1.msra.mxu0 0.0
    %1895 = vmatprep.subr.mxu0 0.0
    %1896 = vmatpush1.msra.mxu0 0.0
    %1897 = vmatprep.subr.mxu0 0.0
    %1898 = vmatpush1.msra.mxu0 0.0
    %1899 = vmatprep.subr.mxu0 0.0
    %1900 = vmatpush1.msra.mxu0 0.0
    %1901 = vmatprep.subr.mxu0 0.0
    %1902 = vmatpush1.msra.mxu0 0.0
    %1903 = vmatprep.subr.mxu0 0.0
    %1904 = vmatpush1.msra.mxu0 0.0
    %1905 = vmatprep.subr.mxu0 0.0
    %1906 = vmatpush1.msra.mxu0 0.0
    %1907 = vmatprep.subr.mxu0 0.0
    %1908 = vmatpush1.msra.mxu0 0.0
    %1909 = vmatprep.subr.mxu0 0.0
    %1910 = vmatpush1.msra.mxu0 0.0
    %1911 = vmatprep.subr.mxu0 0.0
    %1912 = vmatpush1.msra.mxu0 0.0
    %1913 = vmatprep.subr.mxu0 0.0
    %1914 = vmatpush1.msra.mxu0 0.0
    %1915 = vmatprep.subr.mxu0 0.0
    %1916 = vmatpush1.msra.mxu0 0.0
    %1917 = vmatprep.subr.mxu0 0.0
    %1918 = vmatpush1.msra.mxu0 0.0
    %1919 = vmatprep.subr.mxu0 0.0
    %1920 = vmatpush1.msra.mxu0 0.0
    %1921 = vmatprep.subr.mxu0 0.0
    %1922 = vmatpush1.msra.mxu0 0.0
    %1923 = vmatprep.subr.mxu0 0.0
    %1924 = vmatpush1.msra.mxu0 0.0
    %1925 = vmatprep.subr.mxu0 0.0
    %1926 = vmatpush1.msra.mxu0 0.0
    %1927 = vmatprep.subr.mxu0 0.0
    %1928 = vmatpush1.msra.mxu0 0.0
    %1929 = vmatprep.subr.mxu0 0.0
    %1930 = vmatpush1.msra.mxu0 0.0
    %1931 = vmatprep.subr.mxu0 0.0
    %1932 = vmatpush1.msra.mxu0 0.0
    %1933 = vmatprep.subr.mxu0 0.0
    %1934 = vmatpush1.msra.mxu0 0.0
    %1935 = vmatprep.subr.mxu0 0.0
    %1936 = vmatpush1.msra.mxu0 0.0
    %1937 = vmatprep.subr.mxu0 0.0
    %1938 = vmatpush1.msra.mxu0 0.0
    %1939 = vmatprep.subr.mxu0 0.0
    %1940 = vmatpush1.msra.mxu0 0.0
    %1941 = vmatprep.subr.mxu0 0.0
    %1942 = vmatpush1.msra.mxu0 0.0
    %1943 = vmatprep.subr.mxu0 0.0
    %1944 = vmatpush1.msra.mxu0 0.0
    %1945 = vmatprep.subr.mxu0 0.0
    %1946 = vmatpush1.msra.mxu0 0.0
    %1947 = vmatprep.mubr.f32.mxu0 0.0
    %1948 = vmatmul.mubr.f32.gmra.mrb[0].mxu0 %v1881
    %v1949 = vpop.f32.mrb[0].mxu0
    %v1950 = vadd.f32 0.0, %v1949
    %v1951 = vpop.f32.mrb[0].mxu0
    %1952 = vdwg.mxu0
    %v1953 = vadd.s32 %v1141, 7
    %vm1954 = vcmp.eq.s32.totalorder %v520, %v1953
    %v1955 = vsel %vm1954, 1.0, 0.0
    %v1957 = vsel %vm1144, %v1955, 0
    %1959 = vmatprep.subr.mxu0 0.0
    %1960 = vmatpush1.msra.mxu0 %v1137
    %1961 = vmatprep.subr.mxu0 0.0
    %1962 = vmatpush1.msra.mxu0 %v1138
    %1963 = vmatprep.subr.mxu0 0.0
    %1964 = vmatpush1.msra.mxu0 %v1139
    %1965 = vmatprep.subr.mxu0 0.0
    %1966 = vmatpush1.msra.mxu0 %v1149
    %1967 = vmatprep.subr.mxu0 0.0
    %1968 = vmatpush1.msra.mxu0 0.0
    %1969 = vmatprep.subr.mxu0 0.0
    %1970 = vmatpush1.msra.mxu0 0.0
    %1971 = vmatprep.subr.mxu0 0.0
    %1972 = vmatpush1.msra.mxu0 0.0
    %1973 = vmatprep.subr.mxu0 0.0
    %1974 = vmatpush1.msra.mxu0 0.0
    %1975 = vmatprep.subr.mxu0 0.0
    %1976 = vmatpush1.msra.mxu0 0.0
    %1977 = vmatprep.subr.mxu0 0.0
    %1978 = vmatpush1.msra.mxu0 0.0
    %1979 = vmatprep.subr.mxu0 0.0
    %1980 = vmatpush1.msra.mxu0 0.0
    %1981 = vmatprep.subr.mxu0 0.0
    %1982 = vmatpush1.msra.mxu0 0.0
    %1983 = vmatprep.subr.mxu0 0.0
    %1984 = vmatpush1.msra.mxu0 0.0
    %1985 = vmatprep.subr.mxu0 0.0
    %1986 = vmatpush1.msra.mxu0 0.0
    %1987 = vmatprep.subr.mxu0 0.0
    %1988 = vmatpush1.msra.mxu0 0.0
    %1989 = vmatprep.subr.mxu0 0.0
    %1990 = vmatpush1.msra.mxu0 0.0
    %1991 = vmatprep.subr.mxu0 0.0
    %1992 = vmatpush1.msra.mxu0 0.0
    %1993 = vmatprep.subr.mxu0 0.0
    %1994 = vmatpush1.msra.mxu0 0.0
    %1995 = vmatprep.subr.mxu0 0.0
    %1996 = vmatpush1.msra.mxu0 0.0
    %1997 = vmatprep.subr.mxu0 0.0
    %1998 = vmatpush1.msra.mxu0 0.0
    %1999 = vmatprep.subr.mxu0 0.0
    %2000 = vmatpush1.msra.mxu0 0.0
    %2001 = vmatprep.subr.mxu0 0.0
    %2002 = vmatpush1.msra.mxu0 0.0
    %2003 = vmatprep.subr.mxu0 0.0
    %2004 = vmatpush1.msra.mxu0 0.0
    %2005 = vmatprep.subr.mxu0 0.0
    %2006 = vmatpush1.msra.mxu0 0.0
    %2007 = vmatprep.subr.mxu0 0.0
    %2008 = vmatpush1.msra.mxu0 0.0
    %2009 = vmatprep.subr.mxu0 0.0
    %2010 = vmatpush1.msra.mxu0 0.0
    %2011 = vmatprep.subr.mxu0 0.0
    %2012 = vmatpush1.msra.mxu0 0.0
    %2013 = vmatprep.subr.mxu0 0.0
    %2014 = vmatpush1.msra.mxu0 0.0
    %2015 = vmatprep.subr.mxu0 0.0
    %2016 = vmatpush1.msra.mxu0 0.0
    %2017 = vmatprep.subr.mxu0 0.0
    %2018 = vmatpush1.msra.mxu0 0.0
    %2019 = vmatprep.subr.mxu0 0.0
    %2020 = vmatpush1.msra.mxu0 0.0
    %2021 = vmatprep.subr.mxu0 0.0
    %2022 = vmatpush1.msra.mxu0 0.0
    %2023 = vmatprep.mubr.f32.mxu0 0.0
    %2024 = vmatmul.mubr.f32.gmra.mrb[0].mxu0 %v1957
    %v2025 = vpop.f32.mrb[0].mxu0
    %v2026 = vadd.f32 0.0, %v2025
    %v2027 = vpop.f32.mrb[0].mxu0
    %2028 = vdwg.mxu0
    %v2029 = vmax.f32 %v1950, %v2026
    %2031 = vrot.lane.b32.xlu0 %v2029, 120
    %v2032 = vpop.permute.xlu0 %2031
    %v2034 = vmax.f32 %v2029, %v2032
    %s2035 = scalar_lea.vmem %s5, 288
    %v2036 = vld [vmem:[%s2035] sm:$0xff]
    %v2037 = vld [vmem:[%s2035 + $0x8] sm:$0xff]
    %v2038 = vld [vmem:[%s2035 + $0x10] sm:$0xff]
    %v2039 = vld [vmem:[%s2035 + $0x18] sm:$0xff]
    %v2040 = vld [vmem:[%s2035 + $0x20] sm:$0xff]
    %v2041 = vld [vmem:[%s2035 + $0x28] sm:$0xff]
    %v2042 = vld [vmem:[%s2035 + $0x30] sm:$0xff]
    %v2043 = vld [vmem:[%s2035 + $0x38] sm:$0xff]
    %v2044 = vld [vmem:[%s2035 + $0x40] sm:$0xff]
    %v2045 = vld [vmem:[%s2035 + $0x48] sm:$0xff]
    %v2046 = vld [vmem:[%s2035 + $0x50] sm:$0xff]
    %v2047 = vld [vmem:[%s2035 + $0x58] sm:$0xff]
    %v2049 = vsel %vm90, %v2034, 0
    %2051 = vmatprep.subr.mxu0 0.0
    %2052 = vmatpush1.msra.mxu0 %v2036
    %2053 = vmatprep.subr.mxu0 0.0
    %2054 = vmatpush1.msra.mxu0 %v2037
    %2055 = vmatprep.subr.mxu0 0.0
    %2056 = vmatpush1.msra.mxu0 %v2038
    %2057 = vmatprep.subr.mxu0 0.0
    %2058 = vmatpush1.msra.mxu0 %v2039
    %2059 = vmatprep.subr.mxu0 0.0
    %2060 = vmatpush1.msra.mxu0 %v2040
    %2061 = vmatprep.subr.mxu0 0.0
    %2062 = vmatpush1.msra.mxu0 %v2041
    %2063 = vmatprep.subr.mxu0 0.0
    %2064 = vmatpush1.msra.mxu0 %v2042
    %2065 = vmatprep.subr.mxu0 0.0
    %2066 = vmatpush1.msra.mxu0 %v2043
    %2067 = vmatprep.subr.mxu0 0.0
    %2068 = vmatpush1.msra.mxu0 %v2044
    %2069 = vmatprep.subr.mxu0 0.0
    %2070 = vmatpush1.msra.mxu0 %v2045
    %2071 = vmatprep.subr.mxu0 0.0
    %2072 = vmatpush1.msra.mxu0 %v2046
    %2073 = vmatprep.subr.mxu0 0.0
    %2074 = vmatpush1.msra.mxu0 %v2047
    %2075 = vmatprep.subr.mxu0 0.0
    %2076 = vmatpush1.msra.mxu0 0.0
    %2077 = vmatprep.subr.mxu0 0.0
    %2078 = vmatpush1.msra.mxu0 0.0
    %2079 = vmatprep.subr.mxu0 0.0
    %2080 = vmatpush1.msra.mxu0 0.0
    %2081 = vmatprep.subr.mxu0 0.0
    %2082 = vmatpush1.msra.mxu0 0.0
    %2083 = vmatprep.subr.mxu0 0.0
    %2084 = vmatpush1.msra.mxu0 0.0
    %2085 = vmatprep.subr.mxu0 0.0
    %2086 = vmatpush1.msra.mxu0 0.0
    %2087 = vmatprep.subr.mxu0 0.0
    %2088 = vmatpush1.msra.mxu0 0.0
    %2089 = vmatprep.subr.mxu0 0.0
    %2090 = vmatpush1.msra.mxu0 0.0
    %2091 = vmatprep.subr.mxu0 0.0
    %2092 = vmatpush1.msra.mxu0 0.0
    %2093 = vmatprep.subr.mxu0 0.0
    %2094 = vmatpush1.msra.mxu0 0.0
    %2095 = vmatprep.subr.mxu0 0.0
    %2096 = vmatpush1.msra.mxu0 0.0
    %2097 = vmatprep.subr.mxu0 0.0
    %2098 = vmatpush1.msra.mxu0 0.0
    %2099 = vmatprep.subr.mxu0 0.0
    %2100 = vmatpush1.msra.mxu0 0.0
    %2101 = vmatprep.subr.mxu0 0.0
    %2102 = vmatpush1.msra.mxu0 0.0
    %2103 = vmatprep.subr.mxu0 0.0
    %2104 = vmatpush1.msra.mxu0 0.0
    %2105 = vmatprep.subr.mxu0 0.0
    %2106 = vmatpush1.msra.mxu0 0.0
    %2107 = vmatprep.subr.mxu0 0.0
    %2108 = vmatpush1.msra.mxu0 0.0
    %2109 = vmatprep.subr.mxu0 0.0
    %2110 = vmatpush1.msra.mxu0 0.0
    %2111 = vmatprep.subr.mxu0 0.0
    %2112 = vmatpush1.msra.mxu0 0.0
    %2113 = vmatprep.subr.mxu0 0.0
    %2114 = vmatpush1.msra.mxu0 0.0
    %2115 = vmatprep.mubr.f32.mxu0 0.0
    %2116 = vmatmul.mubr.f32.gmra.mrb[0].mxu0 %v2049
    %v2117 = vpop.f32.mrb[0].mxu0
    %v2118 = vadd.f32 0.0, %v2117
    %v2119 = vpop.f32.mrb[0].mxu0
    %2120 = vdwg.mxu0
    %v2121 = vadd.f32 %v1876, %v2118
    %v2122 = vadd.s32 %v1141, 8
    %vm2123 = vcmp.eq.s32.totalorder %v520, %v2122
    %v2124 = vsel %vm2123, 1.0, 0.0
    %v2126 = vsel %vm1144, %v2124, 0
    %2128 = vmatprep.subr.mxu0 0.0
    %2129 = vmatpush1.msra.mxu0 %v1137
    %2130 = vmatprep.subr.mxu0 0.0
    %2131 = vmatpush1.msra.mxu0 %v1138
    %2132 = vmatprep.subr.mxu0 0.0
    %2133 = vmatpush1.msra.mxu0 %v1139
    %2134 = vmatprep.subr.mxu0 0.0
    %2135 = vmatpush1.msra.mxu0 %v1149
    %2136 = vmatprep.subr.mxu0 0.0
    %2137 = vmatpush1.msra.mxu0 0.0
    %2138 = vmatprep.subr.mxu0 0.0
    %2139 = vmatpush1.msra.mxu0 0.0
    %2140 = vmatprep.subr.mxu0 0.0
    %2141 = vmatpush1.msra.mxu0 0.0
    %2142 = vmatprep.subr.mxu0 0.0
    %2143 = vmatpush1.msra.mxu0 0.0
    %2144 = vmatprep.subr.mxu0 0.0
    %2145 = vmatpush1.msra.mxu0 0.0
    %2146 = vmatprep.subr.mxu0 0.0
    %2147 = vmatpush1.msra.mxu0 0.0
    %2148 = vmatprep.subr.mxu0 0.0
    %2149 = vmatpush1.msra.mxu0 0.0
    %2150 = vmatprep.subr.mxu0 0.0
    %2151 = vmatpush1.msra.mxu0 0.0
    %2152 = vmatprep.subr.mxu0 0.0
    %2153 = vmatpush1.msra.mxu0 0.0
    %2154 = vmatprep.subr.mxu0 0.0
    %2155 = vmatpush1.msra.mxu0 0.0
    %2156 = vmatprep.subr.mxu0 0.0
    %2157 = vmatpush1.msra.mxu0 0.0
    %2158 = vmatprep.subr.mxu0 0.0
    %2159 = vmatpush1.msra.mxu0 0.0
    %2160 = vmatprep.subr.mxu0 0.0
    %2161 = vmatpush1.msra.mxu0 0.0
    %2162 = vmatprep.subr.mxu0 0.0
    %2163 = vmatpush1.msra.mxu0 0.0
    %2164 = vmatprep.subr.mxu0 0.0
    %2165 = vmatpush1.msra.mxu0 0.0
    %2166 = vmatprep.subr.mxu0 0.0
    %2167 = vmatpush1.msra.mxu0 0.0
    %2168 = vmatprep.subr.mxu0 0.0
    %2169 = vmatpush1.msra.mxu0 0.0
    %2170 = vmatprep.subr.mxu0 0.0
    %2171 = vmatpush1.msra.mxu0 0.0
    %2172 = vmatprep.subr.mxu0 0.0
    %2173 = vmatpush1.msra.mxu0 0.0
    %2174 = vmatprep.subr.mxu0 0.0
    %2175 = vmatpush1.msra.mxu0 0.0
    %2176 = vmatprep.subr.mxu0 0.0
    %2177 = vmatpush1.msra.mxu0 0.0
    %2178 = vmatprep.subr.mxu0 0.0
    %2179 = vmatpush1.msra.mxu0 0.0
    %2180 = vmatprep.subr.mxu0 0.0
    %2181 = vmatpush1.msra.mxu0 0.0
    %2182 = vmatprep.subr.mxu0 0.0
    %2183 = vmatpush1.msra.mxu0 0.0
    %2184 = vmatprep.subr.mxu0 0.0
    %2185 = vmatpush1.msra.mxu0 0.0
    %2186 = vmatprep.subr.mxu0 0.0
    %2187 = vmatpush1.msra.mxu0 0.0
    %2188 = vmatprep.subr.mxu0 0.0
    %2189 = vmatpush1.msra.mxu0 0.0
    %2190 = vmatprep.subr.mxu0 0.0
    %2191 = vmatpush1.msra.mxu0 0.0
    %2192 = vmatprep.mubr.f32.mxu0 0.0
    %2193 = vmatmul.mubr.f32.gmra.mrb[0].mxu0 %v2126
    %v2194 = vpop.f32.mrb[0].mxu0
    %v2195 = vadd.f32 0.0, %v2194
    %v2196 = vpop.f32.mrb[0].mxu0
    %2197 = vdwg.mxu0
    %v2198 = vadd.s32 %v1141, 9
    %vm2199 = vcmp.eq.s32.totalorder %v520, %v2198
    %v2200 = vsel %vm2199, 1.0, 0.0
    %v2202 = vsel %vm1144, %v2200, 0
    %2204 = vmatprep.subr.mxu0 0.0
    %2205 = vmatpush1.msra.mxu0 %v1137
    %2206 = vmatprep.subr.mxu0 0.0
    %2207 = vmatpush1.msra.mxu0 %v1138
    %2208 = vmatprep.subr.mxu0 0.0
    %2209 = vmatpush1.msra.mxu0 %v1139
    %2210 = vmatprep.subr.mxu0 0.0
    %2211 = vmatpush1.msra.mxu0 %v1149
    %2212 = vmatprep.subr.mxu0 0.0
    %2213 = vmatpush1.msra.mxu0 0.0
    %2214 = vmatprep.subr.mxu0 0.0
    %2215 = vmatpush1.msra.mxu0 0.0
    %2216 = vmatprep.subr.mxu0 0.0
    %2217 = vmatpush1.msra.mxu0 0.0
    %2218 = vmatprep.subr.mxu0 0.0
    %2219 = vmatpush1.msra.mxu0 0.0
    %2220 = vmatprep.subr.mxu0 0.0
    %2221 = vmatpush1.msra.mxu0 0.0
    %2222 = vmatprep.subr.mxu0 0.0
    %2223 = vmatpush1.msra.mxu0 0.0
    %2224 = vmatprep.subr.mxu0 0.0
    %2225 = vmatpush1.msra.mxu0 0.0
    %2226 = vmatprep.subr.mxu0 0.0
    %2227 = vmatpush1.msra.mxu0 0.0
    %2228 = vmatprep.subr.mxu0 0.0
    %2229 = vmatpush1.msra.mxu0 0.0
    %2230 = vmatprep.subr.mxu0 0.0
    %2231 = vmatpush1.msra.mxu0 0.0
    %2232 = vmatprep.subr.mxu0 0.0
    %2233 = vmatpush1.msra.mxu0 0.0
    %2234 = vmatprep.subr.mxu0 0.0
    %2235 = vmatpush1.msra.mxu0 0.0
    %2236 = vmatprep.subr.mxu0 0.0
    %2237 = vmatpush1.msra.mxu0 0.0
    %2238 = vmatprep.subr.mxu0 0.0
    %2239 = vmatpush1.msra.mxu0 0.0
    %2240 = vmatprep.subr.mxu0 0.0
    %2241 = vmatpush1.msra.mxu0 0.0
    %2242 = vmatprep.subr.mxu0 0.0
    %2243 = vmatpush1.msra.mxu0 0.0
    %2244 = vmatprep.subr.mxu0 0.0
    %2245 = vmatpush1.msra.mxu0 0.0
    %2246 = vmatprep.subr.mxu0 0.0
    %2247 = vmatpush1.msra.mxu0 0.0
    %2248 = vmatprep.subr.mxu0 0.0
    %2249 = vmatpush1.msra.mxu0 0.0
    %2250 = vmatprep.subr.mxu0 0.0
    %2251 = vmatpush1.msra.mxu0 0.0
    %2252 = vmatprep.subr.mxu0 0.0
    %2253 = vmatpush1.msra.mxu0 0.0
    %2254 = vmatprep.subr.mxu0 0.0
    %2255 = vmatpush1.msra.mxu0 0.0
    %2256 = vmatprep.subr.mxu0 0.0
    %2257 = vmatpush1.msra.mxu0 0.0
    %2258 = vmatprep.subr.mxu0 0.0
    %2259 = vmatpush1.msra.mxu0 0.0
    %2260 = vmatprep.subr.mxu0 0.0
    %2261 = vmatpush1.msra.mxu0 0.0
    %2262 = vmatprep.subr.mxu0 0.0
    %2263 = vmatpush1.msra.mxu0 0.0
    %2264 = vmatprep.subr.mxu0 0.0
    %2265 = vmatpush1.msra.mxu0 0.0
    %2266 = vmatprep.subr.mxu0 0.0
    %2267 = vmatpush1.msra.mxu0 0.0
    %2268 = vmatprep.mubr.f32.mxu0 0.0
    %2269 = vmatmul.mubr.f32.gmra.mrb[0].mxu0 %v2202
    %v2270 = vpop.f32.mrb[0].mxu0
    %v2271 = vadd.f32 0.0, %v2270
    %v2272 = vpop.f32.mrb[0].mxu0
    %2273 = vdwg.mxu0
    %v2274 = vmax.f32 %v2195, %v2271
    %2276 = vrot.lane.b32.xlu0 %v2274, 120
    %v2277 = vpop.permute.xlu0 %2276
    %v2279 = vmax.f32 %v2274, %v2277
    %s2280 = scalar_lea.vmem %s5, 384
    %v2281 = vld [vmem:[%s2280] sm:$0xff]
    %v2282 = vld [vmem:[%s2280 + $0x8] sm:$0xff]
    %v2283 = vld [vmem:[%s2280 + $0x10] sm:$0xff]
    %v2284 = vld [vmem:[%s2280 + $0x18] sm:$0xff]
    %v2285 = vld [vmem:[%s2280 + $0x20] sm:$0xff]
    %v2286 = vld [vmem:[%s2280 + $0x28] sm:$0xff]
    %v2287 = vld [vmem:[%s2280 + $0x30] sm:$0xff]
    %v2288 = vld [vmem:[%s2280 + $0x38] sm:$0xff]
    %v2289 = vld [vmem:[%s2280 + $0x40] sm:$0xff]
    %v2290 = vld [vmem:[%s2280 + $0x48] sm:$0xff]
    %v2291 = vld [vmem:[%s2280 + $0x50] sm:$0xff]
    %v2292 = vld [vmem:[%s2280 + $0x58] sm:$0xff]
    %v2294 = vsel %vm90, %v2279, 0
    %2296 = vmatprep.subr.mxu0 0.0
    %2297 = vmatpush1.msra.mxu0 %v2281
    %2298 = vmatprep.subr.mxu0 0.0
    %2299 = vmatpush1.msra.mxu0 %v2282
    %2300 = vmatprep.subr.mxu0 0.0
    %2301 = vmatpush1.msra.mxu0 %v2283
    %2302 = vmatprep.subr.mxu0 0.0
    %2303 = vmatpush1.msra.mxu0 %v2284
    %2304 = vmatprep.subr.mxu0 0.0
    %2305 = vmatpush1.msra.mxu0 %v2285
    %2306 = vmatprep.subr.mxu0 0.0
    %2307 = vmatpush1.msra.mxu0 %v2286
    %2308 = vmatprep.subr.mxu0 0.0
    %2309 = vmatpush1.msra.mxu0 %v2287
    %2310 = vmatprep.subr.mxu0 0.0
    %2311 = vmatpush1.msra.mxu0 %v2288
    %2312 = vmatprep.subr.mxu0 0.0
    %2313 = vmatpush1.msra.mxu0 %v2289
    %2314 = vmatprep.subr.mxu0 0.0
    %2315 = vmatpush1.msra.mxu0 %v2290
    %2316 = vmatprep.subr.mxu0 0.0
    %2317 = vmatpush1.msra.mxu0 %v2291
    %2318 = vmatprep.subr.mxu0 0.0
    %2319 = vmatpush1.msra.mxu0 %v2292
    %2320 = vmatprep.subr.mxu0 0.0
    %2321 = vmatpush1.msra.mxu0 0.0
    %2322 = vmatprep.subr.mxu0 0.0
    %2323 = vmatpush1.msra.mxu0 0.0
    %2324 = vmatprep.subr.mxu0 0.0
    %2325 = vmatpush1.msra.mxu0 0.0
    %2326 = vmatprep.subr.mxu0 0.0
    %2327 = vmatpush1.msra.mxu0 0.0
    %2328 = vmatprep.subr.mxu0 0.0
    %2329 = vmatpush1.msra.mxu0 0.0
    %2330 = vmatprep.subr.mxu0 0.0
    %2331 = vmatpush1.msra.mxu0 0.0
    %2332 = vmatprep.subr.mxu0 0.0
    %2333 = vmatpush1.msra.mxu0 0.0
    %2334 = vmatprep.subr.mxu0 0.0
    %2335 = vmatpush1.msra.mxu0 0.0
    %2336 = vmatprep.subr.mxu0 0.0
    %2337 = vmatpush1.msra.mxu0 0.0
    %2338 = vmatprep.subr.mxu0 0.0
    %2339 = vmatpush1.msra.mxu0 0.0
    %2340 = vmatprep.subr.mxu0 0.0
    %2341 = vmatpush1.msra.mxu0 0.0
    %2342 = vmatprep.subr.mxu0 0.0
    %2343 = vmatpush1.msra.mxu0 0.0
    %2344 = vmatprep.subr.mxu0 0.0
    %2345 = vmatpush1.msra.mxu0 0.0
    %2346 = vmatprep.subr.mxu0 0.0
    %2347 = vmatpush1.msra.mxu0 0.0
    %2348 = vmatprep.subr.mxu0 0.0
    %2349 = vmatpush1.msra.mxu0 0.0
    %2350 = vmatprep.subr.mxu0 0.0
    %2351 = vmatpush1.msra.mxu0 0.0
    %2352 = vmatprep.subr.mxu0 0.0
    %2353 = vmatpush1.msra.mxu0 0.0
    %2354 = vmatprep.subr.mxu0 0.0
    %2355 = vmatpush1.msra.mxu0 0.0
    %2356 = vmatprep.subr.mxu0 0.0
    %2357 = vmatpush1.msra.mxu0 0.0
    %2358 = vmatprep.subr.mxu0 0.0
    %2359 = vmatpush1.msra.mxu0 0.0
    %2360 = vmatprep.mubr.f32.mxu0 0.0
    %2361 = vmatmul.mubr.f32.gmra.mrb[0].mxu0 %v2294
    %v2362 = vpop.f32.mrb[0].mxu0
    %v2363 = vadd.f32 0.0, %v2362
    %v2364 = vpop.f32.mrb[0].mxu0
    %2365 = vdwg.mxu0
    %v2366 = vadd.f32 %v2121, %v2363
    %v2367 = vadd.s32 %v1141, 10
    %vm2368 = vcmp.eq.s32.totalorder %v520, %v2367
    %v2369 = vsel %vm2368, 1.0, 0.0
    %v2371 = vsel %vm1144, %v2369, 0
    %2373 = vmatprep.subr.mxu0 0.0
    %2374 = vmatpush1.msra.mxu0 %v1137
    %2375 = vmatprep.subr.mxu0 0.0
    %2376 = vmatpush1.msra.mxu0 %v1138
    %2377 = vmatprep.subr.mxu0 0.0
    %2378 = vmatpush1.msra.mxu0 %v1139
    %2379 = vmatprep.subr.mxu0 0.0
    %2380 = vmatpush1.msra.mxu0 %v1149
    %2381 = vmatprep.subr.mxu0 0.0
    %2382 = vmatpush1.msra.mxu0 0.0
    %2383 = vmatprep.subr.mxu0 0.0
    %2384 = vmatpush1.msra.mxu0 0.0
    %2385 = vmatprep.subr.mxu0 0.0
    %2386 = vmatpush1.msra.mxu0 0.0
    %2387 = vmatprep.subr.mxu0 0.0
    %2388 = vmatpush1.msra.mxu0 0.0
    %2389 = vmatprep.subr.mxu0 0.0
    %2390 = vmatpush1.msra.mxu0 0.0
    %2391 = vmatprep.subr.mxu0 0.0
    %2392 = vmatpush1.msra.mxu0 0.0
    %2393 = vmatprep.subr.mxu0 0.0
    %2394 = vmatpush1.msra.mxu0 0.0
    %2395 = vmatprep.subr.mxu0 0.0
    %2396 = vmatpush1.msra.mxu0 0.0
    %2397 = vmatprep.subr.mxu0 0.0
    %2398 = vmatpush1.msra.mxu0 0.0
    %2399 = vmatprep.subr.mxu0 0.0
    %2400 = vmatpush1.msra.mxu0 0.0
    %2401 = vmatprep.subr.mxu0 0.0
    %2402 = vmatpush1.msra.mxu0 0.0
    %2403 = vmatprep.subr.mxu0 0.0
    %2404 = vmatpush1.msra.mxu0 0.0
    %2405 = vmatprep.subr.mxu0 0.0
    %2406 = vmatpush1.msra.mxu0 0.0
    %2407 = vmatprep.subr.mxu0 0.0
    %2408 = vmatpush1.msra.mxu0 0.0
    %2409 = vmatprep.subr.mxu0 0.0
    %2410 = vmatpush1.msra.mxu0 0.0
    %2411 = vmatprep.subr.mxu0 0.0
    %2412 = vmatpush1.msra.mxu0 0.0
    %2413 = vmatprep.subr.mxu0 0.0
    %2414 = vmatpush1.msra.mxu0 0.0
    %2415 = vmatprep.subr.mxu0 0.0
    %2416 = vmatpush1.msra.mxu0 0.0
    %2417 = vmatprep.subr.mxu0 0.0
    %2418 = vmatpush1.msra.mxu0 0.0
    %2419 = vmatprep.subr.mxu0 0.0
    %2420 = vmatpush1.msra.mxu0 0.0
    %2421 = vmatprep.subr.mxu0 0.0
    %2422 = vmatpush1.msra.mxu0 0.0
    %2423 = vmatprep.subr.mxu0 0.0
    %2424 = vmatpush1.msra.mxu0 0.0
    %2425 = vmatprep.subr.mxu0 0.0
    %2426 = vmatpush1.msra.mxu0 0.0
    %2427 = vmatprep.subr.mxu0 0.0
    %2428 = vmatpush1.msra.mxu0 0.0
    %2429 = vmatprep.subr.mxu0 0.0
    %2430 = vmatpush1.msra.mxu0 0.0
    %2431 = vmatprep.subr.mxu0 0.0
    %2432 = vmatpush1.msra.mxu0 0.0
    %2433 = vmatprep.subr.mxu0 0.0
    %2434 = vmatpush1.msra.mxu0 0.0
    %2435 = vmatprep.subr.mxu0 0.0
    %2436 = vmatpush1.msra.mxu0 0.0
    %2437 = vmatprep.mubr.f32.mxu0 0.0
    %2438 = vmatmul.mubr.f32.gmra.mrb[0].mxu0 %v2371
    %v2439 = vpop.f32.mrb[0].mxu0
    %v2440 = vadd.f32 0.0, %v2439
    %v2441 = vpop.f32.mrb[0].mxu0
    %2442 = vdwg.mxu0
    %v2443 = vadd.s32 %v1141, 11
    %vm2444 = vcmp.eq.s32.totalorder %v520, %v2443
    %v2445 = vsel %vm2444, 1.0, 0.0
    %v2447 = vsel %vm1144, %v2445, 0
    %2449 = vmatprep.subr.mxu0 0.0
    %2450 = vmatpush1.msra.mxu0 %v1137
    %2451 = vmatprep.subr.mxu0 0.0
    %2452 = vmatpush1.msra.mxu0 %v1138
    %2453 = vmatprep.subr.mxu0 0.0
    %2454 = vmatpush1.msra.mxu0 %v1139
    %2455 = vmatprep.subr.mxu0 0.0
    %2456 = vmatpush1.msra.mxu0 %v1149
    %2457 = vmatprep.subr.mxu0 0.0
    %2458 = vmatpush1.msra.mxu0 0.0
    %2459 = vmatprep.subr.mxu0 0.0
    %2460 = vmatpush1.msra.mxu0 0.0
    %2461 = vmatprep.subr.mxu0 0.0
    %2462 = vmatpush1.msra.mxu0 0.0
    %2463 = vmatprep.subr.mxu0 0.0
    %2464 = vmatpush1.msra.mxu0 0.0
    %2465 = vmatprep.subr.mxu0 0.0
    %2466 = vmatpush1.msra.mxu0 0.0
    %2467 = vmatprep.subr.mxu0 0.0
    %2468 = vmatpush1.msra.mxu0 0.0
    %2469 = vmatprep.subr.mxu0 0.0
    %2470 = vmatpush1.msra.mxu0 0.0
    %2471 = vmatprep.subr.mxu0 0.0
    %2472 = vmatpush1.msra.mxu0 0.0
    %2473 = vmatprep.subr.mxu0 0.0
    %2474 = vmatpush1.msra.mxu0 0.0
    %2475 = vmatprep.subr.mxu0 0.0
    %2476 = vmatpush1.msra.mxu0 0.0
    %2477 = vmatprep.subr.mxu0 0.0
    %2478 = vmatpush1.msra.mxu0 0.0
    %2479 = vmatprep.subr.mxu0 0.0
    %2480 = vmatpush1.msra.mxu0 0.0
    %2481 = vmatprep.subr.mxu0 0.0
    %2482 = vmatpush1.msra.mxu0 0.0
    %2483 = vmatprep.subr.mxu0 0.0
    %2484 = vmatpush1.msra.mxu0 0.0
    %2485 = vmatprep.subr.mxu0 0.0
    %2486 = vmatpush1.msra.mxu0 0.0
    %2487 = vmatprep.subr.mxu0 0.0
    %2488 = vmatpush1.msra.mxu0 0.0
    %2489 = vmatprep.subr.mxu0 0.0
    %2490 = vmatpush1.msra.mxu0 0.0
    %2491 = vmatprep.subr.mxu0 0.0
    %2492 = vmatpush1.msra.mxu0 0.0
    %2493 = vmatprep.subr.mxu0 0.0
    %2494 = vmatpush1.msra.mxu0 0.0
    %2495 = vmatprep.subr.mxu0 0.0
    %2496 = vmatpush1.msra.mxu0 0.0
    %2497 = vmatprep.subr.mxu0 0.0
    %2498 = vmatpush1.msra.mxu0 0.0
    %2499 = vmatprep.subr.mxu0 0.0
    %2500 = vmatpush1.msra.mxu0 0.0
    %2501 = vmatprep.subr.mxu0 0.0
    %2502 = vmatpush1.msra.mxu0 0.0
    %2503 = vmatprep.subr.mxu0 0.0
    %2504 = vmatpush1.msra.mxu0 0.0
    %2505 = vmatprep.subr.mxu0 0.0
    %2506 = vmatpush1.msra.mxu0 0.0
    %2507 = vmatprep.subr.mxu0 0.0
    %2508 = vmatpush1.msra.mxu0 0.0
    %2509 = vmatprep.subr.mxu0 0.0
    %2510 = vmatpush1.msra.mxu0 0.0
    %2511 = vmatprep.subr.mxu0 0.0
    %2512 = vmatpush1.msra.mxu0 0.0
    %2513 = vmatprep.mubr.f32.mxu0 0.0
    %2514 = vmatmul.mubr.f32.gmra.mrb[0].mxu0 %v2447
    %v2515 = vpop.f32.mrb[0].mxu0
    %v2516 = vadd.f32 0.0, %v2515
    %v2517 = vpop.f32.mrb[0].mxu0
    %2518 = vdwg.mxu0
    %v2519 = vmax.f32 %v2440, %v2516
    %2521 = vrot.lane.b32.xlu0 %v2519, 120
    %v2522 = vpop.permute.xlu0 %2521
    %v2524 = vmax.f32 %v2519, %v2522
    %s2525 = scalar_lea.vmem %s5, 480
    %v2526 = vld [vmem:[%s2525] sm:$0xff]
    %v2527 = vld [vmem:[%s2525 + $0x8] sm:$0xff]
    %v2528 = vld [vmem:[%s2525 + $0x10] sm:$0xff]
    %v2529 = vld [vmem:[%s2525 + $0x18] sm:$0xff]
    %v2530 = vld [vmem:[%s2525 + $0x20] sm:$0xff]
    %v2531 = vld [vmem:[%s2525 + $0x28] sm:$0xff]
    %v2532 = vld [vmem:[%s2525 + $0x30] sm:$0xff]
    %v2533 = vld [vmem:[%s2525 + $0x38] sm:$0xff]
    %v2534 = vld [vmem:[%s2525 + $0x40] sm:$0xff]
    %v2535 = vld [vmem:[%s2525 + $0x48] sm:$0xff]
    %v2536 = vld [vmem:[%s2525 + $0x50] sm:$0xff]
    %v2537 = vld [vmem:[%s2525 + $0x58] sm:$0xff]
    %v2539 = vsel %vm90, %v2524, 0
    %2541 = vmatprep.subr.mxu0 0.0
    %2542 = vmatpush1.msra.mxu0 %v2526
    %2543 = vmatprep.subr.mxu0 0.0
    %2544 = vmatpush1.msra.mxu0 %v2527
    %2545 = vmatprep.subr.mxu0 0.0
    %2546 = vmatpush1.msra.mxu0 %v2528
    %2547 = vmatprep.subr.mxu0 0.0
    %2548 = vmatpush1.msra.mxu0 %v2529
    %2549 = vmatprep.subr.mxu0 0.0
    %2550 = vmatpush1.msra.mxu0 %v2530
    %2551 = vmatprep.subr.mxu0 0.0
    %2552 = vmatpush1.msra.mxu0 %v2531
    %2553 = vmatprep.subr.mxu0 0.0
    %2554 = vmatpush1.msra.mxu0 %v2532
    %2555 = vmatprep.subr.mxu0 0.0
    %2556 = vmatpush1.msra.mxu0 %v2533
    %2557 = vmatprep.subr.mxu0 0.0
    %2558 = vmatpush1.msra.mxu0 %v2534
    %2559 = vmatprep.subr.mxu0 0.0
    %2560 = vmatpush1.msra.mxu0 %v2535
    %2561 = vmatprep.subr.mxu0 0.0
    %2562 = vmatpush1.msra.mxu0 %v2536
    %2563 = vmatprep.subr.mxu0 0.0
    %2564 = vmatpush1.msra.mxu0 %v2537
    %2565 = vmatprep.subr.mxu0 0.0
    %2566 = vmatpush1.msra.mxu0 0.0
    %2567 = vmatprep.subr.mxu0 0.0
    %2568 = vmatpush1.msra.mxu0 0.0
    %2569 = vmatprep.subr.mxu0 0.0
    %2570 = vmatpush1.msra.mxu0 0.0
    %2571 = vmatprep.subr.mxu0 0.0
    %2572 = vmatpush1.msra.mxu0 0.0
    %2573 = vmatprep.subr.mxu0 0.0
    %2574 = vmatpush1.msra.mxu0 0.0
    %2575 = vmatprep.subr.mxu0 0.0
    %2576 = vmatpush1.msra.mxu0 0.0
    %2577 = vmatprep.subr.mxu0 0.0
    %2578 = vmatpush1.msra.mxu0 0.0
    %2579 = vmatprep.subr.mxu0 0.0
    %2580 = vmatpush1.msra.mxu0 0.0
    %2581 = vmatprep.subr.mxu0 0.0
    %2582 = vmatpush1.msra.mxu0 0.0
    %2583 = vmatprep.subr.mxu0 0.0
    %2584 = vmatpush1.msra.mxu0 0.0
    %2585 = vmatprep.subr.mxu0 0.0
    %2586 = vmatpush1.msra.mxu0 0.0
    %2587 = vmatprep.subr.mxu0 0.0
    %2588 = vmatpush1.msra.mxu0 0.0
    %2589 = vmatprep.subr.mxu0 0.0
    %2590 = vmatpush1.msra.mxu0 0.0
    %2591 = vmatprep.subr.mxu0 0.0
    %2592 = vmatpush1.msra.mxu0 0.0
    %2593 = vmatprep.subr.mxu0 0.0
    %2594 = vmatpush1.msra.mxu0 0.0
    %2595 = vmatprep.subr.mxu0 0.0
    %2596 = vmatpush1.msra.mxu0 0.0
    %2597 = vmatprep.subr.mxu0 0.0
    %2598 = vmatpush1.msra.mxu0 0.0
    %2599 = vmatprep.subr.mxu0 0.0
    %2600 = vmatpush1.msra.mxu0 0.0
    %2601 = vmatprep.subr.mxu0 0.0
    %2602 = vmatpush1.msra.mxu0 0.0
    %2603 = vmatprep.subr.mxu0 0.0
    %2604 = vmatpush1.msra.mxu0 0.0
    %2605 = vmatprep.mubr.f32.mxu0 0.0
    %2606 = vmatmul.mubr.f32.gmra.mrb[0].mxu0 %v2539
    %v2607 = vpop.f32.mrb[0].mxu0
    %v2608 = vadd.f32 0.0, %v2607
    %v2609 = vpop.f32.mrb[0].mxu0
    %2610 = vdwg.mxu0
    %v2611 = vadd.f32 %v2366, %v2608
    %v2612 = vld [vmem:[%s6] sm:$0x1]
    %v2614 = vlaneseq
    %v2615 = vshrl.u32 %v2614, 7
    %v2616 = vsub.s32 0, %v2615
    %v2617 = vrot.slane %v2612, %v2616
    %v2619 = vadd.f32 %v2611, %v2617
    %v2620 = vmax.f32 %v2619, 0.0
    %v2621 = vld [vmem:[%s7] sm:$0xff]
    %v2622 = vld [vmem:[%s7 + $0x8] sm:$0xff]
    %v2623 = vld [vmem:[%s7 + $0x10] sm:$0xff]
    %v2624 = vld [vmem:[%s7 + $0x18] sm:$0xff]
    %v2625 = vld [vmem:[%s8] sm:$0x1]
    %v2627 = vlaneseq
    %v2628 = vshrl.u32 %v2627, 7
    %v2629 = vsub.s32 0, %v2628
    %v2630 = vrot.slane %v2625, %v2629
    %vm2632 = vcmask 261120
    %v2634 = vsel %vm2632, %v2620, 0
    %2636 = vmatprep.subr.mxu0 0.0
    %2637 = vmatpush1.msra.mxu0 %v2621
    %2638 = vmatprep.subr.mxu0 0.0
    %2639 = vmatpush1.msra.mxu0 %v2622
    %2640 = vmatprep.subr.mxu0 0.0
    %2641 = vmatpush1.msra.mxu0 %v2623
    %2642 = vmatprep.subr.mxu0 0.0
    %2643 = vmatpush1.msra.mxu0 %v2624
    %2644 = vmatprep.subr.mxu0 0.0
    %2645 = vmatpush1.msra.mxu0 0.0
    %2646 = vmatprep.subr.mxu0 0.0
    %2647 = vmatpush1.msra.mxu0 0.0
    %2648 = vmatprep.subr.mxu0 0.0
    %2649 = vmatpush1.msra.mxu0 0.0
    %2650 = vmatprep.subr.mxu0 0.0
    %2651 = vmatpush1.msra.mxu0 0.0
    %2652 = vmatprep.subr.mxu0 0.0
    %2653 = vmatpush1.msra.mxu0 0.0
    %2654 = vmatprep.subr.mxu0 0.0
    %2655 = vmatpush1.msra.mxu0 0.0
    %2656 = vmatprep.subr.mxu0 0.0
    %2657 = vmatpush1.msra.mxu0 0.0
    %2658 = vmatprep.subr.mxu0 0.0
    %2659 = vmatpush1.msra.mxu0 0.0
    %2660 = vmatprep.subr.mxu0 0.0
    %2661 = vmatpush1.msra.mxu0 0.0
    %2662 = vmatprep.subr.mxu0 0.0
    %2663 = vmatpush1.msra.mxu0 0.0
    %2664 = vmatprep.subr.mxu0 0.0
    %2665 = vmatpush1.msra.mxu0 0.0
    %2666 = vmatprep.subr.mxu0 0.0
    %2667 = vmatpush1.msra.mxu0 0.0
    %2668 = vmatprep.subr.mxu0 0.0
    %2669 = vmatpush1.msra.mxu0 0.0
    %2670 = vmatprep.subr.mxu0 0.0
    %2671 = vmatpush1.msra.mxu0 0.0
    %2672 = vmatprep.subr.mxu0 0.0
    %2673 = vmatpush1.msra.mxu0 0.0
    %2674 = vmatprep.subr.mxu0 0.0
    %2675 = vmatpush1.msra.mxu0 0.0
    %2676 = vmatprep.subr.mxu0 0.0
    %2677 = vmatpush1.msra.mxu0 0.0
    %2678 = vmatprep.subr.mxu0 0.0
    %2679 = vmatpush1.msra.mxu0 0.0
    %2680 = vmatprep.subr.mxu0 0.0
    %2681 = vmatpush1.msra.mxu0 0.0
    %2682 = vmatprep.subr.mxu0 0.0
    %2683 = vmatpush1.msra.mxu0 0.0
    %2684 = vmatprep.subr.mxu0 0.0
    %2685 = vmatpush1.msra.mxu0 0.0
    %2686 = vmatprep.subr.mxu0 0.0
    %2687 = vmatpush1.msra.mxu0 0.0
    %2688 = vmatprep.subr.mxu0 0.0
    %2689 = vmatpush1.msra.mxu0 0.0
    %2690 = vmatprep.subr.mxu0 0.0
    %2691 = vmatpush1.msra.mxu0 0.0
    %2692 = vmatprep.subr.mxu0 0.0
    %2693 = vmatpush1.msra.mxu0 0.0
    %2694 = vmatprep.subr.mxu0 0.0
    %2695 = vmatpush1.msra.mxu0 0.0
    %2696 = vmatprep.subr.mxu0 0.0
    %2697 = vmatpush1.msra.mxu0 0.0
    %2698 = vmatprep.subr.mxu0 0.0
    %2699 = vmatpush1.msra.mxu0 0.0
    %2700 = vmatprep.mubr.f32.mxu0 0.0
    %2701 = vmatmul.mubr.f32.gmra.mrb[0].mxu0 %v2634
    %v2702 = vpop.f32.mrb[0].mxu0
    %v2703 = vadd.f32 %v2630, %v2702
    %v2704 = vpop.f32.mrb[0].mxu0
    %2705 = vdwg.mxu0
    %vm2706 = vcmask 74752
    %2707 = vst.msk [vmem:[#allocation2] sm:$0x3] %vm2706, %v2703
    // Predicated region
    $region38: #{convnet_forward.1} parent=1 // pred_check
      _
    $region39: #{convnet_forward.1} parent=1 // pred_check_branch
      %2709 = sbr.rel (0) target = $region41
    $region40: #{convnet_forward.1} parent=1 // pred_region
      %s2711 = ssub.s32 32, 32
      %2712 = vsyncadd [#allocation3], %s2711
      %s2714 = sshll.u32 [#allocation2], 4
      %s2715 = int_to_ptr.vmem [resolvable:$true] %s2714
      %2717 = dma.vmem_to_hbm [thread:$0]  %s2715, 32, %s9, [#allocation3]
    $region41: #{convnet_forward.1} parent=1 // pred_fallthru
      _
    // Predicated region
    $region42: #{convnet_forward.1} parent=1 // pred_check
      _
    $region43: #{convnet_forward.1} parent=1 // pred_check_branch
      %2719 = sbr.rel (0) target = $region45
    $region44: #{convnet_forward.1} parent=1 // pred_region
      %2720 = dma.done [#allocation3], 32
    $region45: #{convnet_forward.1} parent=1 // pred_fallthru
      _
    %2721 = vsyncpa [#allocation3], 1

</llo_original>
